<compile_context>
chip_gen: v7x
topology: tpu7x:2x2x1
jax: 0.10.0
libtpu: 0.0.40
codegen_flags: <defaults>
</compile_context>

<pallas_src>
import functools

import jax
import jax.numpy as jnp
from jax import lax
from jax.experimental import pallas as pl
from jax.experimental.pallas import tpu as pltpu

_VMEM_LIMIT = 32 * 1024 * 1024   # safe scoped limit on v5e/v6e/v7x; tiles are far below
_PADW = 8                        # aligned zero pad (sublanes) per side of the W axis


# ------------------------------ fused kernel -------------------------------- #

def _fused_bottleneck_kernel(*refs, th, negative_slope, has_shortcut):
    if has_shortcut:
        x_ref, wr_ref, wc_ref, we_ref, ws_ref, o_ref, b_ref, acc_ref = refs
    else:
        x_ref, wr_ref, wc_ref, we_ref, o_ref, b_ref, acc_ref = refs
        ws_ref = None

    # x_ref : (1, H, W, Cin) bf16   full image, resident across the h tiles of image n
    # wr_ref: (Cin, D)       bf16   conv_reduce
    # wc_ref: (9*D, D)       bf16   grouped 3x3, block-diagonal, tap t = 3*dy + dx
    # we_ref: (D, Cout)      bf16   conv_expand
    # ws_ref: (Cin, Cout)    bf16   optional 1x1 shortcut
    # o_ref : (1, th, W, Cout) bf16
    # b_ref : (th+2, W+2*PADW, D) bf16 scratch (row halo + aligned zero column pads)
    # acc_ref: (th*W, D) f32 scratch (3x3 accumulator)
    _, _, W, Cin = x_ref.shape
    D = wr_ref.shape[1]
    Cout = o_ref.shape[3]

    h = pl.program_id(1)
    n_h = pl.num_programs(1)
    h0 = h * th

    def reduce_rows(x2d):
        y = jnp.dot(x2d, wr_ref[...], preferred_element_type=jnp.float32)
        y = jnp.where(y >= 0, y, negative_slope * y)          # leaky_relu in f32
        return y.astype(b_ref.dtype)

    # --- stage 1: conv_reduce + leaky_relu into the row-haloed scratch ---------------
    # Data lives in columns [PADW, PADW+W); the 8-wide side strips stay zero so the
    # +/-1 column taps of the 3x3 read zeros (all stores below are tile-aligned).
    b_ref[:, 0:_PADW, :] = jnp.zeros((th + 2, _PADW, D), b_ref.dtype)
    b_ref[:, _PADW + W:_PADW + W + _PADW, :] = jnp.zeros((th + 2, _PADW, D), b_ref.dtype)

    x_int = x_ref[0, pl.ds(h0, th), :, :].reshape(th * W, Cin)
    b_ref[1:th + 1, _PADW:_PADW + W, :] = reduce_rows(x_int).reshape(th, W, D)

    @pl.when(h > 0)                    # top halo row: recompute reduce for 1 row
    def _():
        x_top = x_ref[0, pl.ds(h0 - 1, 1), :, :].reshape(W, Cin)
        b_ref[0:1, _PADW:_PADW + W, :] = reduce_rows(x_top).reshape(1, W, D)

    @pl.when(h == 0)                   # image border: zero pad row
    def _():
        b_ref[0:1, _PADW:_PADW + W, :] = jnp.zeros((1, W, D), b_ref.dtype)

    @pl.when(h < n_h - 1)              # bottom halo row
    def _():
        x_bot = x_ref[0, pl.ds(h0 + th, 1), :, :].reshape(W, Cin)
        b_ref[th + 1:th + 2, _PADW:_PADW + W, :] = reduce_rows(x_bot).reshape(1, W, D)

    @pl.when(h == n_h - 1)
    def _():
        b_ref[th + 1:th + 2, _PADW:_PADW + W, :] = jnp.zeros((1, W, D), b_ref.dtype)

    # --- stage 2: grouped 3x3 conv = 9 accumulating K=D matmuls, then leaky_relu ------
    for dy in range(3):
        part = None
        for dx in range(3):
            t = 3 * dy + dx
            c0 = _PADW - 1 + dx
            patch = b_ref[dy:dy + th, c0:c0 + W, :].reshape(th * W, D)
            c = jnp.dot(patch, wc_ref[t * D:(t + 1) * D, :],
                        preferred_element_type=jnp.float32)
            part = c if part is None else part + c
        if dy == 0:
            acc_ref[...] = part        # first write initializes (no zero pass)
        else:
            acc_ref[...] += part

    bact = acc_ref[...]
    bact = jnp.where(bact >= 0, bact, negative_slope * bact).astype(jnp.bfloat16)

    # --- stage 3: conv_expand + shortcut + residual add, bf16 output ------------------
    y = jnp.dot(bact, we_ref[...], preferred_element_type=jnp.float32)
    x_res = x_ref[0, pl.ds(h0, th), :, :].reshape(th * W, Cin)
    if has_shortcut:
        y = y + jnp.dot(x_res, ws_ref[...], preferred_element_type=jnp.float32)
    else:
        y = y + x_res.astype(jnp.float32)     # identity residual (bf16-rounded x)
    o_ref[...] = y.astype(o_ref.dtype).reshape(1, th, W, Cout)


# ------------------------------ wrapper -------------------------------------- #

def _pick_row_tile(H):
    # Largest divisor of H that is <= 8: bounds per-step scratch/acc footprint for
    # production W,D and gives >= 2 h-steps (halo path + megacore) for typical H >= 16.
    th = min(H, 8)
    while H % th != 0:
        th -= 1
    return th


def dresnext_bottleneck_forward(x_nchw, kparams, *, negative_slope=0.2):
    """Pallas implementation of DResNeXtBottleneck.forward (stride == 1)."""
    N, Cin, H, W = x_nchw.shape
    assert W % 8 == 0, "W must be a multiple of 8 (sublane alignment)"

    w_reduce = kparams['w_reduce']
    w_conv = kparams['w_conv']
    w_expand = kparams['w_expand']
    w_shortcut = kparams.get('w_shortcut')
    has_shortcut = w_shortcut is not None
    D = w_reduce.shape[1]
    Cout = w_expand.shape[1]
    if not has_shortcut:
        assert Cin == Cout, "identity shortcut requires in_channels == out_channels"

    x = jnp.transpose(x_nchw, (0, 2, 3, 1)).astype(jnp.bfloat16)   # NCHW -> NHWC bf16

    th = _pick_row_tile(H)
    n_h = H // th

    kern = functools.partial(_fused_bottleneck_kernel, th=th,
                             negative_slope=negative_slope, has_shortcut=has_shortcut)

    in_specs = [
        pl.BlockSpec((1, H, W, Cin), lambda n, h: (n, 0, 0, 0)),   # x: resident per image
        pl.BlockSpec((Cin, D), lambda n, h: (0, 0)),               # w_reduce
        pl.BlockSpec((9 * D, D), lambda n, h: (0, 0)),             # w_conv (stacked taps)
        pl.BlockSpec((D, Cout), lambda n, h: (0, 0)),              # w_expand
    ]
    args = [x, w_reduce, w_conv, w_expand]
    if has_shortcut:
        in_specs.append(pl.BlockSpec((Cin, Cout), lambda n, h: (0, 0)))
        args.append(w_shortcut)

    out = pl.pallas_call(
        kern,
        out_shape=jax.ShapeDtypeStruct((N, H, W, Cout), jnp.bfloat16),
        grid=(N, n_h),
        in_specs=in_specs,
        out_specs=pl.BlockSpec((1, th, W, Cout), lambda n, h: (n, h, 0, 0)),
        scratch_shapes=[
            pltpu.VMEM((th + 2, W + 2 * _PADW, D), jnp.bfloat16),   # haloed bottleneck
            pltpu.VMEM((th * W, D), jnp.float32),                   # 3x3 f32 accumulator
        ],
        compiler_params=pltpu.CompilerParams(
            dimension_semantics=("parallel", "parallel"),
            vmem_limit_bytes=_VMEM_LIMIT),
    )(*args)

    # NHWC bf16 -> NCHW f32 in a single transpose+cast pass.
    return jnp.transpose(out, (0, 3, 1, 2)).astype(jnp.float32)


# ---------------------- parameter init (deterministic) ----------------------- #

def init_params(key, in_channels, out_channels, cardinality):
    D = out_channels // 2
    assert D % cardinality == 0
    cg = D // cardinality                                   # input channels per group
    k1, k2, k3, k4 = jax.random.split(key, 4)

    w_reduce = 0.05 * jax.random.normal(k1, (in_channels, D), jnp.float32)    # (Cin, D)
    w_group = 0.05 * jax.random.normal(k2, (3, 3, cg, D), jnp.float32)        # HWIO grouped
    w_expand = 0.05 * jax.random.normal(k3, (D, out_channels), jnp.float32)   # (D, Cout)

    # Expand the grouped weight into block-diagonal (3, 3, D, D) so the grouped conv
    # runs as dense per-tap (D, D) MXU matmuls.  Fine for D <= an MXU tile; see TODO.
    w_full = jnp.zeros((3, 3, D, D), jnp.float32)
    for g in range(cardinality):
        w_full = w_full.at[:, :, g * cg:(g + 1) * cg, g * cg:(g + 1) * cg].set(
            w_group[:, :, :, g * cg:(g + 1) * cg])

    ref_params = dict(w_reduce=w_reduce, w_group=w_group, w_expand=w_expand)
    kern_params = dict(w_reduce=w_reduce.astype(jnp.bfloat16),
                       w_conv=w_full.reshape(9 * D, D).astype(jnp.bfloat16),
                       w_expand=w_expand.astype(jnp.bfloat16))
    if in_channels != out_channels:
        w_sc = 0.05 * jax.random.normal(k4, (in_channels, out_channels), jnp.float32)
        ref_params['w_shortcut'] = w_sc
        kern_params['w_shortcut'] = w_sc.astype(jnp.bfloat16)
    return kern_params, ref_params


# ------------------------ pure-JAX reference (check) ------------------------- #

def ref_forward(x_nchw, ref, cardinality):
    dn = ('NHWC', 'HWIO', 'NHWC')
    x = jnp.transpose(x_nchw, (0, 2, 3, 1))
    Cin = x.shape[-1]
    D = ref['w_reduce'].shape[1]
    Cout = ref['w_expand'].shape[1]

    y = lax.conv_general_dilated(x, ref['w_reduce'].reshape(1, 1, Cin, D),
                                 (1, 1), 'VALID', dimension_numbers=dn)
    y = jnp.where(y >= 0, y, 0.2 * y)
    y = lax.conv_general_dilated(y, ref['w_group'], (1, 1), ((1, 1), (1, 1)),
                                 dimension_numbers=dn,
                                 feature_group_count=cardinality)
    y = jnp.where(y >= 0, y, 0.2 * y)
    y = lax.conv_general_dilated(y, ref['w_expand'].reshape(1, 1, D, Cout),
                                 (1, 1), 'VALID', dimension_numbers=dn)
    if 'w_shortcut' in ref:
        r = lax.conv_general_dilated(x, ref['w_shortcut'].reshape(1, 1, Cin, Cout),
                                     (1, 1), 'VALID', dimension_numbers=dn)
    else:
        r = x
    return jnp.transpose(r + y, (0, 3, 1, 2))


# ----------------------------------- main ------------------------------------ #

if __name__ == "__main__":
    key = jax.random.PRNGKey(0)
    fwd = jax.jit(dresnext_bottleneck_forward)

    # Config A: module defaults (in == out -> identity shortcut).
    # Config B: in != out -> fused 1x1 conv shortcut path.
    configs = [
        dict(N=2, Cin=256, Cout=256, H=16, W=16, card=32),
        dict(N=2, Cin=128, Cout=256, H=16, W=16, card=32),
    ]

    for cfg in configs:
        kx, kp = jax.random.split(jax.random.fold_in(key, cfg['Cin']))
        x = jax.random.normal(kx, (cfg['N'], cfg['Cin'], cfg['H'], cfg['W']), jnp.float32)
        kern_params, ref_params = init_params(kp, cfg['Cin'], cfg['Cout'], cfg['card'])

        out = jax.block_until_ready(fwd(x, kern_params))
        assert out.shape == (cfg['N'], cfg['Cout'], cfg['H'], cfg['W']), out.shape

        ref = ref_forward(x, ref_params, cfg['card'])
        max_err = float(jnp.max(jnp.abs(out - ref)))
        assert max_err < 5e-2, f"max abs error too large: {max_err}"

    print("KERNEL_OK")
</pallas_src>

<mosaic_0001>
module attributes {stable_mosaic.version = 11 : i64} {
  func.func @_fused_bottleneck_kernel(%arg0: i32, %arg1: i32, %arg2: memref<1x16x16x256xbf16, #tpu.memory_space<vmem>>, %arg3: memref<256x128xbf16, #tpu.memory_space<vmem>>, %arg4: memref<1152x128xbf16, #tpu.memory_space<vmem>>, %arg5: memref<128x256xbf16, #tpu.memory_space<vmem>>, %arg6: memref<1x8x16x256xbf16, #tpu.memory_space<vmem>>, %arg7: memref<10x32x128xbf16, #tpu.memory_space<vmem>>, %arg8: memref<128x128xf32, #tpu.memory_space<vmem>>) attributes {dimension_semantics = [#tpu.dimension_semantics<parallel>, #tpu.dimension_semantics<parallel>], iteration_bounds = array<i64: 2, 2>, scalar_prefetch = 0 : i64, scratch_operands = 2 : i64, tpu.core_type = #tpu.core_type<tc>, window_params = [{transform_indices = @transform_0, window_bounds = array<i64: 1, 16, 16, 256>}, {pipeline_mode = #tpu.pipeline_mode<synchronous>, transform_indices = @transform_1, window_bounds = array<i64: 256, 128>}, {pipeline_mode = #tpu.pipeline_mode<synchronous>, transform_indices = @transform_2, window_bounds = array<i64: 1152, 128>}, {pipeline_mode = #tpu.pipeline_mode<synchronous>, transform_indices = @transform_3, window_bounds = array<i64: 128, 256>}, {transform_indices = @transform_4, window_bounds = array<i64: 1, 8, 16, 256>}]} {
    %c8_i32 = arith.constant 8 : i32
    %0 = arith.muli %arg1, %c8_i32 : i32
    %cst = arith.constant 0.000000e+00 : bf16
    %1 = vector.broadcast %cst : bf16 to vector<10x8x128xbf16>
    %c0 = arith.constant 0 : index
    %c0_0 = arith.constant 0 : index
    %c0_1 = arith.constant 0 : index
    %2 = vector.load %arg7[%c0, %c0_0, %c0_1] : memref<10x32x128xbf16, #tpu.memory_space<vmem>>, vector<10x8x128xbf16>
    tpu.vector_store %arg7[%c0, %c0_0, %c0_1], %1 {strides = array<i32>} : memref<10x32x128xbf16, #tpu.memory_space<vmem>>, vector<10x8x128xbf16>,
    %cst_2 = arith.constant 0.000000e+00 : bf16
    %3 = vector.broadcast %cst_2 : bf16 to vector<10x8x128xbf16>
    %c0_3 = arith.constant 0 : index
    %c24 = arith.constant 24 : index
    %c0_4 = arith.constant 0 : index
    %4 = vector.load %arg7[%c0_3, %c24, %c0_4] : memref<10x32x128xbf16, #tpu.memory_space<vmem>>, vector<10x8x128xbf16>
    tpu.vector_store %arg7[%c0_3, %c24, %c0_4], %3 {strides = array<i32>} : memref<10x32x128xbf16, #tpu.memory_space<vmem>>, vector<10x8x128xbf16>,
    %c0_5 = arith.constant 0 : index
    %5 = arith.index_cast %0 : i32 to index
    %c0_6 = arith.constant 0 : index
    %c0_7 = arith.constant 0 : index
    %6 = vector.load %arg2[%c0_5, %5, %c0_6, %c0_7] : memref<1x16x16x256xbf16, #tpu.memory_space<vmem>>, vector<1x8x16x256xbf16>
    %7 = vector.shape_cast %6 : vector<1x8x16x256xbf16> to vector<8x16x256xbf16>
    %8 = vector.shape_cast %7 : vector<8x16x256xbf16> to vector<128x256xbf16>
    %c0_8 = arith.constant 0 : index
    %c0_9 = arith.constant 0 : index
    %9 = vector.load %arg3[%c0_8, %c0_9] : memref<256x128xbf16, #tpu.memory_space<vmem>>, vector<256x128xbf16>
    %cst_10 = arith.constant dense<0.000000e+00> : vector<128x128xf32>
    %10 = tpu.matmul %8, %9, %cst_10 {dimension_numbers = #tpu.dot_dimension_numbers<[1], [0], [0], [1], [0, 0, 1, 1], [], []>} : vector<128x256xbf16>, vector<256x128xbf16>, vector<128x128xf32> -> vector<128x128xf32>
    %cst_11 = arith.constant 0.000000e+00 : f32
    %11 = vector.broadcast %cst_11 : f32 to vector<128x128xf32>
    %12 = arith.cmpf oge, %10, %11 : vector<128x128xf32>
    %cst_12 = arith.constant 2.000000e-01 : f32
    %13 = vector.broadcast %cst_12 : f32 to vector<128x128xf32>
    %14 = arith.mulf %13, %10 : vector<128x128xf32>
    %15 = arith.select %12, %10, %14 : vector<128x128xi1>, vector<128x128xf32>
    %16 = arith.truncf %15 : vector<128x128xf32> to vector<128x128xbf16>
    %17 = vector.shape_cast %16 : vector<128x128xbf16> to vector<8x16x128xbf16>
    %c1 = arith.constant 1 : index
    %c8 = arith.constant 8 : index
    %c0_13 = arith.constant 0 : index
    %18 = vector.load %arg7[%c1, %c8, %c0_13] : memref<10x32x128xbf16, #tpu.memory_space<vmem>>, vector<8x16x128xbf16>
    tpu.vector_store %arg7[%c1, %c8, %c0_13], %17 {strides = array<i32>} : memref<10x32x128xbf16, #tpu.memory_space<vmem>>, vector<8x16x128xbf16>,
    %c0_i32 = arith.constant 0 : i32
    %19 = arith.cmpi sgt, %arg1, %c0_i32 : i32
    %20 = arith.extui %19 : i1 to i32
    %c0_i32_14 = arith.constant 0 : i32
    %21 = arith.cmpi ne, %20, %c0_i32_14 : i32
    scf.if %21 {
      %c1_i32_87 = arith.constant 1 : i32
      %98 = arith.subi %0, %c1_i32_87 : i32
      %c0_88 = arith.constant 0 : index
      %99 = arith.index_cast %98 : i32 to index
      %c0_89 = arith.constant 0 : index
      %c0_90 = arith.constant 0 : index
      %100 = vector.load %arg2[%c0_88, %99, %c0_89, %c0_90] : memref<1x16x16x256xbf16, #tpu.memory_space<vmem>>, vector<1x1x16x256xbf16>
      %101 = vector.shape_cast %100 : vector<1x1x16x256xbf16> to vector<1x16x256xbf16>
      %102 = vector.shape_cast %101 : vector<1x16x256xbf16> to vector<16x256xbf16>
      %c0_91 = arith.constant 0 : index
      %c0_92 = arith.constant 0 : index
      %103 = vector.load %arg3[%c0_91, %c0_92] : memref<256x128xbf16, #tpu.memory_space<vmem>>, vector<256x128xbf16>
      %cst_93 = arith.constant dense<0.000000e+00> : vector<16x128xf32>
      %104 = tpu.matmul %102, %103, %cst_93 {dimension_numbers = #tpu.dot_dimension_numbers<[1], [0], [0], [1], [0, 0, 1, 1], [], []>} : vector<16x256xbf16>, vector<256x128xbf16>, vector<16x128xf32> -> vector<16x128xf32>
      %cst_94 = arith.constant 0.000000e+00 : f32
      %105 = vector.broadcast %cst_94 : f32 to vector<16x128xf32>
      %106 = arith.cmpf oge, %104, %105 : vector<16x128xf32>
      %cst_95 = arith.constant 2.000000e-01 : f32
      %107 = vector.broadcast %cst_95 : f32 to vector<16x128xf32>
      %108 = arith.mulf %107, %104 : vector<16x128xf32>
      %109 = arith.select %106, %104, %108 : vector<16x128xi1>, vector<16x128xf32>
      %110 = arith.truncf %109 : vector<16x128xf32> to vector<16x128xbf16>
      %111 = vector.shape_cast %110 : vector<16x128xbf16> to vector<1x16x128xbf16>
      %c0_96 = arith.constant 0 : index
      %c8_97 = arith.constant 8 : index
      %c0_98 = arith.constant 0 : index
      %112 = vector.load %arg7[%c0_96, %c8_97, %c0_98] : memref<10x32x128xbf16, #tpu.memory_space<vmem>>, vector<1x16x128xbf16>
      tpu.vector_store %arg7[%c0_96, %c8_97, %c0_98], %111 {strides = array<i32>} : memref<10x32x128xbf16, #tpu.memory_space<vmem>>, vector<1x16x128xbf16>,
    } else {
    }
    %c0_i32_15 = arith.constant 0 : i32
    %22 = arith.cmpi eq, %arg1, %c0_i32_15 : i32
    %23 = arith.extui %22 : i1 to i32
    %c0_i32_16 = arith.constant 0 : i32
    %24 = arith.cmpi ne, %23, %c0_i32_16 : i32
    scf.if %24 {
      %cst_87 = arith.constant 0.000000e+00 : bf16
      %98 = vector.broadcast %cst_87 : bf16 to vector<1x16x128xbf16>
      %c0_88 = arith.constant 0 : index
      %c8_89 = arith.constant 8 : index
      %c0_90 = arith.constant 0 : index
      %99 = vector.load %arg7[%c0_88, %c8_89, %c0_90] : memref<10x32x128xbf16, #tpu.memory_space<vmem>>, vector<1x16x128xbf16>
      tpu.vector_store %arg7[%c0_88, %c8_89, %c0_90], %98 {strides = array<i32>} : memref<10x32x128xbf16, #tpu.memory_space<vmem>>, vector<1x16x128xbf16>,
    } else {
    }
    %c1_i32 = arith.constant 1 : i32
    %25 = arith.cmpi slt, %arg1, %c1_i32 : i32
    %26 = arith.extui %25 : i1 to i32
    %c0_i32_17 = arith.constant 0 : i32
    %27 = arith.cmpi ne, %26, %c0_i32_17 : i32
    scf.if %27 {
      %c8_i32_87 = arith.constant 8 : i32
      %98 = arith.addi %0, %c8_i32_87 : i32
      %c0_88 = arith.constant 0 : index
      %99 = arith.index_cast %98 : i32 to index
      %c0_89 = arith.constant 0 : index
      %c0_90 = arith.constant 0 : index
      %100 = vector.load %arg2[%c0_88, %99, %c0_89, %c0_90] : memref<1x16x16x256xbf16, #tpu.memory_space<vmem>>, vector<1x1x16x256xbf16>
      %101 = vector.shape_cast %100 : vector<1x1x16x256xbf16> to vector<1x16x256xbf16>
      %102 = vector.shape_cast %101 : vector<1x16x256xbf16> to vector<16x256xbf16>
      %c0_91 = arith.constant 0 : index
      %c0_92 = arith.constant 0 : index
      %103 = vector.load %arg3[%c0_91, %c0_92] : memref<256x128xbf16, #tpu.memory_space<vmem>>, vector<256x128xbf16>
      %cst_93 = arith.constant dense<0.000000e+00> : vector<16x128xf32>
      %104 = tpu.matmul %102, %103, %cst_93 {dimension_numbers = #tpu.dot_dimension_numbers<[1], [0], [0], [1], [0, 0, 1, 1], [], []>} : vector<16x256xbf16>, vector<256x128xbf16>, vector<16x128xf32> -> vector<16x128xf32>
      %cst_94 = arith.constant 0.000000e+00 : f32
      %105 = vector.broadcast %cst_94 : f32 to vector<16x128xf32>
      %106 = arith.cmpf oge, %104, %105 : vector<16x128xf32>
      %cst_95 = arith.constant 2.000000e-01 : f32
      %107 = vector.broadcast %cst_95 : f32 to vector<16x128xf32>
      %108 = arith.mulf %107, %104 : vector<16x128xf32>
      %109 = arith.select %106, %104, %108 : vector<16x128xi1>, vector<16x128xf32>
      %110 = arith.truncf %109 : vector<16x128xf32> to vector<16x128xbf16>
      %111 = vector.shape_cast %110 : vector<16x128xbf16> to vector<1x16x128xbf16>
      %c9_96 = arith.constant 9 : index
      %c8_97 = arith.constant 8 : index
      %c0_98 = arith.constant 0 : index
      %112 = vector.load %arg7[%c9_96, %c8_97, %c0_98] : memref<10x32x128xbf16, #tpu.memory_space<vmem>>, vector<1x16x128xbf16>
      tpu.vector_store %arg7[%c9_96, %c8_97, %c0_98], %111 {strides = array<i32>} : memref<10x32x128xbf16, #tpu.memory_space<vmem>>, vector<1x16x128xbf16>,
    } else {
    }
    %c1_i32_18 = arith.constant 1 : i32
    %28 = arith.cmpi eq, %arg1, %c1_i32_18 : i32
    %29 = arith.extui %28 : i1 to i32
    %c0_i32_19 = arith.constant 0 : i32
    %30 = arith.cmpi ne, %29, %c0_i32_19 : i32
    scf.if %30 {
      %cst_87 = arith.constant 0.000000e+00 : bf16
      %98 = vector.broadcast %cst_87 : bf16 to vector<1x16x128xbf16>
      %c9_88 = arith.constant 9 : index
      %c8_89 = arith.constant 8 : index
      %c0_90 = arith.constant 0 : index
      %99 = vector.load %arg7[%c9_88, %c8_89, %c0_90] : memref<10x32x128xbf16, #tpu.memory_space<vmem>>, vector<1x16x128xbf16>
      tpu.vector_store %arg7[%c9_88, %c8_89, %c0_90], %98 {strides = array<i32>} : memref<10x32x128xbf16, #tpu.memory_space<vmem>>, vector<1x16x128xbf16>,
    } else {
    }
    %c0_20 = arith.constant 0 : index
    %c7 = arith.constant 7 : index
    %c0_21 = arith.constant 0 : index
    %31 = vector.load %arg7[%c0_20, %c7, %c0_21] : memref<10x32x128xbf16, #tpu.memory_space<vmem>>, vector<8x16x128xbf16>
    %32 = vector.shape_cast %31 : vector<8x16x128xbf16> to vector<128x128xbf16>
    %c0_22 = arith.constant 0 : index
    %c0_23 = arith.constant 0 : index
    %33 = vector.load %arg4[%c0_22, %c0_23] : memref<1152x128xbf16, #tpu.memory_space<vmem>>, vector<128x128xbf16>
    %cst_24 = arith.constant dense<0.000000e+00> : vector<128x128xf32>
    %34 = tpu.matmul %32, %33, %cst_24 {dimension_numbers = #tpu.dot_dimension_numbers<[1], [0], [0], [1], [0, 0, 1, 1], [], []>} : vector<128x128xbf16>, vector<128x128xbf16>, vector<128x128xf32> -> vector<128x128xf32>
    %c0_25 = arith.constant 0 : index
    %c8_26 = arith.constant 8 : index
    %c0_27 = arith.constant 0 : index
    %35 = vector.load %arg7[%c0_25, %c8_26, %c0_27] : memref<10x32x128xbf16, #tpu.memory_space<vmem>>, vector<8x16x128xbf16>
    %36 = vector.shape_cast %35 : vector<8x16x128xbf16> to vector<128x128xbf16>
    %c128 = arith.constant 128 : index
    %c0_28 = arith.constant 0 : index
    %37 = vector.load %arg4[%c128, %c0_28] : memref<1152x128xbf16, #tpu.memory_space<vmem>>, vector<128x128xbf16>
    %cst_29 = arith.constant dense<0.000000e+00> : vector<128x128xf32>
    %38 = tpu.matmul %36, %37, %cst_29 {dimension_numbers = #tpu.dot_dimension_numbers<[1], [0], [0], [1], [0, 0, 1, 1], [], []>} : vector<128x128xbf16>, vector<128x128xbf16>, vector<128x128xf32> -> vector<128x128xf32>
    %39 = arith.addf %34, %38 : vector<128x128xf32>
    %c0_30 = arith.constant 0 : index
    %c9 = arith.constant 9 : index
    %c0_31 = arith.constant 0 : index
    %40 = vector.load %arg7[%c0_30, %c9, %c0_31] : memref<10x32x128xbf16, #tpu.memory_space<vmem>>, vector<8x16x128xbf16>
    %41 = vector.shape_cast %40 : vector<8x16x128xbf16> to vector<128x128xbf16>
    %c256 = arith.constant 256 : index
    %c0_32 = arith.constant 0 : index
    %42 = vector.load %arg4[%c256, %c0_32] : memref<1152x128xbf16, #tpu.memory_space<vmem>>, vector<128x128xbf16>
    %cst_33 = arith.constant dense<0.000000e+00> : vector<128x128xf32>
    %43 = tpu.matmul %41, %42, %cst_33 {dimension_numbers = #tpu.dot_dimension_numbers<[1], [0], [0], [1], [0, 0, 1, 1], [], []>} : vector<128x128xbf16>, vector<128x128xbf16>, vector<128x128xf32> -> vector<128x128xf32>
    %44 = arith.addf %39, %43 : vector<128x128xf32>
    %c0_34 = arith.constant 0 : index
    %c0_35 = arith.constant 0 : index
    %45 = vector.load %arg8[%c0_34, %c0_35] : memref<128x128xf32, #tpu.memory_space<vmem>>, vector<128x128xf32>
    tpu.vector_store %arg8[%c0_34, %c0_35], %44 {strides = array<i32>} : memref<128x128xf32, #tpu.memory_space<vmem>>, vector<128x128xf32>,
    %c1_36 = arith.constant 1 : index
    %c7_37 = arith.constant 7 : index
    %c0_38 = arith.constant 0 : index
    %46 = vector.load %arg7[%c1_36, %c7_37, %c0_38] : memref<10x32x128xbf16, #tpu.memory_space<vmem>>, vector<8x16x128xbf16>
    %47 = vector.shape_cast %46 : vector<8x16x128xbf16> to vector<128x128xbf16>
    %c384 = arith.constant 384 : index
    %c0_39 = arith.constant 0 : index
    %48 = vector.load %arg4[%c384, %c0_39] : memref<1152x128xbf16, #tpu.memory_space<vmem>>, vector<128x128xbf16>
    %cst_40 = arith.constant dense<0.000000e+00> : vector<128x128xf32>
    %49 = tpu.matmul %47, %48, %cst_40 {dimension_numbers = #tpu.dot_dimension_numbers<[1], [0], [0], [1], [0, 0, 1, 1], [], []>} : vector<128x128xbf16>, vector<128x128xbf16>, vector<128x128xf32> -> vector<128x128xf32>
    %c1_41 = arith.constant 1 : index
    %c8_42 = arith.constant 8 : index
    %c0_43 = arith.constant 0 : index
    %50 = vector.load %arg7[%c1_41, %c8_42, %c0_43] : memref<10x32x128xbf16, #tpu.memory_space<vmem>>, vector<8x16x128xbf16>
    %51 = vector.shape_cast %50 : vector<8x16x128xbf16> to vector<128x128xbf16>
    %c512 = arith.constant 512 : index
    %c0_44 = arith.constant 0 : index
    %52 = vector.load %arg4[%c512, %c0_44] : memref<1152x128xbf16, #tpu.memory_space<vmem>>, vector<128x128xbf16>
    %cst_45 = arith.constant dense<0.000000e+00> : vector<128x128xf32>
    %53 = tpu.matmul %51, %52, %cst_45 {dimension_numbers = #tpu.dot_dimension_numbers<[1], [0], [0], [1], [0, 0, 1, 1], [], []>} : vector<128x128xbf16>, vector<128x128xbf16>, vector<128x128xf32> -> vector<128x128xf32>
    %54 = arith.addf %49, %53 : vector<128x128xf32>
    %c1_46 = arith.constant 1 : index
    %c9_47 = arith.constant 9 : index
    %c0_48 = arith.constant 0 : index
    %55 = vector.load %arg7[%c1_46, %c9_47, %c0_48] : memref<10x32x128xbf16, #tpu.memory_space<vmem>>, vector<8x16x128xbf16>
    %56 = vector.shape_cast %55 : vector<8x16x128xbf16> to vector<128x128xbf16>
    %c640 = arith.constant 640 : index
    %c0_49 = arith.constant 0 : index
    %57 = vector.load %arg4[%c640, %c0_49] : memref<1152x128xbf16, #tpu.memory_space<vmem>>, vector<128x128xbf16>
    %cst_50 = arith.constant dense<0.000000e+00> : vector<128x128xf32>
    %58 = tpu.matmul %56, %57, %cst_50 {dimension_numbers = #tpu.dot_dimension_numbers<[1], [0], [0], [1], [0, 0, 1, 1], [], []>} : vector<128x128xbf16>, vector<128x128xbf16>, vector<128x128xf32> -> vector<128x128xf32>
    %59 = arith.addf %54, %58 : vector<128x128xf32>
    %c0_51 = arith.constant 0 : index
    %c0_52 = arith.constant 0 : index
    %60 = vector.load %arg8[%c0_51, %c0_52] : memref<128x128xf32, #tpu.memory_space<vmem>>, vector<128x128xf32>
    %61 = arith.addf %60, %59 : vector<128x128xf32>
    %c0_53 = arith.constant 0 : index
    %c0_54 = arith.constant 0 : index
    %62 = vector.load %arg8[%c0_53, %c0_54] : memref<128x128xf32, #tpu.memory_space<vmem>>, vector<128x128xf32>
    tpu.vector_store %arg8[%c0_53, %c0_54], %61 {strides = array<i32>} : memref<128x128xf32, #tpu.memory_space<vmem>>, vector<128x128xf32>,
    %c2 = arith.constant 2 : index
    %c7_55 = arith.constant 7 : index
    %c0_56 = arith.constant 0 : index
    %63 = vector.load %arg7[%c2, %c7_55, %c0_56] : memref<10x32x128xbf16, #tpu.memory_space<vmem>>, vector<8x16x128xbf16>
    %64 = vector.shape_cast %63 : vector<8x16x128xbf16> to vector<128x128xbf16>
    %c768 = arith.constant 768 : index
    %c0_57 = arith.constant 0 : index
    %65 = vector.load %arg4[%c768, %c0_57] : memref<1152x128xbf16, #tpu.memory_space<vmem>>, vector<128x128xbf16>
    %cst_58 = arith.constant dense<0.000000e+00> : vector<128x128xf32>
    %66 = tpu.matmul %64, %65, %cst_58 {dimension_numbers = #tpu.dot_dimension_numbers<[1], [0], [0], [1], [0, 0, 1, 1], [], []>} : vector<128x128xbf16>, vector<128x128xbf16>, vector<128x128xf32> -> vector<128x128xf32>
    %c2_59 = arith.constant 2 : index
    %c8_60 = arith.constant 8 : index
    %c0_61 = arith.constant 0 : index
    %67 = vector.load %arg7[%c2_59, %c8_60, %c0_61] : memref<10x32x128xbf16, #tpu.memory_space<vmem>>, vector<8x16x128xbf16>
    %68 = vector.shape_cast %67 : vector<8x16x128xbf16> to vector<128x128xbf16>
    %c896 = arith.constant 896 : index
    %c0_62 = arith.constant 0 : index
    %69 = vector.load %arg4[%c896, %c0_62] : memref<1152x128xbf16, #tpu.memory_space<vmem>>, vector<128x128xbf16>
    %cst_63 = arith.constant dense<0.000000e+00> : vector<128x128xf32>
    %70 = tpu.matmul %68, %69, %cst_63 {dimension_numbers = #tpu.dot_dimension_numbers<[1], [0], [0], [1], [0, 0, 1, 1], [], []>} : vector<128x128xbf16>, vector<128x128xbf16>, vector<128x128xf32> -> vector<128x128xf32>
    %71 = arith.addf %66, %70 : vector<128x128xf32>
    %c2_64 = arith.constant 2 : index
    %c9_65 = arith.constant 9 : index
    %c0_66 = arith.constant 0 : index
    %72 = vector.load %arg7[%c2_64, %c9_65, %c0_66] : memref<10x32x128xbf16, #tpu.memory_space<vmem>>, vector<8x16x128xbf16>
    %73 = vector.shape_cast %72 : vector<8x16x128xbf16> to vector<128x128xbf16>
    %c1024 = arith.constant 1024 : index
    %c0_67 = arith.constant 0 : index
    %74 = vector.load %arg4[%c1024, %c0_67] : memref<1152x128xbf16, #tpu.memory_space<vmem>>, vector<128x128xbf16>
    %cst_68 = arith.constant dense<0.000000e+00> : vector<128x128xf32>
    %75 = tpu.matmul %73, %74, %cst_68 {dimension_numbers = #tpu.dot_dimension_numbers<[1], [0], [0], [1], [0, 0, 1, 1], [], []>} : vector<128x128xbf16>, vector<128x128xbf16>, vector<128x128xf32> -> vector<128x128xf32>
    %76 = arith.addf %71, %75 : vector<128x128xf32>
    %c0_69 = arith.constant 0 : index
    %c0_70 = arith.constant 0 : index
    %77 = vector.load %arg8[%c0_69, %c0_70] : memref<128x128xf32, #tpu.memory_space<vmem>>, vector<128x128xf32>
    %78 = arith.addf %77, %76 : vector<128x128xf32>
    %c0_71 = arith.constant 0 : index
    %c0_72 = arith.constant 0 : index
    %79 = vector.load %arg8[%c0_71, %c0_72] : memref<128x128xf32, #tpu.memory_space<vmem>>, vector<128x128xf32>
    tpu.vector_store %arg8[%c0_71, %c0_72], %78 {strides = array<i32>} : memref<128x128xf32, #tpu.memory_space<vmem>>, vector<128x128xf32>,
    %c0_73 = arith.constant 0 : index
    %c0_74 = arith.constant 0 : index
    %80 = vector.load %arg8[%c0_73, %c0_74] : memref<128x128xf32, #tpu.memory_space<vmem>>, vector<128x128xf32>
    %cst_75 = arith.constant 0.000000e+00 : f32
    %81 = vector.broadcast %cst_75 : f32 to vector<128x128xf32>
    %82 = arith.cmpf oge, %80, %81 : vector<128x128xf32>
    %cst_76 = arith.constant 2.000000e-01 : f32
    %83 = vector.broadcast %cst_76 : f32 to vector<128x128xf32>
    %84 = arith.mulf %83, %80 : vector<128x128xf32>
    %85 = arith.select %82, %80, %84 : vector<128x128xi1>, vector<128x128xf32>
    %86 = arith.truncf %85 : vector<128x128xf32> to vector<128x128xbf16>
    %c0_77 = arith.constant 0 : index
    %c0_78 = arith.constant 0 : index
    %87 = vector.load %arg5[%c0_77, %c0_78] : memref<128x256xbf16, #tpu.memory_space<vmem>>, vector<128x256xbf16>
    %cst_79 = arith.constant dense<0.000000e+00> : vector<128x256xf32>
    %88 = tpu.matmul %86, %87, %cst_79 {dimension_numbers = #tpu.dot_dimension_numbers<[1], [0], [0], [1], [0, 0, 1, 1], [], []>} : vector<128x128xbf16>, vector<128x256xbf16>, vector<128x256xf32> -> vector<128x256xf32>
    %c0_80 = arith.constant 0 : index
    %89 = arith.index_cast %0 : i32 to index
    %c0_81 = arith.constant 0 : index
    %c0_82 = arith.constant 0 : index
    %90 = vector.load %arg2[%c0_80, %89, %c0_81, %c0_82] : memref<1x16x16x256xbf16, #tpu.memory_space<vmem>>, vector<1x8x16x256xbf16>
    %91 = vector.shape_cast %90 : vector<1x8x16x256xbf16> to vector<8x16x256xbf16>
    %92 = vector.shape_cast %91 : vector<8x16x256xbf16> to vector<128x256xbf16>
    %93 = arith.extf %92 : vector<128x256xbf16> to vector<128x256xf32>
    %94 = arith.addf %88, %93 : vector<128x256xf32>
    %95 = arith.truncf %94 : vector<128x256xf32> to vector<128x256xbf16>
    %96 = vector.shape_cast %95 : vector<128x256xbf16> to vector<1x8x16x256xbf16>
    %c0_83 = arith.constant 0 : index
    %c0_84 = arith.constant 0 : index
    %c0_85 = arith.constant 0 : index
    %c0_86 = arith.constant 0 : index
    %97 = vector.load %arg6[%c0_83, %c0_84, %c0_85, %c0_86] : memref<1x8x16x256xbf16, #tpu.memory_space<vmem>>, vector<1x8x16x256xbf16>
    tpu.vector_store %arg6[%c0_83, %c0_84, %c0_85, %c0_86], %96 {strides = array<i32>} : memref<1x8x16x256xbf16, #tpu.memory_space<vmem>>, vector<1x8x16x256xbf16>,
    return
  }
  func.func @transform_0(%arg0: i32, %arg1: i32) -> (i32, i32, i32, i32) {
    %c0_i32 = arith.constant 0 : i32
    %c0_i32_0 = arith.constant 0 : i32
    %c0_i32_1 = arith.constant 0 : i32
    %c0_i32_2 = arith.constant 0 : i32
    return %arg0, %c0_i32, %c0_i32_0, %c0_i32_1 : i32, i32, i32, i32
  }
  func.func @transform_1(%arg0: i32, %arg1: i32) -> (i32, i32) {
    %c0_i32 = arith.constant 0 : i32
    %c0_i32_0 = arith.constant 0 : i32
    %c0_i32_1 = arith.constant 0 : i32
    return %c0_i32, %c0_i32_0 : i32, i32
  }
  func.func @transform_2(%arg0: i32, %arg1: i32) -> (i32, i32) {
    %c0_i32 = arith.constant 0 : i32
    %c0_i32_0 = arith.constant 0 : i32
    %c0_i32_1 = arith.constant 0 : i32
    return %c0_i32, %c0_i32_0 : i32, i32
  }
  func.func @transform_3(%arg0: i32, %arg1: i32) -> (i32, i32) {
    %c0_i32 = arith.constant 0 : i32
    %c0_i32_0 = arith.constant 0 : i32
    %c0_i32_1 = arith.constant 0 : i32
    return %c0_i32, %c0_i32_0 : i32, i32
  }
  func.func @transform_4(%arg0: i32, %arg1: i32) -> (i32, i32, i32, i32) {
    %c0_i32 = arith.constant 0 : i32
    %c0_i32_0 = arith.constant 0 : i32
    %c0_i32_1 = arith.constant 0 : i32
    return %arg0, %arg1, %c0_i32, %c0_i32_0 : i32, i32, i32, i32
  }
}

</mosaic_0001>

<llo_original>
// kernel: dresnext_bottleneck_forward.1
$region0: #{dresnext_bottleneck_forward.1}
  #allocation0 [shape = 'u32[]', space=smem, size = 0x4, offset = 0x4, fixed_abs, tag = 'smem constant byte address 0x4 - core index']
  #allocation1 [shape = 'u32[144,128]{1,0:T(1,128)}', space=vmem, size = 0x12000, scoped, tag = 'internal scratch']
  #allocation2 [shape = 'bf16[10,32,128]{2,1,0:T(16,128)(2,1)}', space=vmem, size = 0x14000, scoped, tag = 'scratch operand']
  #allocation3 [shape = 'f32[128,128]{1,0:T(8,128)}', space=vmem, size = 0x10000, scoped, tag = 'scratch operand']
  %s0 = inlined_call_operand.vmem [shape: bf16[2,16,16,256], index: 0, kind: input, shape index: {}]
  %s1 = inlined_call_operand.vmem [shape: bf16[256,128], index: 1, kind: input, shape index: {}]
  %s2 = inlined_call_operand.vmem [shape: bf16[1152,128], index: 2, kind: input, shape index: {}]
  %s3 = inlined_call_operand.vmem [shape: bf16[128,256], index: 3, kind: input, shape index: {}]
  %s4 = inlined_call_operand.vmem [shape: bf16[2,16,16,256], index: 4, kind: output, shape index: {}]
  %s5 = sld [smem:[#allocation0]]
  $region65: #{dresnext_bottleneck_forward.1} parent=0
    _
  %s7 = ssub.s32 1, %s5
  %s8 = scalar_select 0, %s7, %s5
  loop: start=0, step=1, limit=6
  $region2: #{dresnext_bottleneck_forward.1} parent=0 // loop_pre_header
    _
  $region3: #{dresnext_bottleneck_forward.1} parent=0 // loop_header
    %s10 = sphi 0, %s14
    %p11 = scmp.ge.s32.totalorder %s10, 6
    %s17 = sphi 0, %s29
    %s18 = sphi 0, %s25
    %s19 = sphi 0, %s17
    %s20 = sphi 0, %s18
    %s21 = sphi 0, %s19
    %s22 = sphi 0, %s20
    %s32 = sphi 0, %s34
    %s35 = sphi 0, %s32
    %s36 = sphi 0, %s35
    %s52 = sphi 0, %s36
    %s56 = sphi 0, %s56
    %s58 = sphi 0, %s56
    %s59 = sphi 0, %s58
    %s73 = sphi 0, %s59
    %s77 = sphi 0, %s77
    %s79 = sphi 0, %s77
    %s80 = sphi 0, %s79
    %s94 = sphi 0, %s80
    %s98 = sphi 0, %s98
    %s100 = sphi 0, %s98
    %s101 = sphi 0, %s100
    %s115 = sphi 0, %s101
    %s123 = sphi 0, %s125
    %s126 = sphi 0, %s123
    %s127 = sphi 0, %s126
    %s143 = sphi 0, %s127
  $region4: #{dresnext_bottleneck_forward.1} parent=0 // loop_header_branch
    %13 = sbr.rel (%p11) target = $region8
  $region5: #{dresnext_bottleneck_forward.1} parent=0 // loop_body
    %s15 = ssub.s32 %s10, 1
    %s16 = ssub.s32 %s10, 2
    %s23 = sadd.s32 1, %s18
    %p24 = scmp.ge.s32.totalorder %s23, 2
    %s25 = scalar_select %p24, 0, %s23
    %s26 = sadd.s32 1, %s17
    %s27 = scalar_select %p24, %s26, %s17
    %p28 = scmp.ge.s32.totalorder %s27, 2
    %s29 = scalar_select %p28, 0, %s27
    %s30 = ssub.s32 %s17, %s29
    %p31 = scmp.eq.s32.totalorder %s30, 0
    %s33 = sadd.s32 %s32, 1
    %s34 = scalar_select %p31, %s32, %s33
    %p37 = pneg %p31
    %p38 = scmp.eq.s32.totalorder %s10, 3
    %p39 = por %p37, %p38
    %p40 = scmp.ne.s32.totalorder %s32, %s35
    %p41 = scmp.eq.s32.totalorder %s10, 0
    %p42 = por %p40, %p41
    %p43 = scmp.ne.s32.totalorder %s32, %s35
    %p44 = scmp.eq.s32.totalorder %s15, 3
    %p45 = por %p43, %p44
    %p46 = scmp.ne.s32.totalorder %s35, %s36
    %p47 = scmp.eq.s32.totalorder %s15, 0
    %p48 = por %p46, %p47
    %p49 = scmp.ne.s32.totalorder %s35, %s36
    %p50 = scmp.eq.s32.totalorder %s16, 3
    %p51 = por %p49, %p50
    %p53 = scmp.ne.s32.totalorder %s36, %s52
    %p54 = scmp.eq.s32.totalorder %s16, 0
    %p55 = por %p53, %p54
    %s57 = sadd.s32 %s56, 1
    %p60 = scmp.eq.s32.totalorder %s10, 3
    %p61 = scmp.ne.s32.totalorder %s56, %s58
    %p62 = scmp.eq.s32.totalorder %s10, 0
    %p63 = por %p61, %p62
    %p64 = scmp.ne.s32.totalorder %s56, %s58
    %p65 = scmp.eq.s32.totalorder %s15, 3
    %p66 = por %p64, %p65
    %p67 = scmp.ne.s32.totalorder %s58, %s59
    %p68 = scmp.eq.s32.totalorder %s15, 0
    %p69 = por %p67, %p68
    %p70 = scmp.ne.s32.totalorder %s58, %s59
    %p71 = scmp.eq.s32.totalorder %s16, 3
    %p72 = por %p70, %p71
    %p74 = scmp.ne.s32.totalorder %s59, %s73
    %p75 = scmp.eq.s32.totalorder %s16, 0
    %p76 = por %p74, %p75
    %s78 = sadd.s32 %s77, 1
    %p81 = scmp.eq.s32.totalorder %s10, 3
    %p82 = scmp.ne.s32.totalorder %s77, %s79
    %p83 = scmp.eq.s32.totalorder %s10, 0
    %p84 = por %p82, %p83
    %p85 = scmp.ne.s32.totalorder %s77, %s79
    %p86 = scmp.eq.s32.totalorder %s15, 3
    %p87 = por %p85, %p86
    %p88 = scmp.ne.s32.totalorder %s79, %s80
    %p89 = scmp.eq.s32.totalorder %s15, 0
    %p90 = por %p88, %p89
    %p91 = scmp.ne.s32.totalorder %s79, %s80
    %p92 = scmp.eq.s32.totalorder %s16, 3
    %p93 = por %p91, %p92
    %p95 = scmp.ne.s32.totalorder %s80, %s94
    %p96 = scmp.eq.s32.totalorder %s16, 0
    %p97 = por %p95, %p96
    %s99 = sadd.s32 %s98, 1
    %p102 = scmp.eq.s32.totalorder %s10, 3
    %p103 = scmp.ne.s32.totalorder %s98, %s100
    %p104 = scmp.eq.s32.totalorder %s10, 0
    %p105 = por %p103, %p104
    %p106 = scmp.ne.s32.totalorder %s98, %s100
    %p107 = scmp.eq.s32.totalorder %s15, 3
    %p108 = por %p106, %p107
    %p109 = scmp.ne.s32.totalorder %s100, %s101
    %p110 = scmp.eq.s32.totalorder %s15, 0
    %p111 = por %p109, %p110
    %p112 = scmp.ne.s32.totalorder %s100, %s101
    %p113 = scmp.eq.s32.totalorder %s16, 3
    %p114 = por %p112, %p113
    %p116 = scmp.ne.s32.totalorder %s101, %s115
    %p117 = scmp.eq.s32.totalorder %s16, 0
    %p118 = por %p116, %p117
    %s119 = ssub.s32 %s17, %s29
    %s120 = ssub.s32 %s18, %s25
    %s121 = sor.u32 %s119, %s120
    %p122 = scmp.eq.s32.totalorder %s121, 0
    %s124 = sadd.s32 %s123, 1
    %s125 = scalar_select %p122, %s123, %s124
    %p128 = pneg %p122
    %p129 = scmp.eq.s32.totalorder %s10, 3
    %p130 = por %p128, %p129
    %p131 = scmp.ne.s32.totalorder %s123, %s126
    %p132 = scmp.eq.s32.totalorder %s10, 0
    %p133 = por %p131, %p132
    %p134 = scmp.ne.s32.totalorder %s123, %s126
    %p135 = scmp.eq.s32.totalorder %s15, 3
    %p136 = por %p134, %p135
    %p137 = scmp.ne.s32.totalorder %s126, %s127
    %p138 = scmp.eq.s32.totalorder %s15, 0
    %p139 = por %p137, %p138
    %p140 = scmp.ne.s32.totalorder %s126, %s127
    %p141 = scmp.eq.s32.totalorder %s16, 3
    %p142 = por %p140, %p141
    %p144 = scmp.ne.s32.totalorder %s127, %s143
    %p145 = scmp.eq.s32.totalorder %s16, 0
    %p146 = por %p144, %p145
    %p147 = scmp.le.s32.totalorder 1, %s10
    %p148 = scmp.lt.s32.totalorder %s10, 5
    %p149 = pnand %p147, %p148
    %p150 = pneg %p149
    // Predicated region
    $region9: #{dresnext_bottleneck_forward.1} parent=5 // pred_check
      _
    $region10: #{dresnext_bottleneck_forward.1} parent=5 // pred_check_branch
      %152 = sbr.rel (%p149) target = $region12
    $region11: #{dresnext_bottleneck_forward.1} parent=5 // pred_region
      %s153 = ssub.s32 %s10, 1
      // Predicated region
      $region13: #{dresnext_bottleneck_forward.1} parent=11 // pred_check
        %p154 = pneg %p69
      $region14: #{dresnext_bottleneck_forward.1} parent=11 // pred_check_branch
        %156 = sbr.rel (%p154) target = $region16
      $region15: #{dresnext_bottleneck_forward.1} parent=11 // pred_region
        _
      $region16: #{dresnext_bottleneck_forward.1} parent=11 // pred_fallthru
        _
      // Predicated region
      $region17: #{dresnext_bottleneck_forward.1} parent=11 // pred_check
        %p157 = pneg %p90
      $region18: #{dresnext_bottleneck_forward.1} parent=11 // pred_check_branch
        %159 = sbr.rel (%p157) target = $region20
      $region19: #{dresnext_bottleneck_forward.1} parent=11 // pred_region
        _
      $region20: #{dresnext_bottleneck_forward.1} parent=11 // pred_fallthru
        _
      // Predicated region
      $region21: #{dresnext_bottleneck_forward.1} parent=11 // pred_check
        %p160 = pneg %p111
      $region22: #{dresnext_bottleneck_forward.1} parent=11 // pred_check_branch
        %162 = sbr.rel (%p160) target = $region24
      $region23: #{dresnext_bottleneck_forward.1} parent=11 // pred_region
        _
      $region24: #{dresnext_bottleneck_forward.1} parent=11 // pred_fallthru
        _
    $region12: #{dresnext_bottleneck_forward.1} parent=5 // pred_fallthru
      _
    %p163 = scmp.lt.s32.totalorder %s10, 4
    // Predicated region
    $region25: #{dresnext_bottleneck_forward.1} parent=5 // pred_check
      %p164 = pneg %p163
    $region26: #{dresnext_bottleneck_forward.1} parent=5 // pred_check_branch
      %166 = sbr.rel (%p164) target = $region28
    $region27: #{dresnext_bottleneck_forward.1} parent=5 // pred_region
      // Predicated region
      $region29: #{dresnext_bottleneck_forward.1} parent=27 // pred_check
        %p167 = pneg %p42
      $region30: #{dresnext_bottleneck_forward.1} parent=27 // pred_check_branch
        %169 = sbr.rel (%p167) target = $region32
      $region31: #{dresnext_bottleneck_forward.1} parent=27 // pred_region
        %p170 = scmp.lt.s32.totalorder %s17, 1
        %s171 = scalar_select %p170, %s17, 1
        %s172 = smul.addr %s171, 64
        %s173 = smul.addr %s172, 4
        %s174 = scalar_lea.vmem %s0, %s173
      $region32: #{dresnext_bottleneck_forward.1} parent=27 // pred_fallthru
        _
    $region28: #{dresnext_bottleneck_forward.1} parent=5 // pred_fallthru
      _
    %p175 = scmp.le.s32.totalorder 1, %s10
    %p176 = scmp.lt.s32.totalorder %s10, 5
    %p177 = pnand %p175, %p176
    %p178 = pneg %p177
    // Predicated region
    $region33: #{dresnext_bottleneck_forward.1} parent=5 // pred_check
      _
    $region34: #{dresnext_bottleneck_forward.1} parent=5 // pred_check_branch
      %180 = sbr.rel (%p177) target = $region36
    $region35: #{dresnext_bottleneck_forward.1} parent=5 // pred_region
      %s181 = ssub.s32 %s10, 1
      %p182 = scmp.lt.s32.totalorder %s19, 1
      %s183 = scalar_select %p182, %s19, 1
      %s184 = smul.addr %s183, 64
      %s185 = smul.addr %s184, 4
      %s186 = scalar_lea.vmem %s0, %s185
      %p187 = pneg %p48
      %p188 = pneg %p45
      %p189 = pneg %p69
      %p190 = pneg %p66
      %p191 = pneg %p90
      %p192 = pneg %p87
      %p193 = pneg %p111
      %p194 = pneg %p108
      %p195 = pneg %p139
      %p196 = pneg %p136
      %s197 = smul.u32 8, %s20
      %p198 = scmp.lt.s32.totalorder %s19, 1
      %s199 = scalar_select %p198, %s19, 1
      %p200 = scmp.lt.s32.totalorder %s197, 15
      %s201 = scalar_select %p200, %s197, 15
      %s202 = smul.addr %s201, 4
      %s203 = smul.addr %s199, 64
      %s204 = sadd.s32 %s202, %s203
      %s205 = smul.addr %s204, 4
      %s206 = scalar_lea.vmem %s4, %s205
      %p207 = scmp.lt.s32.totalorder %s19, 1
      %s208 = scalar_select %p207, %s19, 1
      %s209 = smul.addr %s208, 64
      %s210 = smul.addr %s209, 4
      %s211 = scalar_lea.vmem %s0, %s210
      %s212 = smul.u32 8, %s20
      %p213 = scmp.lt.s32.totalorder %s19, 1
      %s214 = scalar_select %p213, %s19, 1
      %p215 = scmp.lt.s32.totalorder %s212, 15
      %s216 = scalar_select %p215, %s212, 15
      %s217 = smul.addr %s216, 4
      %s218 = smul.addr %s214, 64
      %s219 = sadd.s32 %s217, %s218
      %s220 = smul.addr %s219, 4
      %s221 = scalar_lea.vmem %s4, %s220
      %s222 = smul.u32 8, %s20
      %s224 = smul.u32 %s20, 8
      %225 = vst [vmem:[#allocation2] sm:$0xf] 0
      %226 = vst [vmem:[#allocation2 + $0x10] sm:$0xf] 0
      %227 = vst [vmem:[#allocation2 + $0x20] sm:$0xf] 0
      %228 = vst [vmem:[#allocation2 + $0x30] sm:$0xf] 0
      %229 = vst [vmem:[#allocation2 + $0x40] sm:$0xf] 0
      %230 = vst [vmem:[#allocation2 + $0x50] sm:$0xf] 0
      %231 = vst [vmem:[#allocation2 + $0x60] sm:$0xf] 0
      %232 = vst [vmem:[#allocation2 + $0x70] sm:$0xf] 0
      %233 = vst [vmem:[#allocation2 + $0x80] sm:$0xf] 0
      %234 = vst [vmem:[#allocation2 + $0x90] sm:$0xf] 0
      %235 = vst [vmem:[#allocation2 + $0x8] sm:$0xf0] 0
      %236 = vst [vmem:[#allocation2 + $0x18] sm:$0xf0] 0
      %237 = vst [vmem:[#allocation2 + $0x28] sm:$0xf0] 0
      %238 = vst [vmem:[#allocation2 + $0x38] sm:$0xf0] 0
      %239 = vst [vmem:[#allocation2 + $0x48] sm:$0xf0] 0
      %240 = vst [vmem:[#allocation2 + $0x58] sm:$0xf0] 0
      %241 = vst [vmem:[#allocation2 + $0x68] sm:$0xf0] 0
      %242 = vst [vmem:[#allocation2 + $0x78] sm:$0xf0] 0
      %243 = vst [vmem:[#allocation2 + $0x88] sm:$0xf0] 0
      %244 = vst [vmem:[#allocation2 + $0x98] sm:$0xf0] 0
      %s245 = smul.u32 %s224, 4
      %s246 = smul.addr %s245, 4
      %s247 = scalar_lea.vmem %s211, %s246
      %v248 = vld [vmem:[%s247] sm:$0xff]
      %v249 = vld [vmem:[%s247 + $0x8] sm:$0xff]
      %v250 = vld [vmem:[%s247 + $0x10] sm:$0xff]
      %v251 = vld [vmem:[%s247 + $0x18] sm:$0xff]
      %v252 = vld [vmem:[%s247 + $0x20] sm:$0xff]
      %v253 = vld [vmem:[%s247 + $0x28] sm:$0xff]
      %v254 = vld [vmem:[%s247 + $0x30] sm:$0xff]
      %v255 = vld [vmem:[%s247 + $0x38] sm:$0xff]
      %v256 = vld [vmem:[%s247 + $0x40] sm:$0xff]
      %v257 = vld [vmem:[%s247 + $0x48] sm:$0xff]
      %v258 = vld [vmem:[%s247 + $0x50] sm:$0xff]
      %v259 = vld [vmem:[%s247 + $0x58] sm:$0xff]
      %v260 = vld [vmem:[%s247 + $0x60] sm:$0xff]
      %v261 = vld [vmem:[%s247 + $0x68] sm:$0xff]
      %v262 = vld [vmem:[%s247 + $0x70] sm:$0xff]
      %v263 = vld [vmem:[%s247 + $0x78] sm:$0xff]
      %v264 = vld [vmem:[%s1] sm:$0xf]
      %v265 = vld [vmem:[%s1 + $0x4] sm:$0xf]
      %v266 = vld [vmem:[%s1 + $0x8] sm:$0xf]
      %v267 = vld [vmem:[%s1 + $0xc] sm:$0xf]
      %v268 = vld [vmem:[%s1 + $0x10] sm:$0xf]
      %v269 = vld [vmem:[%s1 + $0x14] sm:$0xf]
      %v270 = vld [vmem:[%s1 + $0x18] sm:$0xf]
      %v271 = vld [vmem:[%s1 + $0x1c] sm:$0xf]
      %v272 = vld [vmem:[%s1 + $0x20] sm:$0xf]
      %v273 = vld [vmem:[%s1 + $0x24] sm:$0xf]
      %v274 = vld [vmem:[%s1 + $0x28] sm:$0xf]
      %v275 = vld [vmem:[%s1 + $0x2c] sm:$0xf]
      %v276 = vld [vmem:[%s1 + $0x30] sm:$0xf]
      %v277 = vld [vmem:[%s1 + $0x34] sm:$0xf]
      %v278 = vld [vmem:[%s1 + $0x38] sm:$0xf]
      %v279 = vld [vmem:[%s1 + $0x3c] sm:$0xf]
      %v280 = vld [vmem:[%s1 + $0x40] sm:$0xf]
      %v281 = vld [vmem:[%s1 + $0x44] sm:$0xf]
      %v282 = vld [vmem:[%s1 + $0x48] sm:$0xf]
      %v283 = vld [vmem:[%s1 + $0x4c] sm:$0xf]
      %v284 = vld [vmem:[%s1 + $0x50] sm:$0xf]
      %v285 = vld [vmem:[%s1 + $0x54] sm:$0xf]
      %v286 = vld [vmem:[%s1 + $0x58] sm:$0xf]
      %v287 = vld [vmem:[%s1 + $0x5c] sm:$0xf]
      %v288 = vld [vmem:[%s1 + $0x60] sm:$0xf]
      %v289 = vld [vmem:[%s1 + $0x64] sm:$0xf]
      %v290 = vld [vmem:[%s1 + $0x68] sm:$0xf]
      %v291 = vld [vmem:[%s1 + $0x6c] sm:$0xf]
      %v292 = vld [vmem:[%s1 + $0x70] sm:$0xf]
      %v293 = vld [vmem:[%s1 + $0x74] sm:$0xf]
      %v294 = vld [vmem:[%s1 + $0x78] sm:$0xf]
      %v295 = vld [vmem:[%s1 + $0x7c] sm:$0xf]
      %v312 = vunpack.c.l.b16 %v248
      %v313 = vunpack.c.h.b16 %v248
      %v314 = vunpack.c.l.b16 %v249
      %v315 = vunpack.c.h.b16 %v249
      %v316 = vunpack.c.l.b16 %v250
      %v317 = vunpack.c.h.b16 %v250
      %v318 = vunpack.c.l.b16 %v251
      %v319 = vunpack.c.h.b16 %v251
      %v320 = vunpack.c.l.b16 %v252
      %v321 = vunpack.c.h.b16 %v252
      %v322 = vunpack.c.l.b16 %v253
      %v323 = vunpack.c.h.b16 %v253
      %v324 = vunpack.c.l.b16 %v254
      %v325 = vunpack.c.h.b16 %v254
      %v326 = vunpack.c.l.b16 %v255
      %v327 = vunpack.c.h.b16 %v255
      %v328 = vunpack.c.l.b16 %v256
      %v329 = vunpack.c.h.b16 %v256
      %v330 = vunpack.c.l.b16 %v257
      %v331 = vunpack.c.h.b16 %v257
      %v332 = vunpack.c.l.b16 %v258
      %v333 = vunpack.c.h.b16 %v258
      %v334 = vunpack.c.l.b16 %v259
      %v335 = vunpack.c.h.b16 %v259
      %v336 = vunpack.c.l.b16 %v260
      %v337 = vunpack.c.h.b16 %v260
      %v338 = vunpack.c.l.b16 %v261
      %v339 = vunpack.c.h.b16 %v261
      %v340 = vunpack.c.l.b16 %v262
      %v341 = vunpack.c.h.b16 %v262
      %v342 = vunpack.c.l.b16 %v263
      %v343 = vunpack.c.h.b16 %v263
      %v344 = vpack.c.b16 %v314, %v312
      %v345 = vpack.c.b16 %v315, %v313
      %v346 = vpack.c.b16 %v318, %v316
      %v347 = vpack.c.b16 %v319, %v317
      %v348 = vpack.c.b16 %v322, %v320
      %v349 = vpack.c.b16 %v323, %v321
      %v350 = vpack.c.b16 %v326, %v324
      %v351 = vpack.c.b16 %v327, %v325
      %v352 = vpack.c.b16 %v330, %v328
      %v353 = vpack.c.b16 %v331, %v329
      %v354 = vpack.c.b16 %v334, %v332
      %v355 = vpack.c.b16 %v335, %v333
      %v356 = vpack.c.b16 %v338, %v336
      %v357 = vpack.c.b16 %v339, %v337
      %v358 = vpack.c.b16 %v342, %v340
      %v359 = vpack.c.b16 %v343, %v341
      %v408 = vunpack.c.l.b16 %v264
      %v409 = vunpack.c.l.b16 %v265
      %v410 = vunpack.c.l.b16 %v266
      %v411 = vunpack.c.l.b16 %v267
      %v412 = vunpack.c.l.b16 %v268
      %v413 = vunpack.c.l.b16 %v269
      %v414 = vunpack.c.l.b16 %v270
      %v415 = vunpack.c.l.b16 %v271
      %v416 = vunpack.c.l.b16 %v272
      %v417 = vunpack.c.l.b16 %v273
      %v418 = vunpack.c.l.b16 %v274
      %v419 = vunpack.c.l.b16 %v275
      %v420 = vunpack.c.l.b16 %v276
      %v421 = vunpack.c.l.b16 %v277
      %v422 = vunpack.c.l.b16 %v278
      %v423 = vunpack.c.l.b16 %v279
      %v424 = vunpack.c.l.b16 %v280
      %v425 = vunpack.c.l.b16 %v281
      %v426 = vunpack.c.l.b16 %v282
      %v427 = vunpack.c.l.b16 %v283
      %v428 = vunpack.c.l.b16 %v284
      %v429 = vunpack.c.l.b16 %v285
      %v430 = vunpack.c.l.b16 %v286
      %v431 = vunpack.c.l.b16 %v287
      %v432 = vunpack.c.l.b16 %v288
      %v433 = vunpack.c.l.b16 %v289
      %v434 = vunpack.c.l.b16 %v290
      %v435 = vunpack.c.l.b16 %v291
      %v436 = vunpack.c.l.b16 %v292
      %v437 = vunpack.c.l.b16 %v293
      %v438 = vunpack.c.l.b16 %v294
      %v439 = vunpack.c.l.b16 %v295
      %v440 = vpack.c.b16 %v409, %v408
      %v441 = vpack.c.b16 %v411, %v410
      %v442 = vpack.c.b16 %v413, %v412
      %v443 = vpack.c.b16 %v415, %v414
      %v444 = vpack.c.b16 %v417, %v416
      %v445 = vpack.c.b16 %v419, %v418
      %v446 = vpack.c.b16 %v421, %v420
      %v447 = vpack.c.b16 %v423, %v422
      %v448 = vpack.c.b16 %v425, %v424
      %v449 = vpack.c.b16 %v427, %v426
      %v450 = vpack.c.b16 %v429, %v428
      %v451 = vpack.c.b16 %v431, %v430
      %v452 = vpack.c.b16 %v433, %v432
      %v453 = vpack.c.b16 %v435, %v434
      %v454 = vpack.c.b16 %v437, %v436
      %v455 = vpack.c.b16 %v439, %v438
      %472 = vmatprep.subr.bf16.mxu0 0
      %473 = vmatpush1.bf16.msra.mxu0 %v440
      %474 = vmatprep.subr.bf16.mxu0 0
      %475 = vmatpush1.bf16.msra.mxu0 %v441
      %476 = vmatprep.subr.bf16.mxu0 0
      %477 = vmatpush1.bf16.msra.mxu0 %v442
      %478 = vmatprep.subr.bf16.mxu0 0
      %479 = vmatpush1.bf16.msra.mxu0 %v443
      %480 = vmatprep.subr.bf16.mxu0 0
      %481 = vmatpush1.bf16.msra.mxu0 %v444
      %482 = vmatprep.subr.bf16.mxu0 0
      %483 = vmatpush1.bf16.msra.mxu0 %v445
      %484 = vmatprep.subr.bf16.mxu0 0
      %485 = vmatpush1.bf16.msra.mxu0 %v446
      %486 = vmatprep.subr.bf16.mxu0 0
      %487 = vmatpush1.bf16.msra.mxu0 %v447
      %488 = vmatprep.subr.bf16.mxu0 0
      %489 = vmatpush1.bf16.msra.mxu0 %v448
      %490 = vmatprep.subr.bf16.mxu0 0
      %491 = vmatpush1.bf16.msra.mxu0 %v449
      %492 = vmatprep.subr.bf16.mxu0 0
      %493 = vmatpush1.bf16.msra.mxu0 %v450
      %494 = vmatprep.subr.bf16.mxu0 0
      %495 = vmatpush1.bf16.msra.mxu0 %v451
      %496 = vmatprep.subr.bf16.mxu0 0
      %497 = vmatpush1.bf16.msra.mxu0 %v452
      %498 = vmatprep.subr.bf16.mxu0 0
      %499 = vmatpush1.bf16.msra.mxu0 %v453
      %500 = vmatprep.subr.bf16.mxu0 0
      %501 = vmatpush1.bf16.msra.mxu0 %v454
      %502 = vmatprep.subr.bf16.mxu0 0
      %503 = vmatpush1.bf16.msra.mxu0 %v455
      %504 = vmatprep.mubr.bf16.mxu0 %v345
      %505 = vmatmul.mubr.bf16.gmra.mrb[0].mxu0 %v344
      %v506 = vpop.f32.mrb[0].mxu0
      %v507 = vadd.f32 0.0, %v506
      %v508 = vpop.f32.mrb[0].mxu0
      %v509 = vpop.f32.mrb[0].mxu0
      %v510 = vadd.f32 0.0, %v509
      %v511 = vpop.f32.mrb[0].mxu0
      %512 = vmatprep.mubr.bf16.mxu0 %v347
      %513 = vmatmul.mubr.bf16.gmra.mrb[0].mxu0 %v346
      %v514 = vpop.f32.mrb[0].mxu0
      %v515 = vadd.f32 0.0, %v514
      %v516 = vpop.f32.mrb[0].mxu0
      %v517 = vpop.f32.mrb[0].mxu0
      %v518 = vadd.f32 0.0, %v517
      %v519 = vpop.f32.mrb[0].mxu0
      %520 = vmatprep.mubr.bf16.mxu0 %v349
      %521 = vmatmul.mubr.bf16.gmra.mrb[0].mxu0 %v348
      %v522 = vpop.f32.mrb[0].mxu0
      %v523 = vadd.f32 0.0, %v522
      %v524 = vpop.f32.mrb[0].mxu0
      %v525 = vpop.f32.mrb[0].mxu0
      %v526 = vadd.f32 0.0, %v525
      %v527 = vpop.f32.mrb[0].mxu0
      %528 = vmatprep.mubr.bf16.mxu0 %v351
      %529 = vmatmul.mubr.bf16.gmra.mrb[0].mxu0 %v350
      %v530 = vpop.f32.mrb[0].mxu0
      %v531 = vadd.f32 0.0, %v530
      %v532 = vpop.f32.mrb[0].mxu0
      %v533 = vpop.f32.mrb[0].mxu0
      %v534 = vadd.f32 0.0, %v533
      %v535 = vpop.f32.mrb[0].mxu0
      %536 = vmatprep.mubr.bf16.mxu0 %v353
      %537 = vmatmul.mubr.bf16.gmra.mrb[0].mxu0 %v352
      %v538 = vpop.f32.mrb[0].mxu0
      %v539 = vadd.f32 0.0, %v538
      %v540 = vpop.f32.mrb[0].mxu0
      %v541 = vpop.f32.mrb[0].mxu0
      %v542 = vadd.f32 0.0, %v541
      %v543 = vpop.f32.mrb[0].mxu0
      %544 = vmatprep.mubr.bf16.mxu0 %v355
      %545 = vmatmul.mubr.bf16.gmra.mrb[0].mxu0 %v354
      %v546 = vpop.f32.mrb[0].mxu0
      %v547 = vadd.f32 0.0, %v546
      %v548 = vpop.f32.mrb[0].mxu0
      %v549 = vpop.f32.mrb[0].mxu0
      %v550 = vadd.f32 0.0, %v549
      %v551 = vpop.f32.mrb[0].mxu0
      %552 = vmatprep.mubr.bf16.mxu0 %v357
      %553 = vmatmul.mubr.bf16.gmra.mrb[0].mxu0 %v356
      %v554 = vpop.f32.mrb[0].mxu0
      %v555 = vadd.f32 0.0, %v554
      %v556 = vpop.f32.mrb[0].mxu0
      %v557 = vpop.f32.mrb[0].mxu0
      %v558 = vadd.f32 0.0, %v557
      %v559 = vpop.f32.mrb[0].mxu0
      %560 = vmatprep.mubr.bf16.mxu0 %v359
      %561 = vmatmul.mubr.bf16.gmra.mrb[0].mxu0 %v358
      %v562 = vpop.f32.mrb[0].mxu0
      %v563 = vadd.f32 0.0, %v562
      %v564 = vpop.f32.mrb[0].mxu0
      %v565 = vpop.f32.mrb[0].mxu0
      %v566 = vadd.f32 0.0, %v565
      %v567 = vpop.f32.mrb[0].mxu0
      %568 = vdwg.mxu0
      %vm569 = vcmp.ge.f32.partialorder %v507, 0.0
      %vm570 = vcmp.ge.f32.partialorder %v510, 0.0
      %vm571 = vcmp.ge.f32.partialorder %v515, 0.0
      %vm572 = vcmp.ge.f32.partialorder %v518, 0.0
      %vm573 = vcmp.ge.f32.partialorder %v523, 0.0
      %vm574 = vcmp.ge.f32.partialorder %v526, 0.0
      %vm575 = vcmp.ge.f32.partialorder %v531, 0.0
      %vm576 = vcmp.ge.f32.partialorder %v534, 0.0
      %vm577 = vcmp.ge.f32.partialorder %v539, 0.0
      %vm578 = vcmp.ge.f32.partialorder %v542, 0.0
      %vm579 = vcmp.ge.f32.partialorder %v547, 0.0
      %vm580 = vcmp.ge.f32.partialorder %v550, 0.0
      %vm581 = vcmp.ge.f32.partialorder %v555, 0.0
      %vm582 = vcmp.ge.f32.partialorder %v558, 0.0
      %vm583 = vcmp.ge.f32.partialorder %v563, 0.0
      %vm584 = vcmp.ge.f32.partialorder %v566, 0.0
      %v585 = vmul.f32 %v507, 0.2
      %v586 = vmul.f32 %v510, 0.2
      %v587 = vmul.f32 %v515, 0.2
      %v588 = vmul.f32 %v518, 0.2
      %v589 = vmul.f32 %v523, 0.2
      %v590 = vmul.f32 %v526, 0.2
      %v591 = vmul.f32 %v531, 0.2
      %v592 = vmul.f32 %v534, 0.2
      %v593 = vmul.f32 %v539, 0.2
      %v594 = vmul.f32 %v542, 0.2
      %v595 = vmul.f32 %v547, 0.2
      %v596 = vmul.f32 %v550, 0.2
      %v597 = vmul.f32 %v555, 0.2
      %v598 = vmul.f32 %v558, 0.2
      %v599 = vmul.f32 %v563, 0.2
      %v600 = vmul.f32 %v566, 0.2
      %v601 = vsel %vm569, %v507, %v585
      %v602 = vsel %vm570, %v510, %v586
      %v603 = vsel %vm571, %v515, %v587
      %v604 = vsel %vm572, %v518, %v588
      %v605 = vsel %vm573, %v523, %v589
      %v606 = vsel %vm574, %v526, %v590
      %v607 = vsel %vm575, %v531, %v591
      %v608 = vsel %vm576, %v534, %v592
      %v609 = vsel %vm577, %v539, %v593
      %v610 = vsel %vm578, %v542, %v594
      %v611 = vsel %vm579, %v547, %v595
      %v612 = vsel %vm580, %v550, %v596
      %v613 = vsel %vm581, %v555, %v597
      %v614 = vsel %vm582, %v558, %v598
      %v615 = vsel %vm583, %v563, %v599
      %v616 = vsel %vm584, %v566, %v600
      %v617 = vpack.c.bf16 %v602, %v601
      %v618 = vpack.c.bf16 %v604, %v603
      %v619 = vpack.c.bf16 %v606, %v605
      %v620 = vpack.c.bf16 %v608, %v607
      %v621 = vpack.c.bf16 %v610, %v609
      %v622 = vpack.c.bf16 %v612, %v611
      %v623 = vpack.c.bf16 %v614, %v613
      %v624 = vpack.c.bf16 %v616, %v615
      %v633 = vrot.slane %v617, 4
      %v634 = vrot.slane %v618, 4
      %v635 = vrot.slane %v619, 4
      %v636 = vrot.slane %v620, 4
      %v637 = vrot.slane %v621, 4
      %v638 = vrot.slane %v622, 4
      %v639 = vrot.slane %v623, 4
      %v640 = vrot.slane %v624, 4
      %s649 = scalar_lea.vmem [#allocation2], 16
      %650 = vst [vmem:[%s649] sm:$0xf0] %v633
      %651 = vst [vmem:[%s649 + $0x8] sm:$0xf] %v633
      %652 = vst [vmem:[%s649 + $0x10] sm:$0xf0] %v634
      %653 = vst [vmem:[%s649 + $0x18] sm:$0xf] %v634
      %654 = vst [vmem:[%s649 + $0x20] sm:$0xf0] %v635
      %655 = vst [vmem:[%s649 + $0x28] sm:$0xf] %v635
      %656 = vst [vmem:[%s649 + $0x30] sm:$0xf0] %v636
      %657 = vst [vmem:[%s649 + $0x38] sm:$0xf] %v636
      %658 = vst [vmem:[%s649 + $0x40] sm:$0xf0] %v637
      %659 = vst [vmem:[%s649 + $0x48] sm:$0xf] %v637
      %660 = vst [vmem:[%s649 + $0x50] sm:$0xf0] %v638
      %661 = vst [vmem:[%s649 + $0x58] sm:$0xf] %v638
      %662 = vst [vmem:[%s649 + $0x60] sm:$0xf0] %v639
      %663 = vst [vmem:[%s649 + $0x68] sm:$0xf] %v639
      %664 = vst [vmem:[%s649 + $0x70] sm:$0xf0] %v640
      %665 = vst [vmem:[%s649 + $0x78] sm:$0xf] %v640
      %p666 = scmp.gt.s32.totalorder %s20, 0
      // Predicated region
      $region37: #{dresnext_bottleneck_forward.1} parent=35 // pred_check
        %p667 = pneg %p666
      $region38: #{dresnext_bottleneck_forward.1} parent=35 // pred_check_branch
        %669 = sbr.rel (%p667) target = $region40
      $region39: #{dresnext_bottleneck_forward.1} parent=35 // pred_region
        %s670 = ssub.s32 %s224, 1
        %s671 = smul.u32 %s670, 4
        %s672 = smul.addr %s671, 4
        %s673 = scalar_lea.vmem %s211, %s672
        %v674 = vld [vmem:[%s673] sm:$0xff]
        %v675 = vld [vmem:[%s673 + $0x8] sm:$0xff]
        %v676 = vld [vmem:[%s1] sm:$0xf]
        %v677 = vld [vmem:[%s1 + $0x4] sm:$0xf]
        %v678 = vld [vmem:[%s1 + $0x8] sm:$0xf]
        %v679 = vld [vmem:[%s1 + $0xc] sm:$0xf]
        %v680 = vld [vmem:[%s1 + $0x10] sm:$0xf]
        %v681 = vld [vmem:[%s1 + $0x14] sm:$0xf]
        %v682 = vld [vmem:[%s1 + $0x18] sm:$0xf]
        %v683 = vld [vmem:[%s1 + $0x1c] sm:$0xf]
        %v684 = vld [vmem:[%s1 + $0x20] sm:$0xf]
        %v685 = vld [vmem:[%s1 + $0x24] sm:$0xf]
        %v686 = vld [vmem:[%s1 + $0x28] sm:$0xf]
        %v687 = vld [vmem:[%s1 + $0x2c] sm:$0xf]
        %v688 = vld [vmem:[%s1 + $0x30] sm:$0xf]
        %v689 = vld [vmem:[%s1 + $0x34] sm:$0xf]
        %v690 = vld [vmem:[%s1 + $0x38] sm:$0xf]
        %v691 = vld [vmem:[%s1 + $0x3c] sm:$0xf]
        %v692 = vld [vmem:[%s1 + $0x40] sm:$0xf]
        %v693 = vld [vmem:[%s1 + $0x44] sm:$0xf]
        %v694 = vld [vmem:[%s1 + $0x48] sm:$0xf]
        %v695 = vld [vmem:[%s1 + $0x4c] sm:$0xf]
        %v696 = vld [vmem:[%s1 + $0x50] sm:$0xf]
        %v697 = vld [vmem:[%s1 + $0x54] sm:$0xf]
        %v698 = vld [vmem:[%s1 + $0x58] sm:$0xf]
        %v699 = vld [vmem:[%s1 + $0x5c] sm:$0xf]
        %v700 = vld [vmem:[%s1 + $0x60] sm:$0xf]
        %v701 = vld [vmem:[%s1 + $0x64] sm:$0xf]
        %v702 = vld [vmem:[%s1 + $0x68] sm:$0xf]
        %v703 = vld [vmem:[%s1 + $0x6c] sm:$0xf]
        %v704 = vld [vmem:[%s1 + $0x70] sm:$0xf]
        %v705 = vld [vmem:[%s1 + $0x74] sm:$0xf]
        %v706 = vld [vmem:[%s1 + $0x78] sm:$0xf]
        %v707 = vld [vmem:[%s1 + $0x7c] sm:$0xf]
        %v710 = vunpack.c.l.b16 %v674
        %v711 = vunpack.c.h.b16 %v674
        %v712 = vunpack.c.l.b16 %v675
        %v713 = vunpack.c.h.b16 %v675
        %v714 = vpack.c.b16 %v712, %v710
        %v715 = vpack.c.b16 %v713, %v711
        %v750 = vunpack.c.l.b16 %v676
        %v751 = vunpack.c.l.b16 %v677
        %v752 = vunpack.c.l.b16 %v678
        %v753 = vunpack.c.l.b16 %v679
        %v754 = vunpack.c.l.b16 %v680
        %v755 = vunpack.c.l.b16 %v681
        %v756 = vunpack.c.l.b16 %v682
        %v757 = vunpack.c.l.b16 %v683
        %v758 = vunpack.c.l.b16 %v684
        %v759 = vunpack.c.l.b16 %v685
        %v760 = vunpack.c.l.b16 %v686
        %v761 = vunpack.c.l.b16 %v687
        %v762 = vunpack.c.l.b16 %v688
        %v763 = vunpack.c.l.b16 %v689
        %v764 = vunpack.c.l.b16 %v690
        %v765 = vunpack.c.l.b16 %v691
        %v766 = vunpack.c.l.b16 %v692
        %v767 = vunpack.c.l.b16 %v693
        %v768 = vunpack.c.l.b16 %v694
        %v769 = vunpack.c.l.b16 %v695
        %v770 = vunpack.c.l.b16 %v696
        %v771 = vunpack.c.l.b16 %v697
        %v772 = vunpack.c.l.b16 %v698
        %v773 = vunpack.c.l.b16 %v699
        %v774 = vunpack.c.l.b16 %v700
        %v775 = vunpack.c.l.b16 %v701
        %v776 = vunpack.c.l.b16 %v702
        %v777 = vunpack.c.l.b16 %v703
        %v778 = vunpack.c.l.b16 %v704
        %v779 = vunpack.c.l.b16 %v705
        %v780 = vunpack.c.l.b16 %v706
        %v781 = vunpack.c.l.b16 %v707
        %v782 = vpack.c.b16 %v751, %v750
        %v783 = vpack.c.b16 %v753, %v752
        %v784 = vpack.c.b16 %v755, %v754
        %v785 = vpack.c.b16 %v757, %v756
        %v786 = vpack.c.b16 %v759, %v758
        %v787 = vpack.c.b16 %v761, %v760
        %v788 = vpack.c.b16 %v763, %v762
        %v789 = vpack.c.b16 %v765, %v764
        %v790 = vpack.c.b16 %v767, %v766
        %v791 = vpack.c.b16 %v769, %v768
        %v792 = vpack.c.b16 %v771, %v770
        %v793 = vpack.c.b16 %v773, %v772
        %v794 = vpack.c.b16 %v775, %v774
        %v795 = vpack.c.b16 %v777, %v776
        %v796 = vpack.c.b16 %v779, %v778
        %v797 = vpack.c.b16 %v781, %v780
        %814 = vmatprep.subr.bf16.mxu0 0
        %815 = vmatpush1.bf16.msra.mxu0 %v782
        %816 = vmatprep.subr.bf16.mxu0 0
        %817 = vmatpush1.bf16.msra.mxu0 %v783
        %818 = vmatprep.subr.bf16.mxu0 0
        %819 = vmatpush1.bf16.msra.mxu0 %v784
        %820 = vmatprep.subr.bf16.mxu0 0
        %821 = vmatpush1.bf16.msra.mxu0 %v785
        %822 = vmatprep.subr.bf16.mxu0 0
        %823 = vmatpush1.bf16.msra.mxu0 %v786
        %824 = vmatprep.subr.bf16.mxu0 0
        %825 = vmatpush1.bf16.msra.mxu0 %v787
        %826 = vmatprep.subr.bf16.mxu0 0
        %827 = vmatpush1.bf16.msra.mxu0 %v788
        %828 = vmatprep.subr.bf16.mxu0 0
        %829 = vmatpush1.bf16.msra.mxu0 %v789
        %830 = vmatprep.subr.bf16.mxu0 0
        %831 = vmatpush1.bf16.msra.mxu0 %v790
        %832 = vmatprep.subr.bf16.mxu0 0
        %833 = vmatpush1.bf16.msra.mxu0 %v791
        %834 = vmatprep.subr.bf16.mxu0 0
        %835 = vmatpush1.bf16.msra.mxu0 %v792
        %836 = vmatprep.subr.bf16.mxu0 0
        %837 = vmatpush1.bf16.msra.mxu0 %v793
        %838 = vmatprep.subr.bf16.mxu0 0
        %839 = vmatpush1.bf16.msra.mxu0 %v794
        %840 = vmatprep.subr.bf16.mxu0 0
        %841 = vmatpush1.bf16.msra.mxu0 %v795
        %842 = vmatprep.subr.bf16.mxu0 0
        %843 = vmatpush1.bf16.msra.mxu0 %v796
        %844 = vmatprep.subr.bf16.mxu0 0
        %845 = vmatpush1.bf16.msra.mxu0 %v797
        %846 = vmatprep.mubr.bf16.mxu0 %v715
        %847 = vmatmul.mubr.bf16.gmra.mrb[0].mxu0 %v714
        %v848 = vpop.f32.mrb[0].mxu0
        %v849 = vadd.f32 0.0, %v848
        %v850 = vpop.f32.mrb[0].mxu0
        %v851 = vpop.f32.mrb[0].mxu0
        %v852 = vadd.f32 0.0, %v851
        %v853 = vpop.f32.mrb[0].mxu0
        %854 = vdwg.mxu0
        %vm855 = vcmp.ge.f32.partialorder %v849, 0.0
        %vm856 = vcmp.ge.f32.partialorder %v852, 0.0
        %v857 = vmul.f32 %v849, 0.2
        %v858 = vmul.f32 %v852, 0.2
        %v859 = vsel %vm855, %v849, %v857
        %v860 = vsel %vm856, %v852, %v858
        %v861 = vpack.c.bf16 %v860, %v859
        %v863 = vrot.slane %v861, 4
        %865 = vst [vmem:[#allocation2] sm:$0xf0] %v863
        %866 = vst [vmem:[#allocation2 + $0x8] sm:$0xf] %v863
      $region40: #{dresnext_bottleneck_forward.1} parent=35 // pred_fallthru
        _
      %p867 = scmp.eq.s32.totalorder %s20, 0
      // Predicated region
      $region41: #{dresnext_bottleneck_forward.1} parent=35 // pred_check
        %p868 = pneg %p867
      $region42: #{dresnext_bottleneck_forward.1} parent=35 // pred_check_branch
        %870 = sbr.rel (%p868) target = $region44
      $region43: #{dresnext_bottleneck_forward.1} parent=35 // pred_region
        %871 = vst [vmem:[#allocation2] sm:$0xf0] 0
        %872 = vst [vmem:[#allocation2 + $0x8] sm:$0xf] 0
      $region44: #{dresnext_bottleneck_forward.1} parent=35 // pred_fallthru
        _
      %p873 = scmp.lt.s32.totalorder %s20, 1
      // Predicated region
      $region45: #{dresnext_bottleneck_forward.1} parent=35 // pred_check
        %p874 = pneg %p873
      $region46: #{dresnext_bottleneck_forward.1} parent=35 // pred_check_branch
        %876 = sbr.rel (%p874) target = $region48
      $region47: #{dresnext_bottleneck_forward.1} parent=35 // pred_region
        %s877 = sadd.s32 %s224, 8
        %s878 = smul.u32 %s877, 4
        %s879 = smul.addr %s878, 4
        %s880 = scalar_lea.vmem %s211, %s879
        %v881 = vld [vmem:[%s880] sm:$0xff]
        %v882 = vld [vmem:[%s880 + $0x8] sm:$0xff]
        %v883 = vld [vmem:[%s1] sm:$0xf]
        %v884 = vld [vmem:[%s1 + $0x4] sm:$0xf]
        %v885 = vld [vmem:[%s1 + $0x8] sm:$0xf]
        %v886 = vld [vmem:[%s1 + $0xc] sm:$0xf]
        %v887 = vld [vmem:[%s1 + $0x10] sm:$0xf]
        %v888 = vld [vmem:[%s1 + $0x14] sm:$0xf]
        %v889 = vld [vmem:[%s1 + $0x18] sm:$0xf]
        %v890 = vld [vmem:[%s1 + $0x1c] sm:$0xf]
        %v891 = vld [vmem:[%s1 + $0x20] sm:$0xf]
        %v892 = vld [vmem:[%s1 + $0x24] sm:$0xf]
        %v893 = vld [vmem:[%s1 + $0x28] sm:$0xf]
        %v894 = vld [vmem:[%s1 + $0x2c] sm:$0xf]
        %v895 = vld [vmem:[%s1 + $0x30] sm:$0xf]
        %v896 = vld [vmem:[%s1 + $0x34] sm:$0xf]
        %v897 = vld [vmem:[%s1 + $0x38] sm:$0xf]
        %v898 = vld [vmem:[%s1 + $0x3c] sm:$0xf]
        %v899 = vld [vmem:[%s1 + $0x40] sm:$0xf]
        %v900 = vld [vmem:[%s1 + $0x44] sm:$0xf]
        %v901 = vld [vmem:[%s1 + $0x48] sm:$0xf]
        %v902 = vld [vmem:[%s1 + $0x4c] sm:$0xf]
        %v903 = vld [vmem:[%s1 + $0x50] sm:$0xf]
        %v904 = vld [vmem:[%s1 + $0x54] sm:$0xf]
        %v905 = vld [vmem:[%s1 + $0x58] sm:$0xf]
        %v906 = vld [vmem:[%s1 + $0x5c] sm:$0xf]
        %v907 = vld [vmem:[%s1 + $0x60] sm:$0xf]
        %v908 = vld [vmem:[%s1 + $0x64] sm:$0xf]
        %v909 = vld [vmem:[%s1 + $0x68] sm:$0xf]
        %v910 = vld [vmem:[%s1 + $0x6c] sm:$0xf]
        %v911 = vld [vmem:[%s1 + $0x70] sm:$0xf]
        %v912 = vld [vmem:[%s1 + $0x74] sm:$0xf]
        %v913 = vld [vmem:[%s1 + $0x78] sm:$0xf]
        %v914 = vld [vmem:[%s1 + $0x7c] sm:$0xf]
        %v917 = vunpack.c.l.b16 %v881
        %v918 = vunpack.c.h.b16 %v881
        %v919 = vunpack.c.l.b16 %v882
        %v920 = vunpack.c.h.b16 %v882
        %v921 = vpack.c.b16 %v919, %v917
        %v922 = vpack.c.b16 %v920, %v918
        %v957 = vunpack.c.l.b16 %v883
        %v958 = vunpack.c.l.b16 %v884
        %v959 = vunpack.c.l.b16 %v885
        %v960 = vunpack.c.l.b16 %v886
        %v961 = vunpack.c.l.b16 %v887
        %v962 = vunpack.c.l.b16 %v888
        %v963 = vunpack.c.l.b16 %v889
        %v964 = vunpack.c.l.b16 %v890
        %v965 = vunpack.c.l.b16 %v891
        %v966 = vunpack.c.l.b16 %v892
        %v967 = vunpack.c.l.b16 %v893
        %v968 = vunpack.c.l.b16 %v894
        %v969 = vunpack.c.l.b16 %v895
        %v970 = vunpack.c.l.b16 %v896
        %v971 = vunpack.c.l.b16 %v897
        %v972 = vunpack.c.l.b16 %v898
        %v973 = vunpack.c.l.b16 %v899
        %v974 = vunpack.c.l.b16 %v900
        %v975 = vunpack.c.l.b16 %v901
        %v976 = vunpack.c.l.b16 %v902
        %v977 = vunpack.c.l.b16 %v903
        %v978 = vunpack.c.l.b16 %v904
        %v979 = vunpack.c.l.b16 %v905
        %v980 = vunpack.c.l.b16 %v906
        %v981 = vunpack.c.l.b16 %v907
        %v982 = vunpack.c.l.b16 %v908
        %v983 = vunpack.c.l.b16 %v909
        %v984 = vunpack.c.l.b16 %v910
        %v985 = vunpack.c.l.b16 %v911
        %v986 = vunpack.c.l.b16 %v912
        %v987 = vunpack.c.l.b16 %v913
        %v988 = vunpack.c.l.b16 %v914
        %v989 = vpack.c.b16 %v958, %v957
        %v990 = vpack.c.b16 %v960, %v959
        %v991 = vpack.c.b16 %v962, %v961
        %v992 = vpack.c.b16 %v964, %v963
        %v993 = vpack.c.b16 %v966, %v965
        %v994 = vpack.c.b16 %v968, %v967
        %v995 = vpack.c.b16 %v970, %v969
        %v996 = vpack.c.b16 %v972, %v971
        %v997 = vpack.c.b16 %v974, %v973
        %v998 = vpack.c.b16 %v976, %v975
        %v999 = vpack.c.b16 %v978, %v977
        %v1000 = vpack.c.b16 %v980, %v979
        %v1001 = vpack.c.b16 %v982, %v981
        %v1002 = vpack.c.b16 %v984, %v983
        %v1003 = vpack.c.b16 %v986, %v985
        %v1004 = vpack.c.b16 %v988, %v987
        %1021 = vmatprep.subr.bf16.mxu0 0
        %1022 = vmatpush1.bf16.msra.mxu0 %v989
        %1023 = vmatprep.subr.bf16.mxu0 0
        %1024 = vmatpush1.bf16.msra.mxu0 %v990
        %1025 = vmatprep.subr.bf16.mxu0 0
        %1026 = vmatpush1.bf16.msra.mxu0 %v991
        %1027 = vmatprep.subr.bf16.mxu0 0
        %1028 = vmatpush1.bf16.msra.mxu0 %v992
        %1029 = vmatprep.subr.bf16.mxu0 0
        %1030 = vmatpush1.bf16.msra.mxu0 %v993
        %1031 = vmatprep.subr.bf16.mxu0 0
        %1032 = vmatpush1.bf16.msra.mxu0 %v994
        %1033 = vmatprep.subr.bf16.mxu0 0
        %1034 = vmatpush1.bf16.msra.mxu0 %v995
        %1035 = vmatprep.subr.bf16.mxu0 0
        %1036 = vmatpush1.bf16.msra.mxu0 %v996
        %1037 = vmatprep.subr.bf16.mxu0 0
        %1038 = vmatpush1.bf16.msra.mxu0 %v997
        %1039 = vmatprep.subr.bf16.mxu0 0
        %1040 = vmatpush1.bf16.msra.mxu0 %v998
        %1041 = vmatprep.subr.bf16.mxu0 0
        %1042 = vmatpush1.bf16.msra.mxu0 %v999
        %1043 = vmatprep.subr.bf16.mxu0 0
        %1044 = vmatpush1.bf16.msra.mxu0 %v1000
        %1045 = vmatprep.subr.bf16.mxu0 0
        %1046 = vmatpush1.bf16.msra.mxu0 %v1001
        %1047 = vmatprep.subr.bf16.mxu0 0
        %1048 = vmatpush1.bf16.msra.mxu0 %v1002
        %1049 = vmatprep.subr.bf16.mxu0 0
        %1050 = vmatpush1.bf16.msra.mxu0 %v1003
        %1051 = vmatprep.subr.bf16.mxu0 0
        %1052 = vmatpush1.bf16.msra.mxu0 %v1004
        %1053 = vmatprep.mubr.bf16.mxu0 %v922
        %1054 = vmatmul.mubr.bf16.gmra.mrb[0].mxu0 %v921
        %v1055 = vpop.f32.mrb[0].mxu0
        %v1056 = vadd.f32 0.0, %v1055
        %v1057 = vpop.f32.mrb[0].mxu0
        %v1058 = vpop.f32.mrb[0].mxu0
        %v1059 = vadd.f32 0.0, %v1058
        %v1060 = vpop.f32.mrb[0].mxu0
        %1061 = vdwg.mxu0
        %vm1062 = vcmp.ge.f32.partialorder %v1056, 0.0
        %vm1063 = vcmp.ge.f32.partialorder %v1059, 0.0
        %v1064 = vmul.f32 %v1056, 0.2
        %v1065 = vmul.f32 %v1059, 0.2
        %v1066 = vsel %vm1062, %v1056, %v1064
        %v1067 = vsel %vm1063, %v1059, %v1065
        %v1068 = vpack.c.bf16 %v1067, %v1066
        %v1070 = vrot.slane %v1068, 4
        %s1072 = scalar_lea.vmem [#allocation2], 144
        %1073 = vst [vmem:[%s1072] sm:$0xf0] %v1070
        %1074 = vst [vmem:[%s1072 + $0x8] sm:$0xf] %v1070
      $region48: #{dresnext_bottleneck_forward.1} parent=35 // pred_fallthru
        _
      %p1075 = scmp.eq.s32.totalorder %s20, 1
      // Predicated region
      $region49: #{dresnext_bottleneck_forward.1} parent=35 // pred_check
        %p1076 = pneg %p1075
      $region50: #{dresnext_bottleneck_forward.1} parent=35 // pred_check_branch
        %1078 = sbr.rel (%p1076) target = $region52
      $region51: #{dresnext_bottleneck_forward.1} parent=35 // pred_region
        %s1079 = scalar_lea.vmem [#allocation2], 144
        %1080 = vst [vmem:[%s1079] sm:$0xf0] 0
        %1081 = vst [vmem:[%s1079 + $0x8] sm:$0xf] 0
      $region52: #{dresnext_bottleneck_forward.1} parent=35 // pred_fallthru
        _
      %v1082 = vld [vmem:[#allocation2] sm:$0xf8]
      %v1083 = vld [vmem:[#allocation2 + $0x8] sm:$0xf]
      %v1084 = vld [vmem:[#allocation2 + $0x10] sm:$0xf8]
      %v1085 = vld [vmem:[#allocation2 + $0x18] sm:$0xf]
      %v1086 = vld [vmem:[#allocation2 + $0x20] sm:$0xf8]
      %v1087 = vld [vmem:[#allocation2 + $0x28] sm:$0xf]
      %v1088 = vld [vmem:[#allocation2 + $0x30] sm:$0xf8]
      %v1089 = vld [vmem:[#allocation2 + $0x38] sm:$0xf]
      %v1090 = vld [vmem:[#allocation2 + $0x40] sm:$0xf8]
      %v1091 = vld [vmem:[#allocation2 + $0x48] sm:$0xf]
      %v1092 = vld [vmem:[#allocation2 + $0x50] sm:$0xf8]
      %v1093 = vld [vmem:[#allocation2 + $0x58] sm:$0xf]
      %v1094 = vld [vmem:[#allocation2 + $0x60] sm:$0xf8]
      %v1095 = vld [vmem:[#allocation2 + $0x68] sm:$0xf]
      %v1096 = vld [vmem:[#allocation2 + $0x70] sm:$0xf8]
      %v1097 = vld [vmem:[#allocation2 + $0x78] sm:$0xf]
      %vm1098 = vsmask.f32 4352
      %v1100 = vshrl.u32 %v1082, 16
      %v1102 = vrot.slane %v1100, 3
      %v1103 = vshll.u32 %v1082, 16
      %v1105 = vrot.slane %v1103, 4
      %v1106 = vor.u32 %v1102, %v1105
      %v1108 = vshrl.u32 %v1083, 16
      %v1110 = vrot.slane %v1108, 3
      %v1111 = vshll.u32 %v1083, 16
      %v1113 = vrot.slane %v1111, 4
      %v1114 = vor.u32 %v1110, %v1113
      %v1115 = vsel %vm1098, %v1106, %v1114
      %v1117 = vshrl.u32 %v1084, 16
      %v1119 = vrot.slane %v1117, 3
      %v1120 = vshll.u32 %v1084, 16
      %v1122 = vrot.slane %v1120, 4
      %v1123 = vor.u32 %v1119, %v1122
      %v1125 = vshrl.u32 %v1085, 16
      %v1127 = vrot.slane %v1125, 3
      %v1128 = vshll.u32 %v1085, 16
      %v1130 = vrot.slane %v1128, 4
      %v1131 = vor.u32 %v1127, %v1130
      %v1132 = vsel %vm1098, %v1123, %v1131
      %v1134 = vshrl.u32 %v1086, 16
      %v1136 = vrot.slane %v1134, 3
      %v1137 = vshll.u32 %v1086, 16
      %v1139 = vrot.slane %v1137, 4
      %v1140 = vor.u32 %v1136, %v1139
      %v1142 = vshrl.u32 %v1087, 16
      %v1144 = vrot.slane %v1142, 3
      %v1145 = vshll.u32 %v1087, 16
      %v1147 = vrot.slane %v1145, 4
      %v1148 = vor.u32 %v1144, %v1147
      %v1149 = vsel %vm1098, %v1140, %v1148
      %v1151 = vshrl.u32 %v1088, 16
      %v1153 = vrot.slane %v1151, 3
      %v1154 = vshll.u32 %v1088, 16
      %v1156 = vrot.slane %v1154, 4
      %v1157 = vor.u32 %v1153, %v1156
      %v1159 = vshrl.u32 %v1089, 16
      %v1161 = vrot.slane %v1159, 3
      %v1162 = vshll.u32 %v1089, 16
      %v1164 = vrot.slane %v1162, 4
      %v1165 = vor.u32 %v1161, %v1164
      %v1166 = vsel %vm1098, %v1157, %v1165
      %v1168 = vshrl.u32 %v1090, 16
      %v1170 = vrot.slane %v1168, 3
      %v1171 = vshll.u32 %v1090, 16
      %v1173 = vrot.slane %v1171, 4
      %v1174 = vor.u32 %v1170, %v1173
      %v1176 = vshrl.u32 %v1091, 16
      %v1178 = vrot.slane %v1176, 3
      %v1179 = vshll.u32 %v1091, 16
      %v1181 = vrot.slane %v1179, 4
      %v1182 = vor.u32 %v1178, %v1181
      %v1183 = vsel %vm1098, %v1174, %v1182
      %v1185 = vshrl.u32 %v1092, 16
      %v1187 = vrot.slane %v1185, 3
      %v1188 = vshll.u32 %v1092, 16
      %v1190 = vrot.slane %v1188, 4
      %v1191 = vor.u32 %v1187, %v1190
      %v1193 = vshrl.u32 %v1093, 16
      %v1195 = vrot.slane %v1193, 3
      %v1196 = vshll.u32 %v1093, 16
      %v1198 = vrot.slane %v1196, 4
      %v1199 = vor.u32 %v1195, %v1198
      %v1200 = vsel %vm1098, %v1191, %v1199
      %v1202 = vshrl.u32 %v1094, 16
      %v1204 = vrot.slane %v1202, 3
      %v1205 = vshll.u32 %v1094, 16
      %v1207 = vrot.slane %v1205, 4
      %v1208 = vor.u32 %v1204, %v1207
      %v1210 = vshrl.u32 %v1095, 16
      %v1212 = vrot.slane %v1210, 3
      %v1213 = vshll.u32 %v1095, 16
      %v1215 = vrot.slane %v1213, 4
      %v1216 = vor.u32 %v1212, %v1215
      %v1217 = vsel %vm1098, %v1208, %v1216
      %v1219 = vshrl.u32 %v1096, 16
      %v1221 = vrot.slane %v1219, 3
      %v1222 = vshll.u32 %v1096, 16
      %v1224 = vrot.slane %v1222, 4
      %v1225 = vor.u32 %v1221, %v1224
      %v1227 = vshrl.u32 %v1097, 16
      %v1229 = vrot.slane %v1227, 3
      %v1230 = vshll.u32 %v1097, 16
      %v1232 = vrot.slane %v1230, 4
      %v1233 = vor.u32 %v1229, %v1232
      %v1234 = vsel %vm1098, %v1225, %v1233
      %v1243 = vld [vmem:[%s2] sm:$0xf]
      %v1244 = vld [vmem:[%s2 + $0x4] sm:$0xf]
      %v1245 = vld [vmem:[%s2 + $0x8] sm:$0xf]
      %v1246 = vld [vmem:[%s2 + $0xc] sm:$0xf]
      %v1247 = vld [vmem:[%s2 + $0x10] sm:$0xf]
      %v1248 = vld [vmem:[%s2 + $0x14] sm:$0xf]
      %v1249 = vld [vmem:[%s2 + $0x18] sm:$0xf]
      %v1250 = vld [vmem:[%s2 + $0x1c] sm:$0xf]
      %v1251 = vld [vmem:[%s2 + $0x20] sm:$0xf]
      %v1252 = vld [vmem:[%s2 + $0x24] sm:$0xf]
      %v1253 = vld [vmem:[%s2 + $0x28] sm:$0xf]
      %v1254 = vld [vmem:[%s2 + $0x2c] sm:$0xf]
      %v1255 = vld [vmem:[%s2 + $0x30] sm:$0xf]
      %v1256 = vld [vmem:[%s2 + $0x34] sm:$0xf]
      %v1257 = vld [vmem:[%s2 + $0x38] sm:$0xf]
      %v1258 = vld [vmem:[%s2 + $0x3c] sm:$0xf]
      %v1259 = vld [vmem:[#allocation2] sm:$0xf0]
      %v1260 = vld [vmem:[#allocation2 + $0x10] sm:$0xf0]
      %v1261 = vld [vmem:[#allocation2 + $0x20] sm:$0xf0]
      %v1262 = vld [vmem:[#allocation2 + $0x30] sm:$0xf0]
      %v1263 = vld [vmem:[#allocation2 + $0x40] sm:$0xf0]
      %v1264 = vld [vmem:[#allocation2 + $0x50] sm:$0xf0]
      %v1265 = vld [vmem:[#allocation2 + $0x60] sm:$0xf0]
      %v1266 = vld [vmem:[#allocation2 + $0x70] sm:$0xf0]
      %vm1283 = vcmask 1043456
      %v1284 = vrot.slane %v1259, 4
      %v1285 = vrot.slane %v1083, 4
      %v1286 = vsel %vm1283, %v1284, %v1285
      %v1287 = vrot.slane %v1260, 4
      %v1288 = vrot.slane %v1085, 4
      %v1289 = vsel %vm1283, %v1287, %v1288
      %v1290 = vrot.slane %v1261, 4
      %v1291 = vrot.slane %v1087, 4
      %v1292 = vsel %vm1283, %v1290, %v1291
      %v1293 = vrot.slane %v1262, 4
      %v1294 = vrot.slane %v1089, 4
      %v1295 = vsel %vm1283, %v1293, %v1294
      %v1296 = vrot.slane %v1263, 4
      %v1297 = vrot.slane %v1091, 4
      %v1298 = vsel %vm1283, %v1296, %v1297
      %v1299 = vrot.slane %v1264, 4
      %v1300 = vrot.slane %v1093, 4
      %v1301 = vsel %vm1283, %v1299, %v1300
      %v1302 = vrot.slane %v1265, 4
      %v1303 = vrot.slane %v1095, 4
      %v1304 = vsel %vm1283, %v1302, %v1303
      %v1305 = vrot.slane %v1266, 4
      %v1306 = vrot.slane %v1097, 4
      %v1307 = vsel %vm1283, %v1305, %v1306
      %v1316 = vld [vmem:[%s2 + $0x40] sm:$0xf]
      %v1317 = vld [vmem:[%s2 + $0x44] sm:$0xf]
      %v1318 = vld [vmem:[%s2 + $0x48] sm:$0xf]
      %v1319 = vld [vmem:[%s2 + $0x4c] sm:$0xf]
      %v1320 = vld [vmem:[%s2 + $0x50] sm:$0xf]
      %v1321 = vld [vmem:[%s2 + $0x54] sm:$0xf]
      %v1322 = vld [vmem:[%s2 + $0x58] sm:$0xf]
      %v1323 = vld [vmem:[%s2 + $0x5c] sm:$0xf]
      %v1324 = vld [vmem:[%s2 + $0x60] sm:$0xf]
      %v1325 = vld [vmem:[%s2 + $0x64] sm:$0xf]
      %v1326 = vld [vmem:[%s2 + $0x68] sm:$0xf]
      %v1327 = vld [vmem:[%s2 + $0x6c] sm:$0xf]
      %v1328 = vld [vmem:[%s2 + $0x70] sm:$0xf]
      %v1329 = vld [vmem:[%s2 + $0x74] sm:$0xf]
      %v1330 = vld [vmem:[%s2 + $0x78] sm:$0xf]
      %v1331 = vld [vmem:[%s2 + $0x7c] sm:$0xf]
      %v1348 = vunpack.c.l.b16 %v1316
      %v1349 = vunpack.c.l.b16 %v1317
      %v1350 = vunpack.c.l.b16 %v1318
      %v1351 = vunpack.c.l.b16 %v1319
      %v1352 = vunpack.c.l.b16 %v1320
      %v1353 = vunpack.c.l.b16 %v1321
      %v1354 = vunpack.c.l.b16 %v1322
      %v1355 = vunpack.c.l.b16 %v1323
      %v1356 = vunpack.c.l.b16 %v1324
      %v1357 = vunpack.c.l.b16 %v1325
      %v1358 = vunpack.c.l.b16 %v1326
      %v1359 = vunpack.c.l.b16 %v1327
      %v1360 = vunpack.c.l.b16 %v1328
      %v1361 = vunpack.c.l.b16 %v1329
      %v1362 = vunpack.c.l.b16 %v1330
      %v1363 = vunpack.c.l.b16 %v1331
      %v1364 = vpack.c.b16 %v1349, %v1348
      %v1365 = vpack.c.b16 %v1351, %v1350
      %v1366 = vpack.c.b16 %v1353, %v1352
      %v1367 = vpack.c.b16 %v1355, %v1354
      %v1368 = vpack.c.b16 %v1357, %v1356
      %v1369 = vpack.c.b16 %v1359, %v1358
      %v1370 = vpack.c.b16 %v1361, %v1360
      %v1371 = vpack.c.b16 %v1363, %v1362
      %1380 = vmatprep.subr.bf16.mxu0 0
      %1381 = vmatpush1.bf16.msra.mxu0 %v1364
      %1382 = vmatprep.subr.bf16.mxu0 0
      %1383 = vmatpush1.bf16.msra.mxu0 %v1365
      %1384 = vmatprep.subr.bf16.mxu0 0
      %1385 = vmatpush1.bf16.msra.mxu0 %v1366
      %1386 = vmatprep.subr.bf16.mxu0 0
      %1387 = vmatpush1.bf16.msra.mxu0 %v1367
      %1388 = vmatprep.subr.bf16.mxu0 0
      %1389 = vmatpush1.bf16.msra.mxu0 %v1368
      %1390 = vmatprep.subr.bf16.mxu0 0
      %1391 = vmatpush1.bf16.msra.mxu0 %v1369
      %1392 = vmatprep.subr.bf16.mxu0 0
      %1393 = vmatpush1.bf16.msra.mxu0 %v1370
      %1394 = vmatprep.subr.bf16.mxu0 0
      %1395 = vmatpush1.bf16.msra.mxu0 %v1371
      %1396 = vmatprep.subr.bf16.mxu0 0
      %1397 = vmatpush1.bf16.msra.mxu0 0
      %1398 = vmatprep.subr.bf16.mxu0 0
      %1399 = vmatpush1.bf16.msra.mxu0 0
      %1400 = vmatprep.subr.bf16.mxu0 0
      %1401 = vmatpush1.bf16.msra.mxu0 0
      %1402 = vmatprep.subr.bf16.mxu0 0
      %1403 = vmatpush1.bf16.msra.mxu0 0
      %1404 = vmatprep.subr.bf16.mxu0 0
      %1405 = vmatpush1.bf16.msra.mxu0 0
      %1406 = vmatprep.subr.bf16.mxu0 0
      %1407 = vmatpush1.bf16.msra.mxu0 0
      %1408 = vmatprep.subr.bf16.mxu0 0
      %1409 = vmatpush1.bf16.msra.mxu0 0
      %1410 = vmatprep.subr.bf16.mxu0 0
      %1411 = vmatpush1.bf16.msra.mxu0 0
      %1412 = vmatprep.mubr.bf16.mxu0 0
      %1413 = vmatmul.mubr.bf16.gmra.mrb[0].mxu0 %v1286
      %v1414 = vpop.f32.mrb[0].mxu0
      %v1415 = vadd.f32 0.0, %v1414
      %v1416 = vpop.f32.mrb[0].mxu0
      %v1417 = vpop.f32.mrb[0].mxu0
      %v1418 = vadd.f32 0.0, %v1417
      %v1419 = vpop.f32.mrb[0].mxu0
      %1420 = vmatprep.mubr.bf16.mxu0 0
      %1421 = vmatmul.mubr.bf16.gmra.mrb[0].mxu0 %v1289
      %v1422 = vpop.f32.mrb[0].mxu0
      %v1423 = vadd.f32 0.0, %v1422
      %v1424 = vpop.f32.mrb[0].mxu0
      %v1425 = vpop.f32.mrb[0].mxu0
      %v1426 = vadd.f32 0.0, %v1425
      %v1427 = vpop.f32.mrb[0].mxu0
      %1428 = vmatprep.mubr.bf16.mxu0 0
      %1429 = vmatmul.mubr.bf16.gmra.mrb[0].mxu0 %v1292
      %v1430 = vpop.f32.mrb[0].mxu0
      %v1431 = vadd.f32 0.0, %v1430
      %v1432 = vpop.f32.mrb[0].mxu0
      %v1433 = vpop.f32.mrb[0].mxu0
      %v1434 = vadd.f32 0.0, %v1433
      %v1435 = vpop.f32.mrb[0].mxu0
      %1436 = vmatprep.mubr.bf16.mxu0 0
      %1437 = vmatmul.mubr.bf16.gmra.mrb[0].mxu0 %v1295
      %v1438 = vpop.f32.mrb[0].mxu0
      %v1439 = vadd.f32 0.0, %v1438
      %v1440 = vpop.f32.mrb[0].mxu0
      %v1441 = vpop.f32.mrb[0].mxu0
      %v1442 = vadd.f32 0.0, %v1441
      %v1443 = vpop.f32.mrb[0].mxu0
      %1444 = vmatprep.mubr.bf16.mxu0 0
      %1445 = vmatmul.mubr.bf16.gmra.mrb[0].mxu0 %v1298
      %v1446 = vpop.f32.mrb[0].mxu0
      %v1447 = vadd.f32 0.0, %v1446
      %v1448 = vpop.f32.mrb[0].mxu0
      %v1449 = vpop.f32.mrb[0].mxu0
      %v1450 = vadd.f32 0.0, %v1449
      %v1451 = vpop.f32.mrb[0].mxu0
      %1452 = vmatprep.mubr.bf16.mxu0 0
      %1453 = vmatmul.mubr.bf16.gmra.mrb[0].mxu0 %v1301
      %v1454 = vpop.f32.mrb[0].mxu0
      %v1455 = vadd.f32 0.0, %v1454
      %v1456 = vpop.f32.mrb[0].mxu0
      %v1457 = vpop.f32.mrb[0].mxu0
      %v1458 = vadd.f32 0.0, %v1457
      %v1459 = vpop.f32.mrb[0].mxu0
      %1460 = vmatprep.mubr.bf16.mxu0 0
      %1461 = vmatmul.mubr.bf16.gmra.mrb[0].mxu0 %v1304
      %v1462 = vpop.f32.mrb[0].mxu0
      %v1463 = vadd.f32 0.0, %v1462
      %v1464 = vpop.f32.mrb[0].mxu0
      %v1465 = vpop.f32.mrb[0].mxu0
      %v1466 = vadd.f32 0.0, %v1465
      %v1467 = vpop.f32.mrb[0].mxu0
      %1468 = vmatprep.mubr.bf16.mxu0 0
      %1469 = vmatmul.mubr.bf16.gmra.mrb[0].mxu0 %v1307
      %v1470 = vpop.f32.mrb[0].mxu0
      %v1471 = vadd.f32 0.0, %v1470
      %v1472 = vpop.f32.mrb[0].mxu0
      %v1473 = vpop.f32.mrb[0].mxu0
      %v1474 = vadd.f32 0.0, %v1473
      %v1475 = vpop.f32.mrb[0].mxu0
      %1476 = vdwg.mxu0
      %v1493 = vunpack.c.l.b16 %v1243
      %v1494 = vunpack.c.l.b16 %v1244
      %v1495 = vunpack.c.l.b16 %v1245
      %v1496 = vunpack.c.l.b16 %v1246
      %v1497 = vunpack.c.l.b16 %v1247
      %v1498 = vunpack.c.l.b16 %v1248
      %v1499 = vunpack.c.l.b16 %v1249
      %v1500 = vunpack.c.l.b16 %v1250
      %v1501 = vunpack.c.l.b16 %v1251
      %v1502 = vunpack.c.l.b16 %v1252
      %v1503 = vunpack.c.l.b16 %v1253
      %v1504 = vunpack.c.l.b16 %v1254
      %v1505 = vunpack.c.l.b16 %v1255
      %v1506 = vunpack.c.l.b16 %v1256
      %v1507 = vunpack.c.l.b16 %v1257
      %v1508 = vunpack.c.l.b16 %v1258
      %v1509 = vpack.c.b16 %v1494, %v1493
      %v1510 = vpack.c.b16 %v1496, %v1495
      %v1511 = vpack.c.b16 %v1498, %v1497
      %v1512 = vpack.c.b16 %v1500, %v1499
      %v1513 = vpack.c.b16 %v1502, %v1501
      %v1514 = vpack.c.b16 %v1504, %v1503
      %v1515 = vpack.c.b16 %v1506, %v1505
      %v1516 = vpack.c.b16 %v1508, %v1507
      %1525 = vmatprep.subr.bf16.mxu0 0
      %1526 = vmatpush1.bf16.msra.mxu0 %v1509
      %1527 = vmatprep.subr.bf16.mxu0 0
      %1528 = vmatpush1.bf16.msra.mxu0 %v1510
      %1529 = vmatprep.subr.bf16.mxu0 0
      %1530 = vmatpush1.bf16.msra.mxu0 %v1511
      %1531 = vmatprep.subr.bf16.mxu0 0
      %1532 = vmatpush1.bf16.msra.mxu0 %v1512
      %1533 = vmatprep.subr.bf16.mxu0 0
      %1534 = vmatpush1.bf16.msra.mxu0 %v1513
      %1535 = vmatprep.subr.bf16.mxu0 0
      %1536 = vmatpush1.bf16.msra.mxu0 %v1514
      %1537 = vmatprep.subr.bf16.mxu0 0
      %1538 = vmatpush1.bf16.msra.mxu0 %v1515
      %1539 = vmatprep.subr.bf16.mxu0 0
      %1540 = vmatpush1.bf16.msra.mxu0 %v1516
      %1541 = vmatprep.subr.bf16.mxu0 0
      %1542 = vmatpush1.bf16.msra.mxu0 0
      %1543 = vmatprep.subr.bf16.mxu0 0
      %1544 = vmatpush1.bf16.msra.mxu0 0
      %1545 = vmatprep.subr.bf16.mxu0 0
      %1546 = vmatpush1.bf16.msra.mxu0 0
      %1547 = vmatprep.subr.bf16.mxu0 0
      %1548 = vmatpush1.bf16.msra.mxu0 0
      %1549 = vmatprep.subr.bf16.mxu0 0
      %1550 = vmatpush1.bf16.msra.mxu0 0
      %1551 = vmatprep.subr.bf16.mxu0 0
      %1552 = vmatpush1.bf16.msra.mxu0 0
      %1553 = vmatprep.subr.bf16.mxu0 0
      %1554 = vmatpush1.bf16.msra.mxu0 0
      %1555 = vmatprep.subr.bf16.mxu0 0
      %1556 = vmatpush1.bf16.msra.mxu0 0
      %1557 = vmatprep.mubr.bf16.mxu0 0
      %1558 = vmatmul.mubr.bf16.gmra.mrb[0].mxu0 %v1115
      %v1559 = vpop.f32.mrb[0].mxu0
      %v1560 = vadd.f32 %v1415, %v1559
      %v1561 = vpop.f32.mrb[0].mxu0
      %v1562 = vpop.f32.mrb[0].mxu0
      %v1563 = vadd.f32 %v1418, %v1562
      %v1564 = vpop.f32.mrb[0].mxu0
      %1565 = vmatprep.mubr.bf16.mxu0 0
      %1566 = vmatmul.mubr.bf16.gmra.mrb[0].mxu0 %v1132
      %v1567 = vpop.f32.mrb[0].mxu0
      %v1568 = vadd.f32 %v1423, %v1567
      %v1569 = vpop.f32.mrb[0].mxu0
      %v1570 = vpop.f32.mrb[0].mxu0
      %v1571 = vadd.f32 %v1426, %v1570
      %v1572 = vpop.f32.mrb[0].mxu0
      %1573 = vmatprep.mubr.bf16.mxu0 0
      %1574 = vmatmul.mubr.bf16.gmra.mrb[0].mxu0 %v1149
      %v1575 = vpop.f32.mrb[0].mxu0
      %v1576 = vadd.f32 %v1431, %v1575
      %v1577 = vpop.f32.mrb[0].mxu0
      %v1578 = vpop.f32.mrb[0].mxu0
      %v1579 = vadd.f32 %v1434, %v1578
      %v1580 = vpop.f32.mrb[0].mxu0
      %1581 = vmatprep.mubr.bf16.mxu0 0
      %1582 = vmatmul.mubr.bf16.gmra.mrb[0].mxu0 %v1166
      %v1583 = vpop.f32.mrb[0].mxu0
      %v1584 = vadd.f32 %v1439, %v1583
      %v1585 = vpop.f32.mrb[0].mxu0
      %v1586 = vpop.f32.mrb[0].mxu0
      %v1587 = vadd.f32 %v1442, %v1586
      %v1588 = vpop.f32.mrb[0].mxu0
      %1589 = vmatprep.mubr.bf16.mxu0 0
      %1590 = vmatmul.mubr.bf16.gmra.mrb[0].mxu0 %v1183
      %v1591 = vpop.f32.mrb[0].mxu0
      %v1592 = vadd.f32 %v1447, %v1591
      %v1593 = vpop.f32.mrb[0].mxu0
      %v1594 = vpop.f32.mrb[0].mxu0
      %v1595 = vadd.f32 %v1450, %v1594
      %v1596 = vpop.f32.mrb[0].mxu0
      %1597 = vmatprep.mubr.bf16.mxu0 0
      %1598 = vmatmul.mubr.bf16.gmra.mrb[0].mxu0 %v1200
      %v1599 = vpop.f32.mrb[0].mxu0
      %v1600 = vadd.f32 %v1455, %v1599
      %v1601 = vpop.f32.mrb[0].mxu0
      %v1602 = vpop.f32.mrb[0].mxu0
      %v1603 = vadd.f32 %v1458, %v1602
      %v1604 = vpop.f32.mrb[0].mxu0
      %1605 = vmatprep.mubr.bf16.mxu0 0
      %1606 = vmatmul.mubr.bf16.gmra.mrb[0].mxu0 %v1217
      %v1607 = vpop.f32.mrb[0].mxu0
      %v1608 = vadd.f32 %v1463, %v1607
      %v1609 = vpop.f32.mrb[0].mxu0
      %v1610 = vpop.f32.mrb[0].mxu0
      %v1611 = vadd.f32 %v1466, %v1610
      %v1612 = vpop.f32.mrb[0].mxu0
      %1613 = vmatprep.mubr.bf16.mxu0 0
      %1614 = vmatmul.mubr.bf16.gmra.mrb[0].mxu0 %v1234
      %v1615 = vpop.f32.mrb[0].mxu0
      %v1616 = vadd.f32 %v1471, %v1615
      %v1617 = vpop.f32.mrb[0].mxu0
      %v1618 = vpop.f32.mrb[0].mxu0
      %v1619 = vadd.f32 %v1474, %v1618
      %v1620 = vpop.f32.mrb[0].mxu0
      %1621 = vdwg.mxu0
      %v1622 = vld [vmem:[#allocation2 + $0x8] sm:$0x1f]
      %v1623 = vld [vmem:[#allocation2 + $0x18] sm:$0x1f]
      %v1624 = vld [vmem:[#allocation2 + $0x28] sm:$0x1f]
      %v1625 = vld [vmem:[#allocation2 + $0x38] sm:$0x1f]
      %v1626 = vld [vmem:[#allocation2 + $0x48] sm:$0x1f]
      %v1627 = vld [vmem:[#allocation2 + $0x58] sm:$0x1f]
      %v1628 = vld [vmem:[#allocation2 + $0x68] sm:$0x1f]
      %v1629 = vld [vmem:[#allocation2 + $0x78] sm:$0x1f]
      %vm1630 = vsmask.f32 3328
      %v1632 = vshrl.u32 %v1259, 16
      %v1634 = vrot.slane %v1632, 4
      %v1635 = vshll.u32 %v1259, 16
      %v1637 = vrot.slane %v1635, 5
      %v1638 = vor.u32 %v1634, %v1637
      %v1640 = vshrl.u32 %v1622, 16
      %v1642 = vrot.slane %v1640, 4
      %v1643 = vshll.u32 %v1622, 16
      %v1645 = vrot.slane %v1643, 5
      %v1646 = vor.u32 %v1642, %v1645
      %v1647 = vsel %vm1630, %v1638, %v1646
      %v1649 = vshrl.u32 %v1260, 16
      %v1651 = vrot.slane %v1649, 4
      %v1652 = vshll.u32 %v1260, 16
      %v1654 = vrot.slane %v1652, 5
      %v1655 = vor.u32 %v1651, %v1654
      %v1657 = vshrl.u32 %v1623, 16
      %v1659 = vrot.slane %v1657, 4
      %v1660 = vshll.u32 %v1623, 16
      %v1662 = vrot.slane %v1660, 5
      %v1663 = vor.u32 %v1659, %v1662
      %v1664 = vsel %vm1630, %v1655, %v1663
      %v1666 = vshrl.u32 %v1261, 16
      %v1668 = vrot.slane %v1666, 4
      %v1669 = vshll.u32 %v1261, 16
      %v1671 = vrot.slane %v1669, 5
      %v1672 = vor.u32 %v1668, %v1671
      %v1674 = vshrl.u32 %v1624, 16
      %v1676 = vrot.slane %v1674, 4
      %v1677 = vshll.u32 %v1624, 16
      %v1679 = vrot.slane %v1677, 5
      %v1680 = vor.u32 %v1676, %v1679
      %v1681 = vsel %vm1630, %v1672, %v1680
      %v1683 = vshrl.u32 %v1262, 16
      %v1685 = vrot.slane %v1683, 4
      %v1686 = vshll.u32 %v1262, 16
      %v1688 = vrot.slane %v1686, 5
      %v1689 = vor.u32 %v1685, %v1688
      %v1691 = vshrl.u32 %v1625, 16
      %v1693 = vrot.slane %v1691, 4
      %v1694 = vshll.u32 %v1625, 16
      %v1696 = vrot.slane %v1694, 5
      %v1697 = vor.u32 %v1693, %v1696
      %v1698 = vsel %vm1630, %v1689, %v1697
      %v1700 = vshrl.u32 %v1263, 16
      %v1702 = vrot.slane %v1700, 4
      %v1703 = vshll.u32 %v1263, 16
      %v1705 = vrot.slane %v1703, 5
      %v1706 = vor.u32 %v1702, %v1705
      %v1708 = vshrl.u32 %v1626, 16
      %v1710 = vrot.slane %v1708, 4
      %v1711 = vshll.u32 %v1626, 16
      %v1713 = vrot.slane %v1711, 5
      %v1714 = vor.u32 %v1710, %v1713
      %v1715 = vsel %vm1630, %v1706, %v1714
      %v1717 = vshrl.u32 %v1264, 16
      %v1719 = vrot.slane %v1717, 4
      %v1720 = vshll.u32 %v1264, 16
      %v1722 = vrot.slane %v1720, 5
      %v1723 = vor.u32 %v1719, %v1722
      %v1725 = vshrl.u32 %v1627, 16
      %v1727 = vrot.slane %v1725, 4
      %v1728 = vshll.u32 %v1627, 16
      %v1730 = vrot.slane %v1728, 5
      %v1731 = vor.u32 %v1727, %v1730
      %v1732 = vsel %vm1630, %v1723, %v1731
      %v1734 = vshrl.u32 %v1265, 16
      %v1736 = vrot.slane %v1734, 4
      %v1737 = vshll.u32 %v1265, 16
      %v1739 = vrot.slane %v1737, 5
      %v1740 = vor.u32 %v1736, %v1739
      %v1742 = vshrl.u32 %v1628, 16
      %v1744 = vrot.slane %v1742, 4
      %v1745 = vshll.u32 %v1628, 16
      %v1747 = vrot.slane %v1745, 5
      %v1748 = vor.u32 %v1744, %v1747
      %v1749 = vsel %vm1630, %v1740, %v1748
      %v1751 = vshrl.u32 %v1266, 16
      %v1753 = vrot.slane %v1751, 4
      %v1754 = vshll.u32 %v1266, 16
      %v1756 = vrot.slane %v1754, 5
      %v1757 = vor.u32 %v1753, %v1756
      %v1759 = vshrl.u32 %v1629, 16
      %v1761 = vrot.slane %v1759, 4
      %v1762 = vshll.u32 %v1629, 16
      %v1764 = vrot.slane %v1762, 5
      %v1765 = vor.u32 %v1761, %v1764
      %v1766 = vsel %vm1630, %v1757, %v1765
      %v1775 = vld [vmem:[%s2 + $0x80] sm:$0xf]
      %v1776 = vld [vmem:[%s2 + $0x84] sm:$0xf]
      %v1777 = vld [vmem:[%s2 + $0x88] sm:$0xf]
      %v1778 = vld [vmem:[%s2 + $0x8c] sm:$0xf]
      %v1779 = vld [vmem:[%s2 + $0x90] sm:$0xf]
      %v1780 = vld [vmem:[%s2 + $0x94] sm:$0xf]
      %v1781 = vld [vmem:[%s2 + $0x98] sm:$0xf]
      %v1782 = vld [vmem:[%s2 + $0x9c] sm:$0xf]
      %v1783 = vld [vmem:[%s2 + $0xa0] sm:$0xf]
      %v1784 = vld [vmem:[%s2 + $0xa4] sm:$0xf]
      %v1785 = vld [vmem:[%s2 + $0xa8] sm:$0xf]
      %v1786 = vld [vmem:[%s2 + $0xac] sm:$0xf]
      %v1787 = vld [vmem:[%s2 + $0xb0] sm:$0xf]
      %v1788 = vld [vmem:[%s2 + $0xb4] sm:$0xf]
      %v1789 = vld [vmem:[%s2 + $0xb8] sm:$0xf]
      %v1790 = vld [vmem:[%s2 + $0xbc] sm:$0xf]
      %v1807 = vunpack.c.l.b16 %v1775
      %v1808 = vunpack.c.l.b16 %v1776
      %v1809 = vunpack.c.l.b16 %v1777
      %v1810 = vunpack.c.l.b16 %v1778
      %v1811 = vunpack.c.l.b16 %v1779
      %v1812 = vunpack.c.l.b16 %v1780
      %v1813 = vunpack.c.l.b16 %v1781
      %v1814 = vunpack.c.l.b16 %v1782
      %v1815 = vunpack.c.l.b16 %v1783
      %v1816 = vunpack.c.l.b16 %v1784
      %v1817 = vunpack.c.l.b16 %v1785
      %v1818 = vunpack.c.l.b16 %v1786
      %v1819 = vunpack.c.l.b16 %v1787
      %v1820 = vunpack.c.l.b16 %v1788
      %v1821 = vunpack.c.l.b16 %v1789
      %v1822 = vunpack.c.l.b16 %v1790
      %v1823 = vpack.c.b16 %v1808, %v1807
      %v1824 = vpack.c.b16 %v1810, %v1809
      %v1825 = vpack.c.b16 %v1812, %v1811
      %v1826 = vpack.c.b16 %v1814, %v1813
      %v1827 = vpack.c.b16 %v1816, %v1815
      %v1828 = vpack.c.b16 %v1818, %v1817
      %v1829 = vpack.c.b16 %v1820, %v1819
      %v1830 = vpack.c.b16 %v1822, %v1821
      %1839 = vmatprep.subr.bf16.mxu0 0
      %1840 = vmatpush1.bf16.msra.mxu0 %v1823
      %1841 = vmatprep.subr.bf16.mxu0 0
      %1842 = vmatpush1.bf16.msra.mxu0 %v1824
      %1843 = vmatprep.subr.bf16.mxu0 0
      %1844 = vmatpush1.bf16.msra.mxu0 %v1825
      %1845 = vmatprep.subr.bf16.mxu0 0
      %1846 = vmatpush1.bf16.msra.mxu0 %v1826
      %1847 = vmatprep.subr.bf16.mxu0 0
      %1848 = vmatpush1.bf16.msra.mxu0 %v1827
      %1849 = vmatprep.subr.bf16.mxu0 0
      %1850 = vmatpush1.bf16.msra.mxu0 %v1828
      %1851 = vmatprep.subr.bf16.mxu0 0
      %1852 = vmatpush1.bf16.msra.mxu0 %v1829
      %1853 = vmatprep.subr.bf16.mxu0 0
      %1854 = vmatpush1.bf16.msra.mxu0 %v1830
      %1855 = vmatprep.subr.bf16.mxu0 0
      %1856 = vmatpush1.bf16.msra.mxu0 0
      %1857 = vmatprep.subr.bf16.mxu0 0
      %1858 = vmatpush1.bf16.msra.mxu0 0
      %1859 = vmatprep.subr.bf16.mxu0 0
      %1860 = vmatpush1.bf16.msra.mxu0 0
      %1861 = vmatprep.subr.bf16.mxu0 0
      %1862 = vmatpush1.bf16.msra.mxu0 0
      %1863 = vmatprep.subr.bf16.mxu0 0
      %1864 = vmatpush1.bf16.msra.mxu0 0
      %1865 = vmatprep.subr.bf16.mxu0 0
      %1866 = vmatpush1.bf16.msra.mxu0 0
      %1867 = vmatprep.subr.bf16.mxu0 0
      %1868 = vmatpush1.bf16.msra.mxu0 0
      %1869 = vmatprep.subr.bf16.mxu0 0
      %1870 = vmatpush1.bf16.msra.mxu0 0
      %1871 = vmatprep.mubr.bf16.mxu0 0
      %1872 = vmatmul.mubr.bf16.gmra.mrb[0].mxu0 %v1647
      %v1873 = vpop.f32.mrb[0].mxu0
      %v1874 = vadd.f32 0.0, %v1873
      %v1875 = vpop.f32.mrb[0].mxu0
      %v1876 = vpop.f32.mrb[0].mxu0
      %v1877 = vadd.f32 0.0, %v1876
      %v1878 = vpop.f32.mrb[0].mxu0
      %1879 = vmatprep.mubr.bf16.mxu0 0
      %1880 = vmatmul.mubr.bf16.gmra.mrb[0].mxu0 %v1664
      %v1881 = vpop.f32.mrb[0].mxu0
      %v1882 = vadd.f32 0.0, %v1881
      %v1883 = vpop.f32.mrb[0].mxu0
      %v1884 = vpop.f32.mrb[0].mxu0
      %v1885 = vadd.f32 0.0, %v1884
      %v1886 = vpop.f32.mrb[0].mxu0
      %1887 = vmatprep.mubr.bf16.mxu0 0
      %1888 = vmatmul.mubr.bf16.gmra.mrb[0].mxu0 %v1681
      %v1889 = vpop.f32.mrb[0].mxu0
      %v1890 = vadd.f32 0.0, %v1889
      %v1891 = vpop.f32.mrb[0].mxu0
      %v1892 = vpop.f32.mrb[0].mxu0
      %v1893 = vadd.f32 0.0, %v1892
      %v1894 = vpop.f32.mrb[0].mxu0
      %1895 = vmatprep.mubr.bf16.mxu0 0
      %1896 = vmatmul.mubr.bf16.gmra.mrb[0].mxu0 %v1698
      %v1897 = vpop.f32.mrb[0].mxu0
      %v1898 = vadd.f32 0.0, %v1897
      %v1899 = vpop.f32.mrb[0].mxu0
      %v1900 = vpop.f32.mrb[0].mxu0
      %v1901 = vadd.f32 0.0, %v1900
      %v1902 = vpop.f32.mrb[0].mxu0
      %1903 = vmatprep.mubr.bf16.mxu0 0
      %1904 = vmatmul.mubr.bf16.gmra.mrb[0].mxu0 %v1715
      %v1905 = vpop.f32.mrb[0].mxu0
      %v1906 = vadd.f32 0.0, %v1905
      %v1907 = vpop.f32.mrb[0].mxu0
      %v1908 = vpop.f32.mrb[0].mxu0
      %v1909 = vadd.f32 0.0, %v1908
      %v1910 = vpop.f32.mrb[0].mxu0
      %1911 = vmatprep.mubr.bf16.mxu0 0
      %1912 = vmatmul.mubr.bf16.gmra.mrb[0].mxu0 %v1732
      %v1913 = vpop.f32.mrb[0].mxu0
      %v1914 = vadd.f32 0.0, %v1913
      %v1915 = vpop.f32.mrb[0].mxu0
      %v1916 = vpop.f32.mrb[0].mxu0
      %v1917 = vadd.f32 0.0, %v1916
      %v1918 = vpop.f32.mrb[0].mxu0
      %1919 = vmatprep.mubr.bf16.mxu0 0
      %1920 = vmatmul.mubr.bf16.gmra.mrb[0].mxu0 %v1749
      %v1921 = vpop.f32.mrb[0].mxu0
      %v1922 = vadd.f32 0.0, %v1921
      %v1923 = vpop.f32.mrb[0].mxu0
      %v1924 = vpop.f32.mrb[0].mxu0
      %v1925 = vadd.f32 0.0, %v1924
      %v1926 = vpop.f32.mrb[0].mxu0
      %1927 = vmatprep.mubr.bf16.mxu0 0
      %1928 = vmatmul.mubr.bf16.gmra.mrb[0].mxu0 %v1766
      %v1929 = vpop.f32.mrb[0].mxu0
      %v1930 = vadd.f32 0.0, %v1929
      %v1931 = vpop.f32.mrb[0].mxu0
      %v1932 = vpop.f32.mrb[0].mxu0
      %v1933 = vadd.f32 0.0, %v1932
      %v1934 = vpop.f32.mrb[0].mxu0
      %1935 = vdwg.mxu0
      %v1936 = vadd.f32 %v1560, %v1874
      %v1937 = vadd.f32 %v1563, %v1877
      %v1938 = vadd.f32 %v1568, %v1882
      %v1939 = vadd.f32 %v1571, %v1885
      %v1940 = vadd.f32 %v1576, %v1890
      %v1941 = vadd.f32 %v1579, %v1893
      %v1942 = vadd.f32 %v1584, %v1898
      %v1943 = vadd.f32 %v1587, %v1901
      %v1944 = vadd.f32 %v1592, %v1906
      %v1945 = vadd.f32 %v1595, %v1909
      %v1946 = vadd.f32 %v1600, %v1914
      %v1947 = vadd.f32 %v1603, %v1917
      %v1948 = vadd.f32 %v1608, %v1922
      %v1949 = vadd.f32 %v1611, %v1925
      %v1950 = vadd.f32 %v1616, %v1930
      %v1951 = vadd.f32 %v1619, %v1933
      %1952 = vst [vmem:[#allocation3] sm:$0xff] %v1936
      %1953 = vst [vmem:[#allocation3 + $0x8] sm:$0xff] %v1937
      %1954 = vst [vmem:[#allocation3 + $0x10] sm:$0xff] %v1938
      %1955 = vst [vmem:[#allocation3 + $0x18] sm:$0xff] %v1939
      %1956 = vst [vmem:[#allocation3 + $0x20] sm:$0xff] %v1940
      %1957 = vst [vmem:[#allocation3 + $0x28] sm:$0xff] %v1941
      %1958 = vst [vmem:[#allocation3 + $0x30] sm:$0xff] %v1942
      %1959 = vst [vmem:[#allocation3 + $0x38] sm:$0xff] %v1943
      %1960 = vst [vmem:[#allocation3 + $0x40] sm:$0xff] %v1944
      %1961 = vst [vmem:[#allocation3 + $0x48] sm:$0xff] %v1945
      %1962 = vst [vmem:[#allocation3 + $0x50] sm:$0xff] %v1946
      %1963 = vst [vmem:[#allocation3 + $0x58] sm:$0xff] %v1947
      %1964 = vst [vmem:[#allocation3 + $0x60] sm:$0xff] %v1948
      %1965 = vst [vmem:[#allocation3 + $0x68] sm:$0xff] %v1949
      %1966 = vst [vmem:[#allocation3 + $0x70] sm:$0xff] %v1950
      %1967 = vst [vmem:[#allocation3 + $0x78] sm:$0xff] %v1951
      %v1968 = vld [vmem:[%s649] sm:$0xf8]
      %v1969 = vld [vmem:[%s649 + $0x8] sm:$0xf]
      %v1970 = vld [vmem:[%s649 + $0x10] sm:$0xf8]
      %v1971 = vld [vmem:[%s649 + $0x18] sm:$0xf]
      %v1972 = vld [vmem:[%s649 + $0x20] sm:$0xf8]
      %v1973 = vld [vmem:[%s649 + $0x28] sm:$0xf]
      %v1974 = vld [vmem:[%s649 + $0x30] sm:$0xf8]
      %v1975 = vld [vmem:[%s649 + $0x38] sm:$0xf]
      %v1976 = vld [vmem:[%s649 + $0x40] sm:$0xf8]
      %v1977 = vld [vmem:[%s649 + $0x48] sm:$0xf]
      %v1978 = vld [vmem:[%s649 + $0x50] sm:$0xf8]
      %v1979 = vld [vmem:[%s649 + $0x58] sm:$0xf]
      %v1980 = vld [vmem:[%s649 + $0x60] sm:$0xf8]
      %v1981 = vld [vmem:[%s649 + $0x68] sm:$0xf]
      %v1982 = vld [vmem:[%s649 + $0x70] sm:$0xf8]
      %v1983 = vld [vmem:[%s649 + $0x78] sm:$0xf]
      %v1985 = vshrl.u32 %v1968, 16
      %v1987 = vrot.slane %v1985, 3
      %v1988 = vshll.u32 %v1968, 16
      %v1990 = vrot.slane %v1988, 4
      %v1991 = vor.u32 %v1987, %v1990
      %v1993 = vshrl.u32 %v1969, 16
      %v1995 = vrot.slane %v1993, 3
      %v1996 = vshll.u32 %v1969, 16
      %v1998 = vrot.slane %v1996, 4
      %v1999 = vor.u32 %v1995, %v1998
      %v2000 = vsel %vm1098, %v1991, %v1999
      %v2002 = vshrl.u32 %v1970, 16
      %v2004 = vrot.slane %v2002, 3
      %v2005 = vshll.u32 %v1970, 16
      %v2007 = vrot.slane %v2005, 4
      %v2008 = vor.u32 %v2004, %v2007
      %v2010 = vshrl.u32 %v1971, 16
      %v2012 = vrot.slane %v2010, 3
      %v2013 = vshll.u32 %v1971, 16
      %v2015 = vrot.slane %v2013, 4
      %v2016 = vor.u32 %v2012, %v2015
      %v2017 = vsel %vm1098, %v2008, %v2016
      %v2019 = vshrl.u32 %v1972, 16
      %v2021 = vrot.slane %v2019, 3
      %v2022 = vshll.u32 %v1972, 16
      %v2024 = vrot.slane %v2022, 4
      %v2025 = vor.u32 %v2021, %v2024
      %v2027 = vshrl.u32 %v1973, 16
      %v2029 = vrot.slane %v2027, 3
      %v2030 = vshll.u32 %v1973, 16
      %v2032 = vrot.slane %v2030, 4
      %v2033 = vor.u32 %v2029, %v2032
      %v2034 = vsel %vm1098, %v2025, %v2033
      %v2036 = vshrl.u32 %v1974, 16
      %v2038 = vrot.slane %v2036, 3
      %v2039 = vshll.u32 %v1974, 16
      %v2041 = vrot.slane %v2039, 4
      %v2042 = vor.u32 %v2038, %v2041
      %v2044 = vshrl.u32 %v1975, 16
      %v2046 = vrot.slane %v2044, 3
      %v2047 = vshll.u32 %v1975, 16
      %v2049 = vrot.slane %v2047, 4
      %v2050 = vor.u32 %v2046, %v2049
      %v2051 = vsel %vm1098, %v2042, %v2050
      %v2053 = vshrl.u32 %v1976, 16
      %v2055 = vrot.slane %v2053, 3
      %v2056 = vshll.u32 %v1976, 16
      %v2058 = vrot.slane %v2056, 4
      %v2059 = vor.u32 %v2055, %v2058
      %v2061 = vshrl.u32 %v1977, 16
      %v2063 = vrot.slane %v2061, 3
      %v2064 = vshll.u32 %v1977, 16
      %v2066 = vrot.slane %v2064, 4
      %v2067 = vor.u32 %v2063, %v2066
      %v2068 = vsel %vm1098, %v2059, %v2067
      %v2070 = vshrl.u32 %v1978, 16
      %v2072 = vrot.slane %v2070, 3
      %v2073 = vshll.u32 %v1978, 16
      %v2075 = vrot.slane %v2073, 4
      %v2076 = vor.u32 %v2072, %v2075
      %v2078 = vshrl.u32 %v1979, 16
      %v2080 = vrot.slane %v2078, 3
      %v2081 = vshll.u32 %v1979, 16
      %v2083 = vrot.slane %v2081, 4
      %v2084 = vor.u32 %v2080, %v2083
      %v2085 = vsel %vm1098, %v2076, %v2084
      %v2087 = vshrl.u32 %v1980, 16
      %v2089 = vrot.slane %v2087, 3
      %v2090 = vshll.u32 %v1980, 16
      %v2092 = vrot.slane %v2090, 4
      %v2093 = vor.u32 %v2089, %v2092
      %v2095 = vshrl.u32 %v1981, 16
      %v2097 = vrot.slane %v2095, 3
      %v2098 = vshll.u32 %v1981, 16
      %v2100 = vrot.slane %v2098, 4
      %v2101 = vor.u32 %v2097, %v2100
      %v2102 = vsel %vm1098, %v2093, %v2101
      %v2104 = vshrl.u32 %v1982, 16
      %v2106 = vrot.slane %v2104, 3
      %v2107 = vshll.u32 %v1982, 16
      %v2109 = vrot.slane %v2107, 4
      %v2110 = vor.u32 %v2106, %v2109
      %v2112 = vshrl.u32 %v1983, 16
      %v2114 = vrot.slane %v2112, 3
      %v2115 = vshll.u32 %v1983, 16
      %v2117 = vrot.slane %v2115, 4
      %v2118 = vor.u32 %v2114, %v2117
      %v2119 = vsel %vm1098, %v2110, %v2118
      %v2128 = vld [vmem:[%s2 + $0xc0] sm:$0xf]
      %v2129 = vld [vmem:[%s2 + $0xc4] sm:$0xf]
      %v2130 = vld [vmem:[%s2 + $0xc8] sm:$0xf]
      %v2131 = vld [vmem:[%s2 + $0xcc] sm:$0xf]
      %v2132 = vld [vmem:[%s2 + $0xd0] sm:$0xf]
      %v2133 = vld [vmem:[%s2 + $0xd4] sm:$0xf]
      %v2134 = vld [vmem:[%s2 + $0xd8] sm:$0xf]
      %v2135 = vld [vmem:[%s2 + $0xdc] sm:$0xf]
      %v2136 = vld [vmem:[%s2 + $0xe0] sm:$0xf]
      %v2137 = vld [vmem:[%s2 + $0xe4] sm:$0xf]
      %v2138 = vld [vmem:[%s2 + $0xe8] sm:$0xf]
      %v2139 = vld [vmem:[%s2 + $0xec] sm:$0xf]
      %v2140 = vld [vmem:[%s2 + $0xf0] sm:$0xf]
      %v2141 = vld [vmem:[%s2 + $0xf4] sm:$0xf]
      %v2142 = vld [vmem:[%s2 + $0xf8] sm:$0xf]
      %v2143 = vld [vmem:[%s2 + $0xfc] sm:$0xf]
      %v2144 = vld [vmem:[%s649] sm:$0xf0]
      %v2145 = vld [vmem:[%s649 + $0x10] sm:$0xf0]
      %v2146 = vld [vmem:[%s649 + $0x20] sm:$0xf0]
      %v2147 = vld [vmem:[%s649 + $0x30] sm:$0xf0]
      %v2148 = vld [vmem:[%s649 + $0x40] sm:$0xf0]
      %v2149 = vld [vmem:[%s649 + $0x50] sm:$0xf0]
      %v2150 = vld [vmem:[%s649 + $0x60] sm:$0xf0]
      %v2151 = vld [vmem:[%s649 + $0x70] sm:$0xf0]
      %v2168 = vrot.slane %v2144, 4
      %v2169 = vrot.slane %v1969, 4
      %v2170 = vsel %vm1283, %v2168, %v2169
      %v2171 = vrot.slane %v2145, 4
      %v2172 = vrot.slane %v1971, 4
      %v2173 = vsel %vm1283, %v2171, %v2172
      %v2174 = vrot.slane %v2146, 4
      %v2175 = vrot.slane %v1973, 4
      %v2176 = vsel %vm1283, %v2174, %v2175
      %v2177 = vrot.slane %v2147, 4
      %v2178 = vrot.slane %v1975, 4
      %v2179 = vsel %vm1283, %v2177, %v2178
      %v2180 = vrot.slane %v2148, 4
      %v2181 = vrot.slane %v1977, 4
      %v2182 = vsel %vm1283, %v2180, %v2181
      %v2183 = vrot.slane %v2149, 4
      %v2184 = vrot.slane %v1979, 4
      %v2185 = vsel %vm1283, %v2183, %v2184
      %v2186 = vrot.slane %v2150, 4
      %v2187 = vrot.slane %v1981, 4
      %v2188 = vsel %vm1283, %v2186, %v2187
      %v2189 = vrot.slane %v2151, 4
      %v2190 = vrot.slane %v1983, 4
      %v2191 = vsel %vm1283, %v2189, %v2190
      %v2200 = vld [vmem:[%s2 + $0x100] sm:$0xf]
      %v2201 = vld [vmem:[%s2 + $0x104] sm:$0xf]
      %v2202 = vld [vmem:[%s2 + $0x108] sm:$0xf]
      %v2203 = vld [vmem:[%s2 + $0x10c] sm:$0xf]
      %v2204 = vld [vmem:[%s2 + $0x110] sm:$0xf]
      %v2205 = vld [vmem:[%s2 + $0x114] sm:$0xf]
      %v2206 = vld [vmem:[%s2 + $0x118] sm:$0xf]
      %v2207 = vld [vmem:[%s2 + $0x11c] sm:$0xf]
      %v2208 = vld [vmem:[%s2 + $0x120] sm:$0xf]
      %v2209 = vld [vmem:[%s2 + $0x124] sm:$0xf]
      %v2210 = vld [vmem:[%s2 + $0x128] sm:$0xf]
      %v2211 = vld [vmem:[%s2 + $0x12c] sm:$0xf]
      %v2212 = vld [vmem:[%s2 + $0x130] sm:$0xf]
      %v2213 = vld [vmem:[%s2 + $0x134] sm:$0xf]
      %v2214 = vld [vmem:[%s2 + $0x138] sm:$0xf]
      %v2215 = vld [vmem:[%s2 + $0x13c] sm:$0xf]
      %v2232 = vunpack.c.l.b16 %v2200
      %v2233 = vunpack.c.l.b16 %v2201
      %v2234 = vunpack.c.l.b16 %v2202
      %v2235 = vunpack.c.l.b16 %v2203
      %v2236 = vunpack.c.l.b16 %v2204
      %v2237 = vunpack.c.l.b16 %v2205
      %v2238 = vunpack.c.l.b16 %v2206
      %v2239 = vunpack.c.l.b16 %v2207
      %v2240 = vunpack.c.l.b16 %v2208
      %v2241 = vunpack.c.l.b16 %v2209
      %v2242 = vunpack.c.l.b16 %v2210
      %v2243 = vunpack.c.l.b16 %v2211
      %v2244 = vunpack.c.l.b16 %v2212
      %v2245 = vunpack.c.l.b16 %v2213
      %v2246 = vunpack.c.l.b16 %v2214
      %v2247 = vunpack.c.l.b16 %v2215
      %v2248 = vpack.c.b16 %v2233, %v2232
      %v2249 = vpack.c.b16 %v2235, %v2234
      %v2250 = vpack.c.b16 %v2237, %v2236
      %v2251 = vpack.c.b16 %v2239, %v2238
      %v2252 = vpack.c.b16 %v2241, %v2240
      %v2253 = vpack.c.b16 %v2243, %v2242
      %v2254 = vpack.c.b16 %v2245, %v2244
      %v2255 = vpack.c.b16 %v2247, %v2246
      %2264 = vmatprep.subr.bf16.mxu0 0
      %2265 = vmatpush1.bf16.msra.mxu0 %v2248
      %2266 = vmatprep.subr.bf16.mxu0 0
      %2267 = vmatpush1.bf16.msra.mxu0 %v2249
      %2268 = vmatprep.subr.bf16.mxu0 0
      %2269 = vmatpush1.bf16.msra.mxu0 %v2250
      %2270 = vmatprep.subr.bf16.mxu0 0
      %2271 = vmatpush1.bf16.msra.mxu0 %v2251
      %2272 = vmatprep.subr.bf16.mxu0 0
      %2273 = vmatpush1.bf16.msra.mxu0 %v2252
      %2274 = vmatprep.subr.bf16.mxu0 0
      %2275 = vmatpush1.bf16.msra.mxu0 %v2253
      %2276 = vmatprep.subr.bf16.mxu0 0
      %2277 = vmatpush1.bf16.msra.mxu0 %v2254
      %2278 = vmatprep.subr.bf16.mxu0 0
      %2279 = vmatpush1.bf16.msra.mxu0 %v2255
      %2280 = vmatprep.subr.bf16.mxu0 0
      %2281 = vmatpush1.bf16.msra.mxu0 0
      %2282 = vmatprep.subr.bf16.mxu0 0
      %2283 = vmatpush1.bf16.msra.mxu0 0
      %2284 = vmatprep.subr.bf16.mxu0 0
      %2285 = vmatpush1.bf16.msra.mxu0 0
      %2286 = vmatprep.subr.bf16.mxu0 0
      %2287 = vmatpush1.bf16.msra.mxu0 0
      %2288 = vmatprep.subr.bf16.mxu0 0
      %2289 = vmatpush1.bf16.msra.mxu0 0
      %2290 = vmatprep.subr.bf16.mxu0 0
      %2291 = vmatpush1.bf16.msra.mxu0 0
      %2292 = vmatprep.subr.bf16.mxu0 0
      %2293 = vmatpush1.bf16.msra.mxu0 0
      %2294 = vmatprep.subr.bf16.mxu0 0
      %2295 = vmatpush1.bf16.msra.mxu0 0
      %2296 = vmatprep.mubr.bf16.mxu0 0
      %2297 = vmatmul.mubr.bf16.gmra.mrb[0].mxu0 %v2170
      %v2298 = vpop.f32.mrb[0].mxu0
      %v2299 = vadd.f32 0.0, %v2298
      %v2300 = vpop.f32.mrb[0].mxu0
      %v2301 = vpop.f32.mrb[0].mxu0
      %v2302 = vadd.f32 0.0, %v2301
      %v2303 = vpop.f32.mrb[0].mxu0
      %2304 = vmatprep.mubr.bf16.mxu0 0
      %2305 = vmatmul.mubr.bf16.gmra.mrb[0].mxu0 %v2173
      %v2306 = vpop.f32.mrb[0].mxu0
      %v2307 = vadd.f32 0.0, %v2306
      %v2308 = vpop.f32.mrb[0].mxu0
      %v2309 = vpop.f32.mrb[0].mxu0
      %v2310 = vadd.f32 0.0, %v2309
      %v2311 = vpop.f32.mrb[0].mxu0
      %2312 = vmatprep.mubr.bf16.mxu0 0
      %2313 = vmatmul.mubr.bf16.gmra.mrb[0].mxu0 %v2176
      %v2314 = vpop.f32.mrb[0].mxu0
      %v2315 = vadd.f32 0.0, %v2314
      %v2316 = vpop.f32.mrb[0].mxu0
      %v2317 = vpop.f32.mrb[0].mxu0
      %v2318 = vadd.f32 0.0, %v2317
      %v2319 = vpop.f32.mrb[0].mxu0
      %2320 = vmatprep.mubr.bf16.mxu0 0
      %2321 = vmatmul.mubr.bf16.gmra.mrb[0].mxu0 %v2179
      %v2322 = vpop.f32.mrb[0].mxu0
      %v2323 = vadd.f32 0.0, %v2322
      %v2324 = vpop.f32.mrb[0].mxu0
      %v2325 = vpop.f32.mrb[0].mxu0
      %v2326 = vadd.f32 0.0, %v2325
      %v2327 = vpop.f32.mrb[0].mxu0
      %2328 = vmatprep.mubr.bf16.mxu0 0
      %2329 = vmatmul.mubr.bf16.gmra.mrb[0].mxu0 %v2182
      %v2330 = vpop.f32.mrb[0].mxu0
      %v2331 = vadd.f32 0.0, %v2330
      %v2332 = vpop.f32.mrb[0].mxu0
      %v2333 = vpop.f32.mrb[0].mxu0
      %v2334 = vadd.f32 0.0, %v2333
      %v2335 = vpop.f32.mrb[0].mxu0
      %2336 = vmatprep.mubr.bf16.mxu0 0
      %2337 = vmatmul.mubr.bf16.gmra.mrb[0].mxu0 %v2185
      %v2338 = vpop.f32.mrb[0].mxu0
      %v2339 = vadd.f32 0.0, %v2338
      %v2340 = vpop.f32.mrb[0].mxu0
      %v2341 = vpop.f32.mrb[0].mxu0
      %v2342 = vadd.f32 0.0, %v2341
      %v2343 = vpop.f32.mrb[0].mxu0
      %2344 = vmatprep.mubr.bf16.mxu0 0
      %2345 = vmatmul.mubr.bf16.gmra.mrb[0].mxu0 %v2188
      %v2346 = vpop.f32.mrb[0].mxu0
      %v2347 = vadd.f32 0.0, %v2346
      %v2348 = vpop.f32.mrb[0].mxu0
      %v2349 = vpop.f32.mrb[0].mxu0
      %v2350 = vadd.f32 0.0, %v2349
      %v2351 = vpop.f32.mrb[0].mxu0
      %2352 = vmatprep.mubr.bf16.mxu0 0
      %2353 = vmatmul.mubr.bf16.gmra.mrb[0].mxu0 %v2191
      %v2354 = vpop.f32.mrb[0].mxu0
      %v2355 = vadd.f32 0.0, %v2354
      %v2356 = vpop.f32.mrb[0].mxu0
      %v2357 = vpop.f32.mrb[0].mxu0
      %v2358 = vadd.f32 0.0, %v2357
      %v2359 = vpop.f32.mrb[0].mxu0
      %2360 = vdwg.mxu0
      %v2377 = vunpack.c.l.b16 %v2128
      %v2378 = vunpack.c.l.b16 %v2129
      %v2379 = vunpack.c.l.b16 %v2130
      %v2380 = vunpack.c.l.b16 %v2131
      %v2381 = vunpack.c.l.b16 %v2132
      %v2382 = vunpack.c.l.b16 %v2133
      %v2383 = vunpack.c.l.b16 %v2134
      %v2384 = vunpack.c.l.b16 %v2135
      %v2385 = vunpack.c.l.b16 %v2136
      %v2386 = vunpack.c.l.b16 %v2137
      %v2387 = vunpack.c.l.b16 %v2138
      %v2388 = vunpack.c.l.b16 %v2139
      %v2389 = vunpack.c.l.b16 %v2140
      %v2390 = vunpack.c.l.b16 %v2141
      %v2391 = vunpack.c.l.b16 %v2142
      %v2392 = vunpack.c.l.b16 %v2143
      %v2393 = vpack.c.b16 %v2378, %v2377
      %v2394 = vpack.c.b16 %v2380, %v2379
      %v2395 = vpack.c.b16 %v2382, %v2381
      %v2396 = vpack.c.b16 %v2384, %v2383
      %v2397 = vpack.c.b16 %v2386, %v2385
      %v2398 = vpack.c.b16 %v2388, %v2387
      %v2399 = vpack.c.b16 %v2390, %v2389
      %v2400 = vpack.c.b16 %v2392, %v2391
      %2409 = vmatprep.subr.bf16.mxu0 0
      %2410 = vmatpush1.bf16.msra.mxu0 %v2393
      %2411 = vmatprep.subr.bf16.mxu0 0
      %2412 = vmatpush1.bf16.msra.mxu0 %v2394
      %2413 = vmatprep.subr.bf16.mxu0 0
      %2414 = vmatpush1.bf16.msra.mxu0 %v2395
      %2415 = vmatprep.subr.bf16.mxu0 0
      %2416 = vmatpush1.bf16.msra.mxu0 %v2396
      %2417 = vmatprep.subr.bf16.mxu0 0
      %2418 = vmatpush1.bf16.msra.mxu0 %v2397
      %2419 = vmatprep.subr.bf16.mxu0 0
      %2420 = vmatpush1.bf16.msra.mxu0 %v2398
      %2421 = vmatprep.subr.bf16.mxu0 0
      %2422 = vmatpush1.bf16.msra.mxu0 %v2399
      %2423 = vmatprep.subr.bf16.mxu0 0
      %2424 = vmatpush1.bf16.msra.mxu0 %v2400
      %2425 = vmatprep.subr.bf16.mxu0 0
      %2426 = vmatpush1.bf16.msra.mxu0 0
      %2427 = vmatprep.subr.bf16.mxu0 0
      %2428 = vmatpush1.bf16.msra.mxu0 0
      %2429 = vmatprep.subr.bf16.mxu0 0
      %2430 = vmatpush1.bf16.msra.mxu0 0
      %2431 = vmatprep.subr.bf16.mxu0 0
      %2432 = vmatpush1.bf16.msra.mxu0 0
      %2433 = vmatprep.subr.bf16.mxu0 0
      %2434 = vmatpush1.bf16.msra.mxu0 0
      %2435 = vmatprep.subr.bf16.mxu0 0
      %2436 = vmatpush1.bf16.msra.mxu0 0
      %2437 = vmatprep.subr.bf16.mxu0 0
      %2438 = vmatpush1.bf16.msra.mxu0 0
      %2439 = vmatprep.subr.bf16.mxu0 0
      %2440 = vmatpush1.bf16.msra.mxu0 0
      %2441 = vmatprep.mubr.bf16.mxu0 0
      %2442 = vmatmul.mubr.bf16.gmra.mrb[0].mxu0 %v2000
      %v2443 = vpop.f32.mrb[0].mxu0
      %v2444 = vadd.f32 %v2299, %v2443
      %v2445 = vpop.f32.mrb[0].mxu0
      %v2446 = vpop.f32.mrb[0].mxu0
      %v2447 = vadd.f32 %v2302, %v2446
      %v2448 = vpop.f32.mrb[0].mxu0
      %2449 = vmatprep.mubr.bf16.mxu0 0
      %2450 = vmatmul.mubr.bf16.gmra.mrb[0].mxu0 %v2017
      %v2451 = vpop.f32.mrb[0].mxu0
      %v2452 = vadd.f32 %v2307, %v2451
      %v2453 = vpop.f32.mrb[0].mxu0
      %v2454 = vpop.f32.mrb[0].mxu0
      %v2455 = vadd.f32 %v2310, %v2454
      %v2456 = vpop.f32.mrb[0].mxu0
      %2457 = vmatprep.mubr.bf16.mxu0 0
      %2458 = vmatmul.mubr.bf16.gmra.mrb[0].mxu0 %v2034
      %v2459 = vpop.f32.mrb[0].mxu0
      %v2460 = vadd.f32 %v2315, %v2459
      %v2461 = vpop.f32.mrb[0].mxu0
      %v2462 = vpop.f32.mrb[0].mxu0
      %v2463 = vadd.f32 %v2318, %v2462
      %v2464 = vpop.f32.mrb[0].mxu0
      %2465 = vmatprep.mubr.bf16.mxu0 0
      %2466 = vmatmul.mubr.bf16.gmra.mrb[0].mxu0 %v2051
      %v2467 = vpop.f32.mrb[0].mxu0
      %v2468 = vadd.f32 %v2323, %v2467
      %v2469 = vpop.f32.mrb[0].mxu0
      %v2470 = vpop.f32.mrb[0].mxu0
      %v2471 = vadd.f32 %v2326, %v2470
      %v2472 = vpop.f32.mrb[0].mxu0
      %2473 = vmatprep.mubr.bf16.mxu0 0
      %2474 = vmatmul.mubr.bf16.gmra.mrb[0].mxu0 %v2068
      %v2475 = vpop.f32.mrb[0].mxu0
      %v2476 = vadd.f32 %v2331, %v2475
      %v2477 = vpop.f32.mrb[0].mxu0
      %v2478 = vpop.f32.mrb[0].mxu0
      %v2479 = vadd.f32 %v2334, %v2478
      %v2480 = vpop.f32.mrb[0].mxu0
      %2481 = vmatprep.mubr.bf16.mxu0 0
      %2482 = vmatmul.mubr.bf16.gmra.mrb[0].mxu0 %v2085
      %v2483 = vpop.f32.mrb[0].mxu0
      %v2484 = vadd.f32 %v2339, %v2483
      %v2485 = vpop.f32.mrb[0].mxu0
      %v2486 = vpop.f32.mrb[0].mxu0
      %v2487 = vadd.f32 %v2342, %v2486
      %v2488 = vpop.f32.mrb[0].mxu0
      %2489 = vmatprep.mubr.bf16.mxu0 0
      %2490 = vmatmul.mubr.bf16.gmra.mrb[0].mxu0 %v2102
      %v2491 = vpop.f32.mrb[0].mxu0
      %v2492 = vadd.f32 %v2347, %v2491
      %v2493 = vpop.f32.mrb[0].mxu0
      %v2494 = vpop.f32.mrb[0].mxu0
      %v2495 = vadd.f32 %v2350, %v2494
      %v2496 = vpop.f32.mrb[0].mxu0
      %2497 = vmatprep.mubr.bf16.mxu0 0
      %2498 = vmatmul.mubr.bf16.gmra.mrb[0].mxu0 %v2119
      %v2499 = vpop.f32.mrb[0].mxu0
      %v2500 = vadd.f32 %v2355, %v2499
      %v2501 = vpop.f32.mrb[0].mxu0
      %v2502 = vpop.f32.mrb[0].mxu0
      %v2503 = vadd.f32 %v2358, %v2502
      %v2504 = vpop.f32.mrb[0].mxu0
      %2505 = vdwg.mxu0
      %v2506 = vld [vmem:[%s649 + $0x8] sm:$0x1f]
      %v2507 = vld [vmem:[%s649 + $0x18] sm:$0x1f]
      %v2508 = vld [vmem:[%s649 + $0x28] sm:$0x1f]
      %v2509 = vld [vmem:[%s649 + $0x38] sm:$0x1f]
      %v2510 = vld [vmem:[%s649 + $0x48] sm:$0x1f]
      %v2511 = vld [vmem:[%s649 + $0x58] sm:$0x1f]
      %v2512 = vld [vmem:[%s649 + $0x68] sm:$0x1f]
      %v2513 = vld [vmem:[%s649 + $0x78] sm:$0x1f]
      %v2515 = vshrl.u32 %v2144, 16
      %v2517 = vrot.slane %v2515, 4
      %v2518 = vshll.u32 %v2144, 16
      %v2520 = vrot.slane %v2518, 5
      %v2521 = vor.u32 %v2517, %v2520
      %v2523 = vshrl.u32 %v2506, 16
      %v2525 = vrot.slane %v2523, 4
      %v2526 = vshll.u32 %v2506, 16
      %v2528 = vrot.slane %v2526, 5
      %v2529 = vor.u32 %v2525, %v2528
      %v2530 = vsel %vm1630, %v2521, %v2529
      %v2532 = vshrl.u32 %v2145, 16
      %v2534 = vrot.slane %v2532, 4
      %v2535 = vshll.u32 %v2145, 16
      %v2537 = vrot.slane %v2535, 5
      %v2538 = vor.u32 %v2534, %v2537
      %v2540 = vshrl.u32 %v2507, 16
      %v2542 = vrot.slane %v2540, 4
      %v2543 = vshll.u32 %v2507, 16
      %v2545 = vrot.slane %v2543, 5
      %v2546 = vor.u32 %v2542, %v2545
      %v2547 = vsel %vm1630, %v2538, %v2546
      %v2549 = vshrl.u32 %v2146, 16
      %v2551 = vrot.slane %v2549, 4
      %v2552 = vshll.u32 %v2146, 16
      %v2554 = vrot.slane %v2552, 5
      %v2555 = vor.u32 %v2551, %v2554
      %v2557 = vshrl.u32 %v2508, 16
      %v2559 = vrot.slane %v2557, 4
      %v2560 = vshll.u32 %v2508, 16
      %v2562 = vrot.slane %v2560, 5
      %v2563 = vor.u32 %v2559, %v2562
      %v2564 = vsel %vm1630, %v2555, %v2563
      %v2566 = vshrl.u32 %v2147, 16
      %v2568 = vrot.slane %v2566, 4
      %v2569 = vshll.u32 %v2147, 16
      %v2571 = vrot.slane %v2569, 5
      %v2572 = vor.u32 %v2568, %v2571
      %v2574 = vshrl.u32 %v2509, 16
      %v2576 = vrot.slane %v2574, 4
      %v2577 = vshll.u32 %v2509, 16
      %v2579 = vrot.slane %v2577, 5
      %v2580 = vor.u32 %v2576, %v2579
      %v2581 = vsel %vm1630, %v2572, %v2580
      %v2583 = vshrl.u32 %v2148, 16
      %v2585 = vrot.slane %v2583, 4
      %v2586 = vshll.u32 %v2148, 16
      %v2588 = vrot.slane %v2586, 5
      %v2589 = vor.u32 %v2585, %v2588
      %v2591 = vshrl.u32 %v2510, 16
      %v2593 = vrot.slane %v2591, 4
      %v2594 = vshll.u32 %v2510, 16
      %v2596 = vrot.slane %v2594, 5
      %v2597 = vor.u32 %v2593, %v2596
      %v2598 = vsel %vm1630, %v2589, %v2597
      %v2600 = vshrl.u32 %v2149, 16
      %v2602 = vrot.slane %v2600, 4
      %v2603 = vshll.u32 %v2149, 16
      %v2605 = vrot.slane %v2603, 5
      %v2606 = vor.u32 %v2602, %v2605
      %v2608 = vshrl.u32 %v2511, 16
      %v2610 = vrot.slane %v2608, 4
      %v2611 = vshll.u32 %v2511, 16
      %v2613 = vrot.slane %v2611, 5
      %v2614 = vor.u32 %v2610, %v2613
      %v2615 = vsel %vm1630, %v2606, %v2614
      %v2617 = vshrl.u32 %v2150, 16
      %v2619 = vrot.slane %v2617, 4
      %v2620 = vshll.u32 %v2150, 16
      %v2622 = vrot.slane %v2620, 5
      %v2623 = vor.u32 %v2619, %v2622
      %v2625 = vshrl.u32 %v2512, 16
      %v2627 = vrot.slane %v2625, 4
      %v2628 = vshll.u32 %v2512, 16
      %v2630 = vrot.slane %v2628, 5
      %v2631 = vor.u32 %v2627, %v2630
      %v2632 = vsel %vm1630, %v2623, %v2631
      %v2634 = vshrl.u32 %v2151, 16
      %v2636 = vrot.slane %v2634, 4
      %v2637 = vshll.u32 %v2151, 16
      %v2639 = vrot.slane %v2637, 5
      %v2640 = vor.u32 %v2636, %v2639
      %v2642 = vshrl.u32 %v2513, 16
      %v2644 = vrot.slane %v2642, 4
      %v2645 = vshll.u32 %v2513, 16
      %v2647 = vrot.slane %v2645, 5
      %v2648 = vor.u32 %v2644, %v2647
      %v2649 = vsel %vm1630, %v2640, %v2648
      %v2658 = vld [vmem:[%s2 + $0x140] sm:$0xf]
      %v2659 = vld [vmem:[%s2 + $0x144] sm:$0xf]
      %v2660 = vld [vmem:[%s2 + $0x148] sm:$0xf]
      %v2661 = vld [vmem:[%s2 + $0x14c] sm:$0xf]
      %v2662 = vld [vmem:[%s2 + $0x150] sm:$0xf]
      %v2663 = vld [vmem:[%s2 + $0x154] sm:$0xf]
      %v2664 = vld [vmem:[%s2 + $0x158] sm:$0xf]
      %v2665 = vld [vmem:[%s2 + $0x15c] sm:$0xf]
      %v2666 = vld [vmem:[%s2 + $0x160] sm:$0xf]
      %v2667 = vld [vmem:[%s2 + $0x164] sm:$0xf]
      %v2668 = vld [vmem:[%s2 + $0x168] sm:$0xf]
      %v2669 = vld [vmem:[%s2 + $0x16c] sm:$0xf]
      %v2670 = vld [vmem:[%s2 + $0x170] sm:$0xf]
      %v2671 = vld [vmem:[%s2 + $0x174] sm:$0xf]
      %v2672 = vld [vmem:[%s2 + $0x178] sm:$0xf]
      %v2673 = vld [vmem:[%s2 + $0x17c] sm:$0xf]
      %v2690 = vunpack.c.l.b16 %v2658
      %v2691 = vunpack.c.l.b16 %v2659
      %v2692 = vunpack.c.l.b16 %v2660
      %v2693 = vunpack.c.l.b16 %v2661
      %v2694 = vunpack.c.l.b16 %v2662
      %v2695 = vunpack.c.l.b16 %v2663
      %v2696 = vunpack.c.l.b16 %v2664
      %v2697 = vunpack.c.l.b16 %v2665
      %v2698 = vunpack.c.l.b16 %v2666
      %v2699 = vunpack.c.l.b16 %v2667
      %v2700 = vunpack.c.l.b16 %v2668
      %v2701 = vunpack.c.l.b16 %v2669
      %v2702 = vunpack.c.l.b16 %v2670
      %v2703 = vunpack.c.l.b16 %v2671
      %v2704 = vunpack.c.l.b16 %v2672
      %v2705 = vunpack.c.l.b16 %v2673
      %v2706 = vpack.c.b16 %v2691, %v2690
      %v2707 = vpack.c.b16 %v2693, %v2692
      %v2708 = vpack.c.b16 %v2695, %v2694
      %v2709 = vpack.c.b16 %v2697, %v2696
      %v2710 = vpack.c.b16 %v2699, %v2698
      %v2711 = vpack.c.b16 %v2701, %v2700
      %v2712 = vpack.c.b16 %v2703, %v2702
      %v2713 = vpack.c.b16 %v2705, %v2704
      %2722 = vmatprep.subr.bf16.mxu0 0
      %2723 = vmatpush1.bf16.msra.mxu0 %v2706
      %2724 = vmatprep.subr.bf16.mxu0 0
      %2725 = vmatpush1.bf16.msra.mxu0 %v2707
      %2726 = vmatprep.subr.bf16.mxu0 0
      %2727 = vmatpush1.bf16.msra.mxu0 %v2708
      %2728 = vmatprep.subr.bf16.mxu0 0
      %2729 = vmatpush1.bf16.msra.mxu0 %v2709
      %2730 = vmatprep.subr.bf16.mxu0 0
      %2731 = vmatpush1.bf16.msra.mxu0 %v2710
      %2732 = vmatprep.subr.bf16.mxu0 0
      %2733 = vmatpush1.bf16.msra.mxu0 %v2711
      %2734 = vmatprep.subr.bf16.mxu0 0
      %2735 = vmatpush1.bf16.msra.mxu0 %v2712
      %2736 = vmatprep.subr.bf16.mxu0 0
      %2737 = vmatpush1.bf16.msra.mxu0 %v2713
      %2738 = vmatprep.subr.bf16.mxu0 0
      %2739 = vmatpush1.bf16.msra.mxu0 0
      %2740 = vmatprep.subr.bf16.mxu0 0
      %2741 = vmatpush1.bf16.msra.mxu0 0
      %2742 = vmatprep.subr.bf16.mxu0 0
      %2743 = vmatpush1.bf16.msra.mxu0 0
      %2744 = vmatprep.subr.bf16.mxu0 0
      %2745 = vmatpush1.bf16.msra.mxu0 0
      %2746 = vmatprep.subr.bf16.mxu0 0
      %2747 = vmatpush1.bf16.msra.mxu0 0
      %2748 = vmatprep.subr.bf16.mxu0 0
      %2749 = vmatpush1.bf16.msra.mxu0 0
      %2750 = vmatprep.subr.bf16.mxu0 0
      %2751 = vmatpush1.bf16.msra.mxu0 0
      %2752 = vmatprep.subr.bf16.mxu0 0
      %2753 = vmatpush1.bf16.msra.mxu0 0
      %2754 = vmatprep.mubr.bf16.mxu0 0
      %2755 = vmatmul.mubr.bf16.gmra.mrb[0].mxu0 %v2530
      %v2756 = vpop.f32.mrb[0].mxu0
      %v2757 = vadd.f32 0.0, %v2756
      %v2758 = vpop.f32.mrb[0].mxu0
      %v2759 = vpop.f32.mrb[0].mxu0
      %v2760 = vadd.f32 0.0, %v2759
      %v2761 = vpop.f32.mrb[0].mxu0
      %2762 = vmatprep.mubr.bf16.mxu0 0
      %2763 = vmatmul.mubr.bf16.gmra.mrb[0].mxu0 %v2547
      %v2764 = vpop.f32.mrb[0].mxu0
      %v2765 = vadd.f32 0.0, %v2764
      %v2766 = vpop.f32.mrb[0].mxu0
      %v2767 = vpop.f32.mrb[0].mxu0
      %v2768 = vadd.f32 0.0, %v2767
      %v2769 = vpop.f32.mrb[0].mxu0
      %2770 = vmatprep.mubr.bf16.mxu0 0
      %2771 = vmatmul.mubr.bf16.gmra.mrb[0].mxu0 %v2564
      %v2772 = vpop.f32.mrb[0].mxu0
      %v2773 = vadd.f32 0.0, %v2772
      %v2774 = vpop.f32.mrb[0].mxu0
      %v2775 = vpop.f32.mrb[0].mxu0
      %v2776 = vadd.f32 0.0, %v2775
      %v2777 = vpop.f32.mrb[0].mxu0
      %2778 = vmatprep.mubr.bf16.mxu0 0
      %2779 = vmatmul.mubr.bf16.gmra.mrb[0].mxu0 %v2581
      %v2780 = vpop.f32.mrb[0].mxu0
      %v2781 = vadd.f32 0.0, %v2780
      %v2782 = vpop.f32.mrb[0].mxu0
      %v2783 = vpop.f32.mrb[0].mxu0
      %v2784 = vadd.f32 0.0, %v2783
      %v2785 = vpop.f32.mrb[0].mxu0
      %2786 = vmatprep.mubr.bf16.mxu0 0
      %2787 = vmatmul.mubr.bf16.gmra.mrb[0].mxu0 %v2598
      %v2788 = vpop.f32.mrb[0].mxu0
      %v2789 = vadd.f32 0.0, %v2788
      %v2790 = vpop.f32.mrb[0].mxu0
      %v2791 = vpop.f32.mrb[0].mxu0
      %v2792 = vadd.f32 0.0, %v2791
      %v2793 = vpop.f32.mrb[0].mxu0
      %2794 = vmatprep.mubr.bf16.mxu0 0
      %2795 = vmatmul.mubr.bf16.gmra.mrb[0].mxu0 %v2615
      %v2796 = vpop.f32.mrb[0].mxu0
      %v2797 = vadd.f32 0.0, %v2796
      %v2798 = vpop.f32.mrb[0].mxu0
      %v2799 = vpop.f32.mrb[0].mxu0
      %v2800 = vadd.f32 0.0, %v2799
      %v2801 = vpop.f32.mrb[0].mxu0
      %2802 = vmatprep.mubr.bf16.mxu0 0
      %2803 = vmatmul.mubr.bf16.gmra.mrb[0].mxu0 %v2632
      %v2804 = vpop.f32.mrb[0].mxu0
      %v2805 = vadd.f32 0.0, %v2804
      %v2806 = vpop.f32.mrb[0].mxu0
      %v2807 = vpop.f32.mrb[0].mxu0
      %v2808 = vadd.f32 0.0, %v2807
      %v2809 = vpop.f32.mrb[0].mxu0
      %2810 = vmatprep.mubr.bf16.mxu0 0
      %2811 = vmatmul.mubr.bf16.gmra.mrb[0].mxu0 %v2649
      %v2812 = vpop.f32.mrb[0].mxu0
      %v2813 = vadd.f32 0.0, %v2812
      %v2814 = vpop.f32.mrb[0].mxu0
      %v2815 = vpop.f32.mrb[0].mxu0
      %v2816 = vadd.f32 0.0, %v2815
      %v2817 = vpop.f32.mrb[0].mxu0
      %2818 = vdwg.mxu0
      %v2819 = vadd.f32 %v2444, %v2757
      %v2820 = vadd.f32 %v2447, %v2760
      %v2821 = vadd.f32 %v2452, %v2765
      %v2822 = vadd.f32 %v2455, %v2768
      %v2823 = vadd.f32 %v2460, %v2773
      %v2824 = vadd.f32 %v2463, %v2776
      %v2825 = vadd.f32 %v2468, %v2781
      %v2826 = vadd.f32 %v2471, %v2784
      %v2827 = vadd.f32 %v2476, %v2789
      %v2828 = vadd.f32 %v2479, %v2792
      %v2829 = vadd.f32 %v2484, %v2797
      %v2830 = vadd.f32 %v2487, %v2800
      %v2831 = vadd.f32 %v2492, %v2805
      %v2832 = vadd.f32 %v2495, %v2808
      %v2833 = vadd.f32 %v2500, %v2813
      %v2834 = vadd.f32 %v2503, %v2816
      %v2835 = vld [vmem:[#allocation3] sm:$0xff]
      %v2836 = vld [vmem:[#allocation3 + $0x8] sm:$0xff]
      %v2837 = vld [vmem:[#allocation3 + $0x10] sm:$0xff]
      %v2838 = vld [vmem:[#allocation3 + $0x18] sm:$0xff]
      %v2839 = vld [vmem:[#allocation3 + $0x20] sm:$0xff]
      %v2840 = vld [vmem:[#allocation3 + $0x28] sm:$0xff]
      %v2841 = vld [vmem:[#allocation3 + $0x30] sm:$0xff]
      %v2842 = vld [vmem:[#allocation3 + $0x38] sm:$0xff]
      %v2843 = vld [vmem:[#allocation3 + $0x40] sm:$0xff]
      %v2844 = vld [vmem:[#allocation3 + $0x48] sm:$0xff]
      %v2845 = vld [vmem:[#allocation3 + $0x50] sm:$0xff]
      %v2846 = vld [vmem:[#allocation3 + $0x58] sm:$0xff]
      %v2847 = vld [vmem:[#allocation3 + $0x60] sm:$0xff]
      %v2848 = vld [vmem:[#allocation3 + $0x68] sm:$0xff]
      %v2849 = vld [vmem:[#allocation3 + $0x70] sm:$0xff]
      %v2850 = vld [vmem:[#allocation3 + $0x78] sm:$0xff]
      %v2851 = vadd.f32 %v2835, %v2819
      %v2852 = vadd.f32 %v2836, %v2820
      %v2853 = vadd.f32 %v2837, %v2821
      %v2854 = vadd.f32 %v2838, %v2822
      %v2855 = vadd.f32 %v2839, %v2823
      %v2856 = vadd.f32 %v2840, %v2824
      %v2857 = vadd.f32 %v2841, %v2825
      %v2858 = vadd.f32 %v2842, %v2826
      %v2859 = vadd.f32 %v2843, %v2827
      %v2860 = vadd.f32 %v2844, %v2828
      %v2861 = vadd.f32 %v2845, %v2829
      %v2862 = vadd.f32 %v2846, %v2830
      %v2863 = vadd.f32 %v2847, %v2831
      %v2864 = vadd.f32 %v2848, %v2832
      %v2865 = vadd.f32 %v2849, %v2833
      %v2866 = vadd.f32 %v2850, %v2834
      %2867 = vst [vmem:[#allocation3] sm:$0xff] %v2851
      %2868 = vst [vmem:[#allocation3 + $0x8] sm:$0xff] %v2852
      %2869 = vst [vmem:[#allocation3 + $0x10] sm:$0xff] %v2853
      %2870 = vst [vmem:[#allocation3 + $0x18] sm:$0xff] %v2854
      %2871 = vst [vmem:[#allocation3 + $0x20] sm:$0xff] %v2855
      %2872 = vst [vmem:[#allocation3 + $0x28] sm:$0xff] %v2856
      %2873 = vst [vmem:[#allocation3 + $0x30] sm:$0xff] %v2857
      %2874 = vst [vmem:[#allocation3 + $0x38] sm:$0xff] %v2858
      %2875 = vst [vmem:[#allocation3 + $0x40] sm:$0xff] %v2859
      %2876 = vst [vmem:[#allocation3 + $0x48] sm:$0xff] %v2860
      %2877 = vst [vmem:[#allocation3 + $0x50] sm:$0xff] %v2861
      %2878 = vst [vmem:[#allocation3 + $0x58] sm:$0xff] %v2862
      %2879 = vst [vmem:[#allocation3 + $0x60] sm:$0xff] %v2863
      %2880 = vst [vmem:[#allocation3 + $0x68] sm:$0xff] %v2864
      %2881 = vst [vmem:[#allocation3 + $0x70] sm:$0xff] %v2865
      %2882 = vst [vmem:[#allocation3 + $0x78] sm:$0xff] %v2866
      %s2883 = scalar_lea.vmem [#allocation2], 32
      %v2884 = vld [vmem:[%s2883] sm:$0xf8]
      %v2885 = vld [vmem:[%s2883 + $0x8] sm:$0xf]
      %v2886 = vld [vmem:[%s2883 + $0x10] sm:$0xf8]
      %v2887 = vld [vmem:[%s2883 + $0x18] sm:$0xf]
      %v2888 = vld [vmem:[%s2883 + $0x20] sm:$0xf8]
      %v2889 = vld [vmem:[%s2883 + $0x28] sm:$0xf]
      %v2890 = vld [vmem:[%s2883 + $0x30] sm:$0xf8]
      %v2891 = vld [vmem:[%s2883 + $0x38] sm:$0xf]
      %v2892 = vld [vmem:[%s2883 + $0x40] sm:$0xf8]
      %v2893 = vld [vmem:[%s2883 + $0x48] sm:$0xf]
      %v2894 = vld [vmem:[%s2883 + $0x50] sm:$0xf8]
      %v2895 = vld [vmem:[%s2883 + $0x58] sm:$0xf]
      %v2896 = vld [vmem:[%s2883 + $0x60] sm:$0xf8]
      %v2897 = vld [vmem:[%s2883 + $0x68] sm:$0xf]
      %v2898 = vld [vmem:[%s2883 + $0x70] sm:$0xf8]
      %v2899 = vld [vmem:[%s2883 + $0x78] sm:$0xf]
      %v2901 = vshrl.u32 %v2884, 16
      %v2903 = vrot.slane %v2901, 3
      %v2904 = vshll.u32 %v2884, 16
      %v2906 = vrot.slane %v2904, 4
      %v2907 = vor.u32 %v2903, %v2906
      %v2909 = vshrl.u32 %v2885, 16
      %v2911 = vrot.slane %v2909, 3
      %v2912 = vshll.u32 %v2885, 16
      %v2914 = vrot.slane %v2912, 4
      %v2915 = vor.u32 %v2911, %v2914
      %v2916 = vsel %vm1098, %v2907, %v2915
      %v2918 = vshrl.u32 %v2886, 16
      %v2920 = vrot.slane %v2918, 3
      %v2921 = vshll.u32 %v2886, 16
      %v2923 = vrot.slane %v2921, 4
      %v2924 = vor.u32 %v2920, %v2923
      %v2926 = vshrl.u32 %v2887, 16
      %v2928 = vrot.slane %v2926, 3
      %v2929 = vshll.u32 %v2887, 16
      %v2931 = vrot.slane %v2929, 4
      %v2932 = vor.u32 %v2928, %v2931
      %v2933 = vsel %vm1098, %v2924, %v2932
      %v2935 = vshrl.u32 %v2888, 16
      %v2937 = vrot.slane %v2935, 3
      %v2938 = vshll.u32 %v2888, 16
      %v2940 = vrot.slane %v2938, 4
      %v2941 = vor.u32 %v2937, %v2940
      %v2943 = vshrl.u32 %v2889, 16
      %v2945 = vrot.slane %v2943, 3
      %v2946 = vshll.u32 %v2889, 16
      %v2948 = vrot.slane %v2946, 4
      %v2949 = vor.u32 %v2945, %v2948
      %v2950 = vsel %vm1098, %v2941, %v2949
      %v2952 = vshrl.u32 %v2890, 16
      %v2954 = vrot.slane %v2952, 3
      %v2955 = vshll.u32 %v2890, 16
      %v2957 = vrot.slane %v2955, 4
      %v2958 = vor.u32 %v2954, %v2957
      %v2960 = vshrl.u32 %v2891, 16
      %v2962 = vrot.slane %v2960, 3
      %v2963 = vshll.u32 %v2891, 16
      %v2965 = vrot.slane %v2963, 4
      %v2966 = vor.u32 %v2962, %v2965
      %v2967 = vsel %vm1098, %v2958, %v2966
      %v2969 = vshrl.u32 %v2892, 16
      %v2971 = vrot.slane %v2969, 3
      %v2972 = vshll.u32 %v2892, 16
      %v2974 = vrot.slane %v2972, 4
      %v2975 = vor.u32 %v2971, %v2974
      %v2977 = vshrl.u32 %v2893, 16
      %v2979 = vrot.slane %v2977, 3
      %v2980 = vshll.u32 %v2893, 16
      %v2982 = vrot.slane %v2980, 4
      %v2983 = vor.u32 %v2979, %v2982
      %v2984 = vsel %vm1098, %v2975, %v2983
      %v2986 = vshrl.u32 %v2894, 16
      %v2988 = vrot.slane %v2986, 3
      %v2989 = vshll.u32 %v2894, 16
      %v2991 = vrot.slane %v2989, 4
      %v2992 = vor.u32 %v2988, %v2991
      %v2994 = vshrl.u32 %v2895, 16
      %v2996 = vrot.slane %v2994, 3
      %v2997 = vshll.u32 %v2895, 16
      %v2999 = vrot.slane %v2997, 4
      %v3000 = vor.u32 %v2996, %v2999
      %v3001 = vsel %vm1098, %v2992, %v3000
      %v3003 = vshrl.u32 %v2896, 16
      %v3005 = vrot.slane %v3003, 3
      %v3006 = vshll.u32 %v2896, 16
      %v3008 = vrot.slane %v3006, 4
      %v3009 = vor.u32 %v3005, %v3008
      %v3011 = vshrl.u32 %v2897, 16
      %v3013 = vrot.slane %v3011, 3
      %v3014 = vshll.u32 %v2897, 16
      %v3016 = vrot.slane %v3014, 4
      %v3017 = vor.u32 %v3013, %v3016
      %v3018 = vsel %vm1098, %v3009, %v3017
      %v3020 = vshrl.u32 %v2898, 16
      %v3022 = vrot.slane %v3020, 3
      %v3023 = vshll.u32 %v2898, 16
      %v3025 = vrot.slane %v3023, 4
      %v3026 = vor.u32 %v3022, %v3025
      %v3028 = vshrl.u32 %v2899, 16
      %v3030 = vrot.slane %v3028, 3
      %v3031 = vshll.u32 %v2899, 16
      %v3033 = vrot.slane %v3031, 4
      %v3034 = vor.u32 %v3030, %v3033
      %v3035 = vsel %vm1098, %v3026, %v3034
      %v3044 = vld [vmem:[%s2 + $0x180] sm:$0xf]
      %v3045 = vld [vmem:[%s2 + $0x184] sm:$0xf]
      %v3046 = vld [vmem:[%s2 + $0x188] sm:$0xf]
      %v3047 = vld [vmem:[%s2 + $0x18c] sm:$0xf]
      %v3048 = vld [vmem:[%s2 + $0x190] sm:$0xf]
      %v3049 = vld [vmem:[%s2 + $0x194] sm:$0xf]
      %v3050 = vld [vmem:[%s2 + $0x198] sm:$0xf]
      %v3051 = vld [vmem:[%s2 + $0x19c] sm:$0xf]
      %v3052 = vld [vmem:[%s2 + $0x1a0] sm:$0xf]
      %v3053 = vld [vmem:[%s2 + $0x1a4] sm:$0xf]
      %v3054 = vld [vmem:[%s2 + $0x1a8] sm:$0xf]
      %v3055 = vld [vmem:[%s2 + $0x1ac] sm:$0xf]
      %v3056 = vld [vmem:[%s2 + $0x1b0] sm:$0xf]
      %v3057 = vld [vmem:[%s2 + $0x1b4] sm:$0xf]
      %v3058 = vld [vmem:[%s2 + $0x1b8] sm:$0xf]
      %v3059 = vld [vmem:[%s2 + $0x1bc] sm:$0xf]
      %v3060 = vld [vmem:[%s2883] sm:$0xf0]
      %v3061 = vld [vmem:[%s2883 + $0x10] sm:$0xf0]
      %v3062 = vld [vmem:[%s2883 + $0x20] sm:$0xf0]
      %v3063 = vld [vmem:[%s2883 + $0x30] sm:$0xf0]
      %v3064 = vld [vmem:[%s2883 + $0x40] sm:$0xf0]
      %v3065 = vld [vmem:[%s2883 + $0x50] sm:$0xf0]
      %v3066 = vld [vmem:[%s2883 + $0x60] sm:$0xf0]
      %v3067 = vld [vmem:[%s2883 + $0x70] sm:$0xf0]
      %v3084 = vrot.slane %v3060, 4
      %v3085 = vrot.slane %v2885, 4
      %v3086 = vsel %vm1283, %v3084, %v3085
      %v3087 = vrot.slane %v3061, 4
      %v3088 = vrot.slane %v2887, 4
      %v3089 = vsel %vm1283, %v3087, %v3088
      %v3090 = vrot.slane %v3062, 4
      %v3091 = vrot.slane %v2889, 4
      %v3092 = vsel %vm1283, %v3090, %v3091
      %v3093 = vrot.slane %v3063, 4
      %v3094 = vrot.slane %v2891, 4
      %v3095 = vsel %vm1283, %v3093, %v3094
      %v3096 = vrot.slane %v3064, 4
      %v3097 = vrot.slane %v2893, 4
      %v3098 = vsel %vm1283, %v3096, %v3097
      %v3099 = vrot.slane %v3065, 4
      %v3100 = vrot.slane %v2895, 4
      %v3101 = vsel %vm1283, %v3099, %v3100
      %v3102 = vrot.slane %v3066, 4
      %v3103 = vrot.slane %v2897, 4
      %v3104 = vsel %vm1283, %v3102, %v3103
      %v3105 = vrot.slane %v3067, 4
      %v3106 = vrot.slane %v2899, 4
      %v3107 = vsel %vm1283, %v3105, %v3106
      %v3116 = vld [vmem:[%s2 + $0x1c0] sm:$0xf]
      %v3117 = vld [vmem:[%s2 + $0x1c4] sm:$0xf]
      %v3118 = vld [vmem:[%s2 + $0x1c8] sm:$0xf]
      %v3119 = vld [vmem:[%s2 + $0x1cc] sm:$0xf]
      %v3120 = vld [vmem:[%s2 + $0x1d0] sm:$0xf]
      %v3121 = vld [vmem:[%s2 + $0x1d4] sm:$0xf]
      %v3122 = vld [vmem:[%s2 + $0x1d8] sm:$0xf]
      %v3123 = vld [vmem:[%s2 + $0x1dc] sm:$0xf]
      %v3124 = vld [vmem:[%s2 + $0x1e0] sm:$0xf]
      %v3125 = vld [vmem:[%s2 + $0x1e4] sm:$0xf]
      %v3126 = vld [vmem:[%s2 + $0x1e8] sm:$0xf]
      %v3127 = vld [vmem:[%s2 + $0x1ec] sm:$0xf]
      %v3128 = vld [vmem:[%s2 + $0x1f0] sm:$0xf]
      %v3129 = vld [vmem:[%s2 + $0x1f4] sm:$0xf]
      %v3130 = vld [vmem:[%s2 + $0x1f8] sm:$0xf]
      %v3131 = vld [vmem:[%s2 + $0x1fc] sm:$0xf]
      %v3148 = vunpack.c.l.b16 %v3116
      %v3149 = vunpack.c.l.b16 %v3117
      %v3150 = vunpack.c.l.b16 %v3118
      %v3151 = vunpack.c.l.b16 %v3119
      %v3152 = vunpack.c.l.b16 %v3120
      %v3153 = vunpack.c.l.b16 %v3121
      %v3154 = vunpack.c.l.b16 %v3122
      %v3155 = vunpack.c.l.b16 %v3123
      %v3156 = vunpack.c.l.b16 %v3124
      %v3157 = vunpack.c.l.b16 %v3125
      %v3158 = vunpack.c.l.b16 %v3126
      %v3159 = vunpack.c.l.b16 %v3127
      %v3160 = vunpack.c.l.b16 %v3128
      %v3161 = vunpack.c.l.b16 %v3129
      %v3162 = vunpack.c.l.b16 %v3130
      %v3163 = vunpack.c.l.b16 %v3131
      %v3164 = vpack.c.b16 %v3149, %v3148
      %v3165 = vpack.c.b16 %v3151, %v3150
      %v3166 = vpack.c.b16 %v3153, %v3152
      %v3167 = vpack.c.b16 %v3155, %v3154
      %v3168 = vpack.c.b16 %v3157, %v3156
      %v3169 = vpack.c.b16 %v3159, %v3158
      %v3170 = vpack.c.b16 %v3161, %v3160
      %v3171 = vpack.c.b16 %v3163, %v3162
      %3180 = vmatprep.subr.bf16.mxu0 0
      %3181 = vmatpush1.bf16.msra.mxu0 %v3164
      %3182 = vmatprep.subr.bf16.mxu0 0
      %3183 = vmatpush1.bf16.msra.mxu0 %v3165
      %3184 = vmatprep.subr.bf16.mxu0 0
      %3185 = vmatpush1.bf16.msra.mxu0 %v3166
      %3186 = vmatprep.subr.bf16.mxu0 0
      %3187 = vmatpush1.bf16.msra.mxu0 %v3167
      %3188 = vmatprep.subr.bf16.mxu0 0
      %3189 = vmatpush1.bf16.msra.mxu0 %v3168
      %3190 = vmatprep.subr.bf16.mxu0 0
      %3191 = vmatpush1.bf16.msra.mxu0 %v3169
      %3192 = vmatprep.subr.bf16.mxu0 0
      %3193 = vmatpush1.bf16.msra.mxu0 %v3170
      %3194 = vmatprep.subr.bf16.mxu0 0
      %3195 = vmatpush1.bf16.msra.mxu0 %v3171
      %3196 = vmatprep.subr.bf16.mxu0 0
      %3197 = vmatpush1.bf16.msra.mxu0 0
      %3198 = vmatprep.subr.bf16.mxu0 0
      %3199 = vmatpush1.bf16.msra.mxu0 0
      %3200 = vmatprep.subr.bf16.mxu0 0
      %3201 = vmatpush1.bf16.msra.mxu0 0
      %3202 = vmatprep.subr.bf16.mxu0 0
      %3203 = vmatpush1.bf16.msra.mxu0 0
      %3204 = vmatprep.subr.bf16.mxu0 0
      %3205 = vmatpush1.bf16.msra.mxu0 0
      %3206 = vmatprep.subr.bf16.mxu0 0
      %3207 = vmatpush1.bf16.msra.mxu0 0
      %3208 = vmatprep.subr.bf16.mxu0 0
      %3209 = vmatpush1.bf16.msra.mxu0 0
      %3210 = vmatprep.subr.bf16.mxu0 0
      %3211 = vmatpush1.bf16.msra.mxu0 0
      %3212 = vmatprep.mubr.bf16.mxu0 0
      %3213 = vmatmul.mubr.bf16.gmra.mrb[0].mxu0 %v3086
      %v3214 = vpop.f32.mrb[0].mxu0
      %v3215 = vadd.f32 0.0, %v3214
      %v3216 = vpop.f32.mrb[0].mxu0
      %v3217 = vpop.f32.mrb[0].mxu0
      %v3218 = vadd.f32 0.0, %v3217
      %v3219 = vpop.f32.mrb[0].mxu0
      %3220 = vmatprep.mubr.bf16.mxu0 0
      %3221 = vmatmul.mubr.bf16.gmra.mrb[0].mxu0 %v3089
      %v3222 = vpop.f32.mrb[0].mxu0
      %v3223 = vadd.f32 0.0, %v3222
      %v3224 = vpop.f32.mrb[0].mxu0
      %v3225 = vpop.f32.mrb[0].mxu0
      %v3226 = vadd.f32 0.0, %v3225
      %v3227 = vpop.f32.mrb[0].mxu0
      %3228 = vmatprep.mubr.bf16.mxu0 0
      %3229 = vmatmul.mubr.bf16.gmra.mrb[0].mxu0 %v3092
      %v3230 = vpop.f32.mrb[0].mxu0
      %v3231 = vadd.f32 0.0, %v3230
      %v3232 = vpop.f32.mrb[0].mxu0
      %v3233 = vpop.f32.mrb[0].mxu0
      %v3234 = vadd.f32 0.0, %v3233
      %v3235 = vpop.f32.mrb[0].mxu0
      %3236 = vmatprep.mubr.bf16.mxu0 0
      %3237 = vmatmul.mubr.bf16.gmra.mrb[0].mxu0 %v3095
      %v3238 = vpop.f32.mrb[0].mxu0
      %v3239 = vadd.f32 0.0, %v3238
      %v3240 = vpop.f32.mrb[0].mxu0
      %v3241 = vpop.f32.mrb[0].mxu0
      %v3242 = vadd.f32 0.0, %v3241
      %v3243 = vpop.f32.mrb[0].mxu0
      %3244 = vmatprep.mubr.bf16.mxu0 0
      %3245 = vmatmul.mubr.bf16.gmra.mrb[0].mxu0 %v3098
      %v3246 = vpop.f32.mrb[0].mxu0
      %v3247 = vadd.f32 0.0, %v3246
      %v3248 = vpop.f32.mrb[0].mxu0
      %v3249 = vpop.f32.mrb[0].mxu0
      %v3250 = vadd.f32 0.0, %v3249
      %v3251 = vpop.f32.mrb[0].mxu0
      %3252 = vmatprep.mubr.bf16.mxu0 0
      %3253 = vmatmul.mubr.bf16.gmra.mrb[0].mxu0 %v3101
      %v3254 = vpop.f32.mrb[0].mxu0
      %v3255 = vadd.f32 0.0, %v3254
      %v3256 = vpop.f32.mrb[0].mxu0
      %v3257 = vpop.f32.mrb[0].mxu0
      %v3258 = vadd.f32 0.0, %v3257
      %v3259 = vpop.f32.mrb[0].mxu0
      %3260 = vmatprep.mubr.bf16.mxu0 0
      %3261 = vmatmul.mubr.bf16.gmra.mrb[0].mxu0 %v3104
      %v3262 = vpop.f32.mrb[0].mxu0
      %v3263 = vadd.f32 0.0, %v3262
      %v3264 = vpop.f32.mrb[0].mxu0
      %v3265 = vpop.f32.mrb[0].mxu0
      %v3266 = vadd.f32 0.0, %v3265
      %v3267 = vpop.f32.mrb[0].mxu0
      %3268 = vmatprep.mubr.bf16.mxu0 0
      %3269 = vmatmul.mubr.bf16.gmra.mrb[0].mxu0 %v3107
      %v3270 = vpop.f32.mrb[0].mxu0
      %v3271 = vadd.f32 0.0, %v3270
      %v3272 = vpop.f32.mrb[0].mxu0
      %v3273 = vpop.f32.mrb[0].mxu0
      %v3274 = vadd.f32 0.0, %v3273
      %v3275 = vpop.f32.mrb[0].mxu0
      %3276 = vdwg.mxu0
      %v3293 = vunpack.c.l.b16 %v3044
      %v3294 = vunpack.c.l.b16 %v3045
      %v3295 = vunpack.c.l.b16 %v3046
      %v3296 = vunpack.c.l.b16 %v3047
      %v3297 = vunpack.c.l.b16 %v3048
      %v3298 = vunpack.c.l.b16 %v3049
      %v3299 = vunpack.c.l.b16 %v3050
      %v3300 = vunpack.c.l.b16 %v3051
      %v3301 = vunpack.c.l.b16 %v3052
      %v3302 = vunpack.c.l.b16 %v3053
      %v3303 = vunpack.c.l.b16 %v3054
      %v3304 = vunpack.c.l.b16 %v3055
      %v3305 = vunpack.c.l.b16 %v3056
      %v3306 = vunpack.c.l.b16 %v3057
      %v3307 = vunpack.c.l.b16 %v3058
      %v3308 = vunpack.c.l.b16 %v3059
      %v3309 = vpack.c.b16 %v3294, %v3293
      %v3310 = vpack.c.b16 %v3296, %v3295
      %v3311 = vpack.c.b16 %v3298, %v3297
      %v3312 = vpack.c.b16 %v3300, %v3299
      %v3313 = vpack.c.b16 %v3302, %v3301
      %v3314 = vpack.c.b16 %v3304, %v3303
      %v3315 = vpack.c.b16 %v3306, %v3305
      %v3316 = vpack.c.b16 %v3308, %v3307
      %3325 = vmatprep.subr.bf16.mxu0 0
      %3326 = vmatpush1.bf16.msra.mxu0 %v3309
      %3327 = vmatprep.subr.bf16.mxu0 0
      %3328 = vmatpush1.bf16.msra.mxu0 %v3310
      %3329 = vmatprep.subr.bf16.mxu0 0
      %3330 = vmatpush1.bf16.msra.mxu0 %v3311
      %3331 = vmatprep.subr.bf16.mxu0 0
      %3332 = vmatpush1.bf16.msra.mxu0 %v3312
      %3333 = vmatprep.subr.bf16.mxu0 0
      %3334 = vmatpush1.bf16.msra.mxu0 %v3313
      %3335 = vmatprep.subr.bf16.mxu0 0
      %3336 = vmatpush1.bf16.msra.mxu0 %v3314
      %3337 = vmatprep.subr.bf16.mxu0 0
      %3338 = vmatpush1.bf16.msra.mxu0 %v3315
      %3339 = vmatprep.subr.bf16.mxu0 0
      %3340 = vmatpush1.bf16.msra.mxu0 %v3316
      %3341 = vmatprep.subr.bf16.mxu0 0
      %3342 = vmatpush1.bf16.msra.mxu0 0
      %3343 = vmatprep.subr.bf16.mxu0 0
      %3344 = vmatpush1.bf16.msra.mxu0 0
      %3345 = vmatprep.subr.bf16.mxu0 0
      %3346 = vmatpush1.bf16.msra.mxu0 0
      %3347 = vmatprep.subr.bf16.mxu0 0
      %3348 = vmatpush1.bf16.msra.mxu0 0
      %3349 = vmatprep.subr.bf16.mxu0 0
      %3350 = vmatpush1.bf16.msra.mxu0 0
      %3351 = vmatprep.subr.bf16.mxu0 0
      %3352 = vmatpush1.bf16.msra.mxu0 0
      %3353 = vmatprep.subr.bf16.mxu0 0
      %3354 = vmatpush1.bf16.msra.mxu0 0
      %3355 = vmatprep.subr.bf16.mxu0 0
      %3356 = vmatpush1.bf16.msra.mxu0 0
      %3357 = vmatprep.mubr.bf16.mxu0 0
      %3358 = vmatmul.mubr.bf16.gmra.mrb[0].mxu0 %v2916
      %v3359 = vpop.f32.mrb[0].mxu0
      %v3360 = vadd.f32 %v3215, %v3359
      %v3361 = vpop.f32.mrb[0].mxu0
      %v3362 = vpop.f32.mrb[0].mxu0
      %v3363 = vadd.f32 %v3218, %v3362
      %v3364 = vpop.f32.mrb[0].mxu0
      %3365 = vmatprep.mubr.bf16.mxu0 0
      %3366 = vmatmul.mubr.bf16.gmra.mrb[0].mxu0 %v2933
      %v3367 = vpop.f32.mrb[0].mxu0
      %v3368 = vadd.f32 %v3223, %v3367
      %v3369 = vpop.f32.mrb[0].mxu0
      %v3370 = vpop.f32.mrb[0].mxu0
      %v3371 = vadd.f32 %v3226, %v3370
      %v3372 = vpop.f32.mrb[0].mxu0
      %3373 = vmatprep.mubr.bf16.mxu0 0
      %3374 = vmatmul.mubr.bf16.gmra.mrb[0].mxu0 %v2950
      %v3375 = vpop.f32.mrb[0].mxu0
      %v3376 = vadd.f32 %v3231, %v3375
      %v3377 = vpop.f32.mrb[0].mxu0
      %v3378 = vpop.f32.mrb[0].mxu0
      %v3379 = vadd.f32 %v3234, %v3378
      %v3380 = vpop.f32.mrb[0].mxu0
      %3381 = vmatprep.mubr.bf16.mxu0 0
      %3382 = vmatmul.mubr.bf16.gmra.mrb[0].mxu0 %v2967
      %v3383 = vpop.f32.mrb[0].mxu0
      %v3384 = vadd.f32 %v3239, %v3383
      %v3385 = vpop.f32.mrb[0].mxu0
      %v3386 = vpop.f32.mrb[0].mxu0
      %v3387 = vadd.f32 %v3242, %v3386
      %v3388 = vpop.f32.mrb[0].mxu0
      %3389 = vmatprep.mubr.bf16.mxu0 0
      %3390 = vmatmul.mubr.bf16.gmra.mrb[0].mxu0 %v2984
      %v3391 = vpop.f32.mrb[0].mxu0
      %v3392 = vadd.f32 %v3247, %v3391
      %v3393 = vpop.f32.mrb[0].mxu0
      %v3394 = vpop.f32.mrb[0].mxu0
      %v3395 = vadd.f32 %v3250, %v3394
      %v3396 = vpop.f32.mrb[0].mxu0
      %3397 = vmatprep.mubr.bf16.mxu0 0
      %3398 = vmatmul.mubr.bf16.gmra.mrb[0].mxu0 %v3001
      %v3399 = vpop.f32.mrb[0].mxu0
      %v3400 = vadd.f32 %v3255, %v3399
      %v3401 = vpop.f32.mrb[0].mxu0
      %v3402 = vpop.f32.mrb[0].mxu0
      %v3403 = vadd.f32 %v3258, %v3402
      %v3404 = vpop.f32.mrb[0].mxu0
      %3405 = vmatprep.mubr.bf16.mxu0 0
      %3406 = vmatmul.mubr.bf16.gmra.mrb[0].mxu0 %v3018
      %v3407 = vpop.f32.mrb[0].mxu0
      %v3408 = vadd.f32 %v3263, %v3407
      %v3409 = vpop.f32.mrb[0].mxu0
      %v3410 = vpop.f32.mrb[0].mxu0
      %v3411 = vadd.f32 %v3266, %v3410
      %v3412 = vpop.f32.mrb[0].mxu0
      %3413 = vmatprep.mubr.bf16.mxu0 0
      %3414 = vmatmul.mubr.bf16.gmra.mrb[0].mxu0 %v3035
      %v3415 = vpop.f32.mrb[0].mxu0
      %v3416 = vadd.f32 %v3271, %v3415
      %v3417 = vpop.f32.mrb[0].mxu0
      %v3418 = vpop.f32.mrb[0].mxu0
      %v3419 = vadd.f32 %v3274, %v3418
      %v3420 = vpop.f32.mrb[0].mxu0
      %3421 = vdwg.mxu0
      %v3422 = vld [vmem:[%s2883 + $0x8] sm:$0x1f]
      %v3423 = vld [vmem:[%s2883 + $0x18] sm:$0x1f]
      %v3424 = vld [vmem:[%s2883 + $0x28] sm:$0x1f]
      %v3425 = vld [vmem:[%s2883 + $0x38] sm:$0x1f]
      %v3426 = vld [vmem:[%s2883 + $0x48] sm:$0x1f]
      %v3427 = vld [vmem:[%s2883 + $0x58] sm:$0x1f]
      %v3428 = vld [vmem:[%s2883 + $0x68] sm:$0x1f]
      %v3429 = vld [vmem:[%s2883 + $0x78] sm:$0x1f]
      %v3431 = vshrl.u32 %v3060, 16
      %v3433 = vrot.slane %v3431, 4
      %v3434 = vshll.u32 %v3060, 16
      %v3436 = vrot.slane %v3434, 5
      %v3437 = vor.u32 %v3433, %v3436
      %v3439 = vshrl.u32 %v3422, 16
      %v3441 = vrot.slane %v3439, 4
      %v3442 = vshll.u32 %v3422, 16
      %v3444 = vrot.slane %v3442, 5
      %v3445 = vor.u32 %v3441, %v3444
      %v3446 = vsel %vm1630, %v3437, %v3445
      %v3448 = vshrl.u32 %v3061, 16
      %v3450 = vrot.slane %v3448, 4
      %v3451 = vshll.u32 %v3061, 16
      %v3453 = vrot.slane %v3451, 5
      %v3454 = vor.u32 %v3450, %v3453
      %v3456 = vshrl.u32 %v3423, 16
      %v3458 = vrot.slane %v3456, 4
      %v3459 = vshll.u32 %v3423, 16
      %v3461 = vrot.slane %v3459, 5
      %v3462 = vor.u32 %v3458, %v3461
      %v3463 = vsel %vm1630, %v3454, %v3462
      %v3465 = vshrl.u32 %v3062, 16
      %v3467 = vrot.slane %v3465, 4
      %v3468 = vshll.u32 %v3062, 16
      %v3470 = vrot.slane %v3468, 5
      %v3471 = vor.u32 %v3467, %v3470
      %v3473 = vshrl.u32 %v3424, 16
      %v3475 = vrot.slane %v3473, 4
      %v3476 = vshll.u32 %v3424, 16
      %v3478 = vrot.slane %v3476, 5
      %v3479 = vor.u32 %v3475, %v3478
      %v3480 = vsel %vm1630, %v3471, %v3479
      %v3482 = vshrl.u32 %v3063, 16
      %v3484 = vrot.slane %v3482, 4
      %v3485 = vshll.u32 %v3063, 16
      %v3487 = vrot.slane %v3485, 5
      %v3488 = vor.u32 %v3484, %v3487
      %v3490 = vshrl.u32 %v3425, 16
      %v3492 = vrot.slane %v3490, 4
      %v3493 = vshll.u32 %v3425, 16
      %v3495 = vrot.slane %v3493, 5
      %v3496 = vor.u32 %v3492, %v3495
      %v3497 = vsel %vm1630, %v3488, %v3496
      %v3499 = vshrl.u32 %v3064, 16
      %v3501 = vrot.slane %v3499, 4
      %v3502 = vshll.u32 %v3064, 16
      %v3504 = vrot.slane %v3502, 5
      %v3505 = vor.u32 %v3501, %v3504
      %v3507 = vshrl.u32 %v3426, 16
      %v3509 = vrot.slane %v3507, 4
      %v3510 = vshll.u32 %v3426, 16
      %v3512 = vrot.slane %v3510, 5
      %v3513 = vor.u32 %v3509, %v3512
      %v3514 = vsel %vm1630, %v3505, %v3513
      %v3516 = vshrl.u32 %v3065, 16
      %v3518 = vrot.slane %v3516, 4
      %v3519 = vshll.u32 %v3065, 16
      %v3521 = vrot.slane %v3519, 5
      %v3522 = vor.u32 %v3518, %v3521
      %v3524 = vshrl.u32 %v3427, 16
      %v3526 = vrot.slane %v3524, 4
      %v3527 = vshll.u32 %v3427, 16
      %v3529 = vrot.slane %v3527, 5
      %v3530 = vor.u32 %v3526, %v3529
      %v3531 = vsel %vm1630, %v3522, %v3530
      %v3533 = vshrl.u32 %v3066, 16
      %v3535 = vrot.slane %v3533, 4
      %v3536 = vshll.u32 %v3066, 16
      %v3538 = vrot.slane %v3536, 5
      %v3539 = vor.u32 %v3535, %v3538
      %v3541 = vshrl.u32 %v3428, 16
      %v3543 = vrot.slane %v3541, 4
      %v3544 = vshll.u32 %v3428, 16
      %v3546 = vrot.slane %v3544, 5
      %v3547 = vor.u32 %v3543, %v3546
      %v3548 = vsel %vm1630, %v3539, %v3547
      %v3550 = vshrl.u32 %v3067, 16
      %v3552 = vrot.slane %v3550, 4
      %v3553 = vshll.u32 %v3067, 16
      %v3555 = vrot.slane %v3553, 5
      %v3556 = vor.u32 %v3552, %v3555
      %v3558 = vshrl.u32 %v3429, 16
      %v3560 = vrot.slane %v3558, 4
      %v3561 = vshll.u32 %v3429, 16
      %v3563 = vrot.slane %v3561, 5
      %v3564 = vor.u32 %v3560, %v3563
      %v3565 = vsel %vm1630, %v3556, %v3564
      %v3574 = vld [vmem:[%s2 + $0x200] sm:$0xf]
      %v3575 = vld [vmem:[%s2 + $0x204] sm:$0xf]
      %v3576 = vld [vmem:[%s2 + $0x208] sm:$0xf]
      %v3577 = vld [vmem:[%s2 + $0x20c] sm:$0xf]
      %v3578 = vld [vmem:[%s2 + $0x210] sm:$0xf]
      %v3579 = vld [vmem:[%s2 + $0x214] sm:$0xf]
      %v3580 = vld [vmem:[%s2 + $0x218] sm:$0xf]
      %v3581 = vld [vmem:[%s2 + $0x21c] sm:$0xf]
      %v3582 = vld [vmem:[%s2 + $0x220] sm:$0xf]
      %v3583 = vld [vmem:[%s2 + $0x224] sm:$0xf]
      %v3584 = vld [vmem:[%s2 + $0x228] sm:$0xf]
      %v3585 = vld [vmem:[%s2 + $0x22c] sm:$0xf]
      %v3586 = vld [vmem:[%s2 + $0x230] sm:$0xf]
      %v3587 = vld [vmem:[%s2 + $0x234] sm:$0xf]
      %v3588 = vld [vmem:[%s2 + $0x238] sm:$0xf]
      %v3589 = vld [vmem:[%s2 + $0x23c] sm:$0xf]
      %v3606 = vunpack.c.l.b16 %v3574
      %v3607 = vunpack.c.l.b16 %v3575
      %v3608 = vunpack.c.l.b16 %v3576
      %v3609 = vunpack.c.l.b16 %v3577
      %v3610 = vunpack.c.l.b16 %v3578
      %v3611 = vunpack.c.l.b16 %v3579
      %v3612 = vunpack.c.l.b16 %v3580
      %v3613 = vunpack.c.l.b16 %v3581
      %v3614 = vunpack.c.l.b16 %v3582
      %v3615 = vunpack.c.l.b16 %v3583
      %v3616 = vunpack.c.l.b16 %v3584
      %v3617 = vunpack.c.l.b16 %v3585
      %v3618 = vunpack.c.l.b16 %v3586
      %v3619 = vunpack.c.l.b16 %v3587
      %v3620 = vunpack.c.l.b16 %v3588
      %v3621 = vunpack.c.l.b16 %v3589
      %v3622 = vpack.c.b16 %v3607, %v3606
      %v3623 = vpack.c.b16 %v3609, %v3608
      %v3624 = vpack.c.b16 %v3611, %v3610
      %v3625 = vpack.c.b16 %v3613, %v3612
      %v3626 = vpack.c.b16 %v3615, %v3614
      %v3627 = vpack.c.b16 %v3617, %v3616
      %v3628 = vpack.c.b16 %v3619, %v3618
      %v3629 = vpack.c.b16 %v3621, %v3620
      %3638 = vmatprep.subr.bf16.mxu0 0
      %3639 = vmatpush1.bf16.msra.mxu0 %v3622
      %3640 = vmatprep.subr.bf16.mxu0 0
      %3641 = vmatpush1.bf16.msra.mxu0 %v3623
      %3642 = vmatprep.subr.bf16.mxu0 0
      %3643 = vmatpush1.bf16.msra.mxu0 %v3624
      %3644 = vmatprep.subr.bf16.mxu0 0
      %3645 = vmatpush1.bf16.msra.mxu0 %v3625
      %3646 = vmatprep.subr.bf16.mxu0 0
      %3647 = vmatpush1.bf16.msra.mxu0 %v3626
      %3648 = vmatprep.subr.bf16.mxu0 0
      %3649 = vmatpush1.bf16.msra.mxu0 %v3627
      %3650 = vmatprep.subr.bf16.mxu0 0
      %3651 = vmatpush1.bf16.msra.mxu0 %v3628
      %3652 = vmatprep.subr.bf16.mxu0 0
      %3653 = vmatpush1.bf16.msra.mxu0 %v3629
      %3654 = vmatprep.subr.bf16.mxu0 0
      %3655 = vmatpush1.bf16.msra.mxu0 0
      %3656 = vmatprep.subr.bf16.mxu0 0
      %3657 = vmatpush1.bf16.msra.mxu0 0
      %3658 = vmatprep.subr.bf16.mxu0 0
      %3659 = vmatpush1.bf16.msra.mxu0 0
      %3660 = vmatprep.subr.bf16.mxu0 0
      %3661 = vmatpush1.bf16.msra.mxu0 0
      %3662 = vmatprep.subr.bf16.mxu0 0
      %3663 = vmatpush1.bf16.msra.mxu0 0
      %3664 = vmatprep.subr.bf16.mxu0 0
      %3665 = vmatpush1.bf16.msra.mxu0 0
      %3666 = vmatprep.subr.bf16.mxu0 0
      %3667 = vmatpush1.bf16.msra.mxu0 0
      %3668 = vmatprep.subr.bf16.mxu0 0
      %3669 = vmatpush1.bf16.msra.mxu0 0
      %3670 = vmatprep.mubr.bf16.mxu0 0
      %3671 = vmatmul.mubr.bf16.gmra.mrb[0].mxu0 %v3446
      %v3672 = vpop.f32.mrb[0].mxu0
      %v3673 = vadd.f32 0.0, %v3672
      %v3674 = vpop.f32.mrb[0].mxu0
      %v3675 = vpop.f32.mrb[0].mxu0
      %v3676 = vadd.f32 0.0, %v3675
      %v3677 = vpop.f32.mrb[0].mxu0
      %3678 = vmatprep.mubr.bf16.mxu0 0
      %3679 = vmatmul.mubr.bf16.gmra.mrb[0].mxu0 %v3463
      %v3680 = vpop.f32.mrb[0].mxu0
      %v3681 = vadd.f32 0.0, %v3680
      %v3682 = vpop.f32.mrb[0].mxu0
      %v3683 = vpop.f32.mrb[0].mxu0
      %v3684 = vadd.f32 0.0, %v3683
      %v3685 = vpop.f32.mrb[0].mxu0
      %3686 = vmatprep.mubr.bf16.mxu0 0
      %3687 = vmatmul.mubr.bf16.gmra.mrb[0].mxu0 %v3480
      %v3688 = vpop.f32.mrb[0].mxu0
      %v3689 = vadd.f32 0.0, %v3688
      %v3690 = vpop.f32.mrb[0].mxu0
      %v3691 = vpop.f32.mrb[0].mxu0
      %v3692 = vadd.f32 0.0, %v3691
      %v3693 = vpop.f32.mrb[0].mxu0
      %3694 = vmatprep.mubr.bf16.mxu0 0
      %3695 = vmatmul.mubr.bf16.gmra.mrb[0].mxu0 %v3497
      %v3696 = vpop.f32.mrb[0].mxu0
      %v3697 = vadd.f32 0.0, %v3696
      %v3698 = vpop.f32.mrb[0].mxu0
      %v3699 = vpop.f32.mrb[0].mxu0
      %v3700 = vadd.f32 0.0, %v3699
      %v3701 = vpop.f32.mrb[0].mxu0
      %3702 = vmatprep.mubr.bf16.mxu0 0
      %3703 = vmatmul.mubr.bf16.gmra.mrb[0].mxu0 %v3514
      %v3704 = vpop.f32.mrb[0].mxu0
      %v3705 = vadd.f32 0.0, %v3704
      %v3706 = vpop.f32.mrb[0].mxu0
      %v3707 = vpop.f32.mrb[0].mxu0
      %v3708 = vadd.f32 0.0, %v3707
      %v3709 = vpop.f32.mrb[0].mxu0
      %3710 = vmatprep.mubr.bf16.mxu0 0
      %3711 = vmatmul.mubr.bf16.gmra.mrb[0].mxu0 %v3531
      %v3712 = vpop.f32.mrb[0].mxu0
      %v3713 = vadd.f32 0.0, %v3712
      %v3714 = vpop.f32.mrb[0].mxu0
      %v3715 = vpop.f32.mrb[0].mxu0
      %v3716 = vadd.f32 0.0, %v3715
      %v3717 = vpop.f32.mrb[0].mxu0
      %3718 = vmatprep.mubr.bf16.mxu0 0
      %3719 = vmatmul.mubr.bf16.gmra.mrb[0].mxu0 %v3548
      %v3720 = vpop.f32.mrb[0].mxu0
      %v3721 = vadd.f32 0.0, %v3720
      %v3722 = vpop.f32.mrb[0].mxu0
      %v3723 = vpop.f32.mrb[0].mxu0
      %v3724 = vadd.f32 0.0, %v3723
      %v3725 = vpop.f32.mrb[0].mxu0
      %3726 = vmatprep.mubr.bf16.mxu0 0
      %3727 = vmatmul.mubr.bf16.gmra.mrb[0].mxu0 %v3565
      %v3728 = vpop.f32.mrb[0].mxu0
      %v3729 = vadd.f32 0.0, %v3728
      %v3730 = vpop.f32.mrb[0].mxu0
      %v3731 = vpop.f32.mrb[0].mxu0
      %v3732 = vadd.f32 0.0, %v3731
      %v3733 = vpop.f32.mrb[0].mxu0
      %3734 = vdwg.mxu0
      %v3735 = vadd.f32 %v3360, %v3673
      %v3736 = vadd.f32 %v3363, %v3676
      %v3737 = vadd.f32 %v3368, %v3681
      %v3738 = vadd.f32 %v3371, %v3684
      %v3739 = vadd.f32 %v3376, %v3689
      %v3740 = vadd.f32 %v3379, %v3692
      %v3741 = vadd.f32 %v3384, %v3697
      %v3742 = vadd.f32 %v3387, %v3700
      %v3743 = vadd.f32 %v3392, %v3705
      %v3744 = vadd.f32 %v3395, %v3708
      %v3745 = vadd.f32 %v3400, %v3713
      %v3746 = vadd.f32 %v3403, %v3716
      %v3747 = vadd.f32 %v3408, %v3721
      %v3748 = vadd.f32 %v3411, %v3724
      %v3749 = vadd.f32 %v3416, %v3729
      %v3750 = vadd.f32 %v3419, %v3732
      %v3751 = vld [vmem:[#allocation3] sm:$0xff]
      %v3752 = vld [vmem:[#allocation3 + $0x8] sm:$0xff]
      %v3753 = vld [vmem:[#allocation3 + $0x10] sm:$0xff]
      %v3754 = vld [vmem:[#allocation3 + $0x18] sm:$0xff]
      %v3755 = vld [vmem:[#allocation3 + $0x20] sm:$0xff]
      %v3756 = vld [vmem:[#allocation3 + $0x28] sm:$0xff]
      %v3757 = vld [vmem:[#allocation3 + $0x30] sm:$0xff]
      %v3758 = vld [vmem:[#allocation3 + $0x38] sm:$0xff]
      %v3759 = vld [vmem:[#allocation3 + $0x40] sm:$0xff]
      %v3760 = vld [vmem:[#allocation3 + $0x48] sm:$0xff]
      %v3761 = vld [vmem:[#allocation3 + $0x50] sm:$0xff]
      %v3762 = vld [vmem:[#allocation3 + $0x58] sm:$0xff]
      %v3763 = vld [vmem:[#allocation3 + $0x60] sm:$0xff]
      %v3764 = vld [vmem:[#allocation3 + $0x68] sm:$0xff]
      %v3765 = vld [vmem:[#allocation3 + $0x70] sm:$0xff]
      %v3766 = vld [vmem:[#allocation3 + $0x78] sm:$0xff]
      %v3767 = vadd.f32 %v3751, %v3735
      %v3768 = vadd.f32 %v3752, %v3736
      %v3769 = vadd.f32 %v3753, %v3737
      %v3770 = vadd.f32 %v3754, %v3738
      %v3771 = vadd.f32 %v3755, %v3739
      %v3772 = vadd.f32 %v3756, %v3740
      %v3773 = vadd.f32 %v3757, %v3741
      %v3774 = vadd.f32 %v3758, %v3742
      %v3775 = vadd.f32 %v3759, %v3743
      %v3776 = vadd.f32 %v3760, %v3744
      %v3777 = vadd.f32 %v3761, %v3745
      %v3778 = vadd.f32 %v3762, %v3746
      %v3779 = vadd.f32 %v3763, %v3747
      %v3780 = vadd.f32 %v3764, %v3748
      %v3781 = vadd.f32 %v3765, %v3749
      %v3782 = vadd.f32 %v3766, %v3750
      %3783 = vst [vmem:[#allocation3] sm:$0xff] %v3767
      %3784 = vst [vmem:[#allocation3 + $0x8] sm:$0xff] %v3768
      %3785 = vst [vmem:[#allocation3 + $0x10] sm:$0xff] %v3769
      %3786 = vst [vmem:[#allocation3 + $0x18] sm:$0xff] %v3770
      %3787 = vst [vmem:[#allocation3 + $0x20] sm:$0xff] %v3771
      %3788 = vst [vmem:[#allocation3 + $0x28] sm:$0xff] %v3772
      %3789 = vst [vmem:[#allocation3 + $0x30] sm:$0xff] %v3773
      %3790 = vst [vmem:[#allocation3 + $0x38] sm:$0xff] %v3774
      %3791 = vst [vmem:[#allocation3 + $0x40] sm:$0xff] %v3775
      %3792 = vst [vmem:[#allocation3 + $0x48] sm:$0xff] %v3776
      %3793 = vst [vmem:[#allocation3 + $0x50] sm:$0xff] %v3777
      %3794 = vst [vmem:[#allocation3 + $0x58] sm:$0xff] %v3778
      %3795 = vst [vmem:[#allocation3 + $0x60] sm:$0xff] %v3779
      %3796 = vst [vmem:[#allocation3 + $0x68] sm:$0xff] %v3780
      %3797 = vst [vmem:[#allocation3 + $0x70] sm:$0xff] %v3781
      %3798 = vst [vmem:[#allocation3 + $0x78] sm:$0xff] %v3782
      %v3799 = vld [vmem:[#allocation3] sm:$0xff]
      %v3800 = vld [vmem:[#allocation3 + $0x8] sm:$0xff]
      %v3801 = vld [vmem:[#allocation3 + $0x10] sm:$0xff]
      %v3802 = vld [vmem:[#allocation3 + $0x18] sm:$0xff]
      %v3803 = vld [vmem:[#allocation3 + $0x20] sm:$0xff]
      %v3804 = vld [vmem:[#allocation3 + $0x28] sm:$0xff]
      %v3805 = vld [vmem:[#allocation3 + $0x30] sm:$0xff]
      %v3806 = vld [vmem:[#allocation3 + $0x38] sm:$0xff]
      %v3807 = vld [vmem:[#allocation3 + $0x40] sm:$0xff]
      %v3808 = vld [vmem:[#allocation3 + $0x48] sm:$0xff]
      %v3809 = vld [vmem:[#allocation3 + $0x50] sm:$0xff]
      %v3810 = vld [vmem:[#allocation3 + $0x58] sm:$0xff]
      %v3811 = vld [vmem:[#allocation3 + $0x60] sm:$0xff]
      %v3812 = vld [vmem:[#allocation3 + $0x68] sm:$0xff]
      %v3813 = vld [vmem:[#allocation3 + $0x70] sm:$0xff]
      %v3814 = vld [vmem:[#allocation3 + $0x78] sm:$0xff]
      %vm3815 = vcmp.ge.f32.partialorder %v3799, 0.0
      %vm3816 = vcmp.ge.f32.partialorder %v3800, 0.0
      %vm3817 = vcmp.ge.f32.partialorder %v3801, 0.0
      %vm3818 = vcmp.ge.f32.partialorder %v3802, 0.0
      %vm3819 = vcmp.ge.f32.partialorder %v3803, 0.0
      %vm3820 = vcmp.ge.f32.partialorder %v3804, 0.0
      %vm3821 = vcmp.ge.f32.partialorder %v3805, 0.0
      %vm3822 = vcmp.ge.f32.partialorder %v3806, 0.0
      %vm3823 = vcmp.ge.f32.partialorder %v3807, 0.0
      %vm3824 = vcmp.ge.f32.partialorder %v3808, 0.0
      %vm3825 = vcmp.ge.f32.partialorder %v3809, 0.0
      %vm3826 = vcmp.ge.f32.partialorder %v3810, 0.0
      %vm3827 = vcmp.ge.f32.partialorder %v3811, 0.0
      %vm3828 = vcmp.ge.f32.partialorder %v3812, 0.0
      %vm3829 = vcmp.ge.f32.partialorder %v3813, 0.0
      %vm3830 = vcmp.ge.f32.partialorder %v3814, 0.0
      %v3831 = vmul.f32 %v3799, 0.2
      %v3832 = vmul.f32 %v3800, 0.2
      %v3833 = vmul.f32 %v3801, 0.2
      %v3834 = vmul.f32 %v3802, 0.2
      %v3835 = vmul.f32 %v3803, 0.2
      %v3836 = vmul.f32 %v3804, 0.2
      %v3837 = vmul.f32 %v3805, 0.2
      %v3838 = vmul.f32 %v3806, 0.2
      %v3839 = vmul.f32 %v3807, 0.2
      %v3840 = vmul.f32 %v3808, 0.2
      %v3841 = vmul.f32 %v3809, 0.2
      %v3842 = vmul.f32 %v3810, 0.2
      %v3843 = vmul.f32 %v3811, 0.2
      %v3844 = vmul.f32 %v3812, 0.2
      %v3845 = vmul.f32 %v3813, 0.2
      %v3846 = vmul.f32 %v3814, 0.2
      %v3847 = vsel %vm3815, %v3799, %v3831
      %v3848 = vsel %vm3816, %v3800, %v3832
      %v3849 = vsel %vm3817, %v3801, %v3833
      %v3850 = vsel %vm3818, %v3802, %v3834
      %v3851 = vsel %vm3819, %v3803, %v3835
      %v3852 = vsel %vm3820, %v3804, %v3836
      %v3853 = vsel %vm3821, %v3805, %v3837
      %v3854 = vsel %vm3822, %v3806, %v3838
      %v3855 = vsel %vm3823, %v3807, %v3839
      %v3856 = vsel %vm3824, %v3808, %v3840
      %v3857 = vsel %vm3825, %v3809, %v3841
      %v3858 = vsel %vm3826, %v3810, %v3842
      %v3859 = vsel %vm3827, %v3811, %v3843
      %v3860 = vsel %vm3828, %v3812, %v3844
      %v3861 = vsel %vm3829, %v3813, %v3845
      %v3862 = vsel %vm3830, %v3814, %v3846
      %v3863 = vpack.c.bf16 %v3848, %v3847
      %v3864 = vpack.c.bf16 %v3850, %v3849
      %v3865 = vpack.c.bf16 %v3852, %v3851
      %v3866 = vpack.c.bf16 %v3854, %v3853
      %v3867 = vpack.c.bf16 %v3856, %v3855
      %v3868 = vpack.c.bf16 %v3858, %v3857
      %v3869 = vpack.c.bf16 %v3860, %v3859
      %v3870 = vpack.c.bf16 %v3862, %v3861
      %v3871 = vld [vmem:[%s3] sm:$0xff]
      %v3872 = vld [vmem:[%s3 + $0x8] sm:$0xff]
      %v3873 = vld [vmem:[%s3 + $0x10] sm:$0xff]
      %v3874 = vld [vmem:[%s3 + $0x18] sm:$0xff]
      %v3875 = vld [vmem:[%s3 + $0x20] sm:$0xff]
      %v3876 = vld [vmem:[%s3 + $0x28] sm:$0xff]
      %v3877 = vld [vmem:[%s3 + $0x30] sm:$0xff]
      %v3878 = vld [vmem:[%s3 + $0x38] sm:$0xff]
      %v3879 = vld [vmem:[%s3 + $0x40] sm:$0xff]
      %v3880 = vld [vmem:[%s3 + $0x48] sm:$0xff]
      %v3881 = vld [vmem:[%s3 + $0x50] sm:$0xff]
      %v3882 = vld [vmem:[%s3 + $0x58] sm:$0xff]
      %v3883 = vld [vmem:[%s3 + $0x60] sm:$0xff]
      %v3884 = vld [vmem:[%s3 + $0x68] sm:$0xff]
      %v3885 = vld [vmem:[%s3 + $0x70] sm:$0xff]
      %v3886 = vld [vmem:[%s3 + $0x78] sm:$0xff]
      %v3887 = vld [vmem:[%s247] sm:$0xff]
      %v3888 = vld [vmem:[%s247 + $0x8] sm:$0xff]
      %v3889 = vld [vmem:[%s247 + $0x10] sm:$0xff]
      %v3890 = vld [vmem:[%s247 + $0x18] sm:$0xff]
      %v3891 = vld [vmem:[%s247 + $0x20] sm:$0xff]
      %v3892 = vld [vmem:[%s247 + $0x28] sm:$0xff]
      %v3893 = vld [vmem:[%s247 + $0x30] sm:$0xff]
      %v3894 = vld [vmem:[%s247 + $0x38] sm:$0xff]
      %v3895 = vld [vmem:[%s247 + $0x40] sm:$0xff]
      %v3896 = vld [vmem:[%s247 + $0x48] sm:$0xff]
      %v3897 = vld [vmem:[%s247 + $0x50] sm:$0xff]
      %v3898 = vld [vmem:[%s247 + $0x58] sm:$0xff]
      %v3899 = vld [vmem:[%s247 + $0x60] sm:$0xff]
      %v3900 = vld [vmem:[%s247 + $0x68] sm:$0xff]
      %v3901 = vld [vmem:[%s247 + $0x70] sm:$0xff]
      %v3902 = vld [vmem:[%s247 + $0x78] sm:$0xff]
      %v3903 = vunpack.c.l.bf16 %v3887
      %v3904 = vunpack.c.h.bf16 %v3887
      %v3905 = vunpack.c.l.bf16 %v3888
      %v3906 = vunpack.c.h.bf16 %v3888
      %v3907 = vunpack.c.l.bf16 %v3889
      %v3908 = vunpack.c.h.bf16 %v3889
      %v3909 = vunpack.c.l.bf16 %v3890
      %v3910 = vunpack.c.h.bf16 %v3890
      %v3911 = vunpack.c.l.bf16 %v3891
      %v3912 = vunpack.c.h.bf16 %v3891
      %v3913 = vunpack.c.l.bf16 %v3892
      %v3914 = vunpack.c.h.bf16 %v3892
      %v3915 = vunpack.c.l.bf16 %v3893
      %v3916 = vunpack.c.h.bf16 %v3893
      %v3917 = vunpack.c.l.bf16 %v3894
      %v3918 = vunpack.c.h.bf16 %v3894
      %v3919 = vunpack.c.l.bf16 %v3895
      %v3920 = vunpack.c.h.bf16 %v3895
      %v3921 = vunpack.c.l.bf16 %v3896
      %v3922 = vunpack.c.h.bf16 %v3896
      %v3923 = vunpack.c.l.bf16 %v3897
      %v3924 = vunpack.c.h.bf16 %v3897
      %v3925 = vunpack.c.l.bf16 %v3898
      %v3926 = vunpack.c.h.bf16 %v3898
      %v3927 = vunpack.c.l.bf16 %v3899
      %v3928 = vunpack.c.h.bf16 %v3899
      %v3929 = vunpack.c.l.bf16 %v3900
      %v3930 = vunpack.c.h.bf16 %v3900
      %v3931 = vunpack.c.l.bf16 %v3901
      %v3932 = vunpack.c.h.bf16 %v3901
      %v3933 = vunpack.c.l.bf16 %v3902
      %v3934 = vunpack.c.h.bf16 %v3902
      %v3951 = vunpack.c.l.b16 %v3871
      %v3952 = vunpack.c.h.b16 %v3871
      %v3953 = vunpack.c.l.b16 %v3872
      %v3954 = vunpack.c.h.b16 %v3872
      %v3955 = vunpack.c.l.b16 %v3873
      %v3956 = vunpack.c.h.b16 %v3873
      %v3957 = vunpack.c.l.b16 %v3874
      %v3958 = vunpack.c.h.b16 %v3874
      %v3959 = vunpack.c.l.b16 %v3875
      %v3960 = vunpack.c.h.b16 %v3875
      %v3961 = vunpack.c.l.b16 %v3876
      %v3962 = vunpack.c.h.b16 %v3876
      %v3963 = vunpack.c.l.b16 %v3877
      %v3964 = vunpack.c.h.b16 %v3877
      %v3965 = vunpack.c.l.b16 %v3878
      %v3966 = vunpack.c.h.b16 %v3878
      %v3967 = vunpack.c.l.b16 %v3879
      %v3968 = vunpack.c.h.b16 %v3879
      %v3969 = vunpack.c.l.b16 %v3880
      %v3970 = vunpack.c.h.b16 %v3880
      %v3971 = vunpack.c.l.b16 %v3881
      %v3972 = vunpack.c.h.b16 %v3881
      %v3973 = vunpack.c.l.b16 %v3882
      %v3974 = vunpack.c.h.b16 %v3882
      %v3975 = vunpack.c.l.b16 %v3883
      %v3976 = vunpack.c.h.b16 %v3883
      %v3977 = vunpack.c.l.b16 %v3884
      %v3978 = vunpack.c.h.b16 %v3884
      %v3979 = vunpack.c.l.b16 %v3885
      %v3980 = vunpack.c.h.b16 %v3885
      %v3981 = vunpack.c.l.b16 %v3886
      %v3982 = vunpack.c.h.b16 %v3886
      %v3983 = vpack.c.b16 %v3953, %v3951
      %v3984 = vpack.c.b16 %v3954, %v3952
      %v3985 = vpack.c.b16 %v3957, %v3955
      %v3986 = vpack.c.b16 %v3958, %v3956
      %v3987 = vpack.c.b16 %v3961, %v3959
      %v3988 = vpack.c.b16 %v3962, %v3960
      %v3989 = vpack.c.b16 %v3965, %v3963
      %v3990 = vpack.c.b16 %v3966, %v3964
      %v3991 = vpack.c.b16 %v3969, %v3967
      %v3992 = vpack.c.b16 %v3970, %v3968
      %v3993 = vpack.c.b16 %v3973, %v3971
      %v3994 = vpack.c.b16 %v3974, %v3972
      %v3995 = vpack.c.b16 %v3977, %v3975
      %v3996 = vpack.c.b16 %v3978, %v3976
      %v3997 = vpack.c.b16 %v3981, %v3979
      %v3998 = vpack.c.b16 %v3982, %v3980
      %4015 = vmatprep.subr.bf16.mxu0 %v3984
      %4016 = vmatpush1.bf16.msra.mxu0 %v3983
      %4017 = vmatprep.subr.bf16.mxu0 %v3986
      %4018 = vmatpush1.bf16.msra.mxu0 %v3985
      %4019 = vmatprep.subr.bf16.mxu0 %v3988
      %4020 = vmatpush1.bf16.msra.mxu0 %v3987
      %4021 = vmatprep.subr.bf16.mxu0 %v3990
      %4022 = vmatpush1.bf16.msra.mxu0 %v3989
      %4023 = vmatprep.subr.bf16.mxu0 %v3992
      %4024 = vmatpush1.bf16.msra.mxu0 %v3991
      %4025 = vmatprep.subr.bf16.mxu0 %v3994
      %4026 = vmatpush1.bf16.msra.mxu0 %v3993
      %4027 = vmatprep.subr.bf16.mxu0 %v3996
      %4028 = vmatpush1.bf16.msra.mxu0 %v3995
      %4029 = vmatprep.subr.bf16.mxu0 %v3998
      %4030 = vmatpush1.bf16.msra.mxu0 %v3997
      %4031 = vmatprep.subr.bf16.mxu0 0
      %4032 = vmatpush1.bf16.msra.mxu0 0
      %4033 = vmatprep.subr.bf16.mxu0 0
      %4034 = vmatpush1.bf16.msra.mxu0 0
      %4035 = vmatprep.subr.bf16.mxu0 0
      %4036 = vmatpush1.bf16.msra.mxu0 0
      %4037 = vmatprep.subr.bf16.mxu0 0
      %4038 = vmatpush1.bf16.msra.mxu0 0
      %4039 = vmatprep.subr.bf16.mxu0 0
      %4040 = vmatpush1.bf16.msra.mxu0 0
      %4041 = vmatprep.subr.bf16.mxu0 0
      %4042 = vmatpush1.bf16.msra.mxu0 0
      %4043 = vmatprep.subr.bf16.mxu0 0
      %4044 = vmatpush1.bf16.msra.mxu0 0
      %4045 = vmatprep.subr.bf16.mxu0 0
      %4046 = vmatpush1.bf16.msra.mxu0 0
      %4047 = vmatprep.mubr.bf16.mxu0 0
      %4048 = vmatmul.mubr.bf16.gmra.mrb[0].mxu0 %v3863
      %v4049 = vpop.f32.mrb[0].mxu0
      %v4050 = vadd.f32 %v3903, %v4049
      %v4051 = vpop.f32.mrb[0].mxu0
      %v4052 = vadd.f32 %v3904, %v4051
      %v4053 = vpop.f32.mrb[0].mxu0
      %v4054 = vadd.f32 %v3905, %v4053
      %v4055 = vpop.f32.mrb[0].mxu0
      %v4056 = vadd.f32 %v3906, %v4055
      %4057 = vmatprep.mubr.bf16.mxu0 0
      %4058 = vmatmul.mubr.bf16.gmra.mrb[0].mxu0 %v3864
      %v4059 = vpop.f32.mrb[0].mxu0
      %v4060 = vadd.f32 %v3907, %v4059
      %v4061 = vpop.f32.mrb[0].mxu0
      %v4062 = vadd.f32 %v3908, %v4061
      %v4063 = vpop.f32.mrb[0].mxu0
      %v4064 = vadd.f32 %v3909, %v4063
      %v4065 = vpop.f32.mrb[0].mxu0
      %v4066 = vadd.f32 %v3910, %v4065
      %4067 = vmatprep.mubr.bf16.mxu0 0
      %4068 = vmatmul.mubr.bf16.gmra.mrb[0].mxu0 %v3865
      %v4069 = vpop.f32.mrb[0].mxu0
      %v4070 = vadd.f32 %v3911, %v4069
      %v4071 = vpop.f32.mrb[0].mxu0
      %v4072 = vadd.f32 %v3912, %v4071
      %v4073 = vpop.f32.mrb[0].mxu0
      %v4074 = vadd.f32 %v3913, %v4073
      %v4075 = vpop.f32.mrb[0].mxu0
      %v4076 = vadd.f32 %v3914, %v4075
      %4077 = vmatprep.mubr.bf16.mxu0 0
      %4078 = vmatmul.mubr.bf16.gmra.mrb[0].mxu0 %v3866
      %v4079 = vpop.f32.mrb[0].mxu0
      %v4080 = vadd.f32 %v3915, %v4079
      %v4081 = vpop.f32.mrb[0].mxu0
      %v4082 = vadd.f32 %v3916, %v4081
      %v4083 = vpop.f32.mrb[0].mxu0
      %v4084 = vadd.f32 %v3917, %v4083
      %v4085 = vpop.f32.mrb[0].mxu0
      %v4086 = vadd.f32 %v3918, %v4085
      %4087 = vmatprep.mubr.bf16.mxu0 0
      %4088 = vmatmul.mubr.bf16.gmra.mrb[0].mxu0 %v3867
      %v4089 = vpop.f32.mrb[0].mxu0
      %v4090 = vadd.f32 %v3919, %v4089
      %v4091 = vpop.f32.mrb[0].mxu0
      %v4092 = vadd.f32 %v3920, %v4091
      %v4093 = vpop.f32.mrb[0].mxu0
      %v4094 = vadd.f32 %v3921, %v4093
      %v4095 = vpop.f32.mrb[0].mxu0
      %v4096 = vadd.f32 %v3922, %v4095
      %4097 = vmatprep.mubr.bf16.mxu0 0
      %4098 = vmatmul.mubr.bf16.gmra.mrb[0].mxu0 %v3868
      %v4099 = vpop.f32.mrb[0].mxu0
      %v4100 = vadd.f32 %v3923, %v4099
      %v4101 = vpop.f32.mrb[0].mxu0
      %v4102 = vadd.f32 %v3924, %v4101
      %v4103 = vpop.f32.mrb[0].mxu0
      %v4104 = vadd.f32 %v3925, %v4103
      %v4105 = vpop.f32.mrb[0].mxu0
      %v4106 = vadd.f32 %v3926, %v4105
      %4107 = vmatprep.mubr.bf16.mxu0 0
      %4108 = vmatmul.mubr.bf16.gmra.mrb[0].mxu0 %v3869
      %v4109 = vpop.f32.mrb[0].mxu0
      %v4110 = vadd.f32 %v3927, %v4109
      %v4111 = vpop.f32.mrb[0].mxu0
      %v4112 = vadd.f32 %v3928, %v4111
      %v4113 = vpop.f32.mrb[0].mxu0
      %v4114 = vadd.f32 %v3929, %v4113
      %v4115 = vpop.f32.mrb[0].mxu0
      %v4116 = vadd.f32 %v3930, %v4115
      %4117 = vmatprep.mubr.bf16.mxu0 0
      %4118 = vmatmul.mubr.bf16.gmra.mrb[0].mxu0 %v3870
      %v4119 = vpop.f32.mrb[0].mxu0
      %v4120 = vadd.f32 %v3931, %v4119
      %v4121 = vpop.f32.mrb[0].mxu0
      %v4122 = vadd.f32 %v3932, %v4121
      %v4123 = vpop.f32.mrb[0].mxu0
      %v4124 = vadd.f32 %v3933, %v4123
      %v4125 = vpop.f32.mrb[0].mxu0
      %v4126 = vadd.f32 %v3934, %v4125
      %4127 = vdwg.mxu0
      %v4128 = vpack.c.bf16 %v4054, %v4050
      %v4129 = vpack.c.bf16 %v4056, %v4052
      %v4130 = vpack.c.bf16 %v4064, %v4060
      %v4131 = vpack.c.bf16 %v4066, %v4062
      %v4132 = vpack.c.bf16 %v4074, %v4070
      %v4133 = vpack.c.bf16 %v4076, %v4072
      %v4134 = vpack.c.bf16 %v4084, %v4080
      %v4135 = vpack.c.bf16 %v4086, %v4082
      %v4136 = vpack.c.bf16 %v4094, %v4090
      %v4137 = vpack.c.bf16 %v4096, %v4092
      %v4138 = vpack.c.bf16 %v4104, %v4100
      %v4139 = vpack.c.bf16 %v4106, %v4102
      %v4140 = vpack.c.bf16 %v4114, %v4110
      %v4141 = vpack.c.bf16 %v4116, %v4112
      %v4142 = vpack.c.bf16 %v4124, %v4120
      %v4143 = vpack.c.bf16 %v4126, %v4122
      %v4160 = vunpack.c.l.b16 %v4128
      %v4161 = vunpack.c.l.b16 %v4129
      %v4162 = vunpack.c.h.b16 %v4128
      %v4163 = vunpack.c.h.b16 %v4129
      %v4164 = vunpack.c.l.b16 %v4130
      %v4165 = vunpack.c.l.b16 %v4131
      %v4166 = vunpack.c.h.b16 %v4130
      %v4167 = vunpack.c.h.b16 %v4131
      %v4168 = vunpack.c.l.b16 %v4132
      %v4169 = vunpack.c.l.b16 %v4133
      %v4170 = vunpack.c.h.b16 %v4132
      %v4171 = vunpack.c.h.b16 %v4133
      %v4172 = vunpack.c.l.b16 %v4134
      %v4173 = vunpack.c.l.b16 %v4135
      %v4174 = vunpack.c.h.b16 %v4134
      %v4175 = vunpack.c.h.b16 %v4135
      %v4176 = vunpack.c.l.b16 %v4136
      %v4177 = vunpack.c.l.b16 %v4137
      %v4178 = vunpack.c.h.b16 %v4136
      %v4179 = vunpack.c.h.b16 %v4137
      %v4180 = vunpack.c.l.b16 %v4138
      %v4181 = vunpack.c.l.b16 %v4139
      %v4182 = vunpack.c.h.b16 %v4138
      %v4183 = vunpack.c.h.b16 %v4139
      %v4184 = vunpack.c.l.b16 %v4140
      %v4185 = vunpack.c.l.b16 %v4141
      %v4186 = vunpack.c.h.b16 %v4140
      %v4187 = vunpack.c.h.b16 %v4141
      %v4188 = vunpack.c.l.b16 %v4142
      %v4189 = vunpack.c.l.b16 %v4143
      %v4190 = vunpack.c.h.b16 %v4142
      %v4191 = vunpack.c.h.b16 %v4143
      %v4192 = vpack.c.b16 %v4161, %v4160
      %v4193 = vpack.c.b16 %v4163, %v4162
      %v4194 = vpack.c.b16 %v4165, %v4164
      %v4195 = vpack.c.b16 %v4167, %v4166
      %v4196 = vpack.c.b16 %v4169, %v4168
      %v4197 = vpack.c.b16 %v4171, %v4170
      %v4198 = vpack.c.b16 %v4173, %v4172
      %v4199 = vpack.c.b16 %v4175, %v4174
      %v4200 = vpack.c.b16 %v4177, %v4176
      %v4201 = vpack.c.b16 %v4179, %v4178
      %v4202 = vpack.c.b16 %v4181, %v4180
      %v4203 = vpack.c.b16 %v4183, %v4182
      %v4204 = vpack.c.b16 %v4185, %v4184
      %v4205 = vpack.c.b16 %v4187, %v4186
      %v4206 = vpack.c.b16 %v4189, %v4188
      %v4207 = vpack.c.b16 %v4191, %v4190
      %4224 = vst [vmem:[%s221] sm:$0xff] %v4192
      %4225 = vst [vmem:[%s221 + $0x8] sm:$0xff] %v4193
      %4226 = vst [vmem:[%s221 + $0x10] sm:$0xff] %v4194
      %4227 = vst [vmem:[%s221 + $0x18] sm:$0xff] %v4195
      %4228 = vst [vmem:[%s221 + $0x20] sm:$0xff] %v4196
      %4229 = vst [vmem:[%s221 + $0x28] sm:$0xff] %v4197
      %4230 = vst [vmem:[%s221 + $0x30] sm:$0xff] %v4198
      %4231 = vst [vmem:[%s221 + $0x38] sm:$0xff] %v4199
      %4232 = vst [vmem:[%s221 + $0x40] sm:$0xff] %v4200
      %4233 = vst [vmem:[%s221 + $0x48] sm:$0xff] %v4201
      %4234 = vst [vmem:[%s221 + $0x50] sm:$0xff] %v4202
      %4235 = vst [vmem:[%s221 + $0x58] sm:$0xff] %v4203
      %4236 = vst [vmem:[%s221 + $0x60] sm:$0xff] %v4204
      %4237 = vst [vmem:[%s221 + $0x68] sm:$0xff] %v4205
      %4238 = vst [vmem:[%s221 + $0x70] sm:$0xff] %v4206
      %4239 = vst [vmem:[%s221 + $0x78] sm:$0xff] %v4207
      %s4240 = smul.u32 8, %s20
      %p4241 = scmp.lt.s32.totalorder %s19, 1
      %s4242 = scalar_select %p4241, %s19, 1
      %p4243 = scmp.lt.s32.totalorder %s4240, 15
      %s4244 = scalar_select %p4243, %s4240, 15
      %s4245 = smul.addr %s4244, 4
      %s4246 = smul.addr %s4242, 64
      %s4247 = sadd.s32 %s4245, %s4246
      %s4248 = smul.addr %s4247, 4
      %s4249 = scalar_lea.vmem %s4, %s4248
      // Predicated region
      $region53: #{dresnext_bottleneck_forward.1} parent=35 // pred_check
        %p4250 = pneg %p136
      $region54: #{dresnext_bottleneck_forward.1} parent=35 // pred_check_branch
        %4252 = sbr.rel (%p4250) target = $region56
      $region55: #{dresnext_bottleneck_forward.1} parent=35 // pred_region
        %s4253 = smul.u32 8, %s20
      $region56: #{dresnext_bottleneck_forward.1} parent=35 // pred_fallthru
        _
    $region36: #{dresnext_bottleneck_forward.1} parent=5 // pred_fallthru
      _
    %p4254 = scmp.le.s32.totalorder 2, %s10
    // Predicated region
    $region57: #{dresnext_bottleneck_forward.1} parent=5 // pred_check
      %p4255 = pneg %p4254
    $region58: #{dresnext_bottleneck_forward.1} parent=5 // pred_check_branch
      %4257 = sbr.rel (%p4255) target = $region60
    $region59: #{dresnext_bottleneck_forward.1} parent=5 // pred_region
      %s4258 = ssub.s32 %s10, 2
      // Predicated region
      $region61: #{dresnext_bottleneck_forward.1} parent=59 // pred_check
        %p4259 = pneg %p142
      $region62: #{dresnext_bottleneck_forward.1} parent=59 // pred_check_branch
        %4261 = sbr.rel (%p4259) target = $region64
      $region63: #{dresnext_bottleneck_forward.1} parent=59 // pred_region
        %s4262 = smul.u32 8, %s22
        %p4263 = scmp.lt.s32.totalorder %s21, 1
        %s4264 = scalar_select %p4263, %s21, 1
        %p4265 = scmp.lt.s32.totalorder %s4262, 15
        %s4266 = scalar_select %p4265, %s4262, 15
        %s4267 = smul.addr %s4266, 4
        %s4268 = smul.addr %s4264, 64
        %s4269 = sadd.s32 %s4267, %s4268
        %s4270 = smul.addr %s4269, 4
        %s4271 = scalar_lea.vmem %s4, %s4270
      $region64: #{dresnext_bottleneck_forward.1} parent=59 // pred_fallthru
        _
    $region60: #{dresnext_bottleneck_forward.1} parent=5 // pred_fallthru
      _
  $region6: #{dresnext_bottleneck_forward.1} parent=0 // loop_footer
    %s14 = sadd.s32 1, %s10
  $region7: #{dresnext_bottleneck_forward.1} parent=0 // loop_footer_branch
    %9 = sbr.rel target = $region3
  $region8: #{dresnext_bottleneck_forward.1} parent=0 // loop_exit
    _

</llo_original>
